<compile_context>
chip_gen: v7x
topology: tpu7x:2x2x1
jax: 0.10.0
libtpu: 0.0.40
codegen_flags: <defaults>
</compile_context>

<pallas_src>
import jax
import jax.numpy as jnp
from jax.experimental import pallas as pl
from jax.experimental.pallas import tpu as pltpu

# ---- architecture ---------------------------------------------------------
LATENT_DIM = 64
INPUT_DIM = 784                    # 1 * 28 * 28
PADDED_LATENT_DIM = 128            # only the bottleneck is padded (lane-dense vregs)

# logical (unpadded) layers: (in_dim, out_dim, activation)
_LAYERS = (
    (INPUT_DIM, 512, "relu"),
    (512, 256, "relu"),
    (256, 128, "relu"),
    (128, LATENT_DIM, "none"),      # end of encoder
    (LATENT_DIM, 128, "relu"),
    (128, 256, "relu"),
    (256, 512, "relu"),
    (512, INPUT_DIM, "sigmoid"),    # end of decoder
)

# layers as actually run by the kernel (latent zero-padded 64 -> 128; the
# padded lanes are produced by zero weight columns + zero bias with no
# activation, and consumed by zero weight rows, so results are unchanged)
_KERNEL_LAYERS = (
    (INPUT_DIM, 512, "relu"),
    (512, 256, "relu"),
    (256, 128, "relu"),
    (128, PADDED_LATENT_DIM, "none"),
    (PADDED_LATENT_DIM, 128, "relu"),
    (128, 256, "relu"),
    (256, 512, "relu"),
    (512, INPUT_DIM, "sigmoid"),
)


# ---- Pallas kernel --------------------------------------------------------
def _autoencoder_kernel(x_ref, *refs):
    """refs = (w0, b0, w1, b1, ..., w7, b7, out_ref).

    Per grid step the kernel sees one (TILE_B, 784) f32 activation tile plus
    the full bf16 weight set (constant index_map -> VMEM-resident across the
    batch grid).  The f32->bf16 input cast is done in VMEM (hidden under the
    MXU); all matmuls accumulate in f32 on the MXU; the final sigmoid result
    is stored bf16 (lane-count 784 == full last dim, masked tail store only).
    """
    out_ref = refs[-1]
    param_refs = refs[:-1]

    h = x_ref[...].astype(jnp.bfloat16)              # (TILE_B, 784) bf16
    for li, (_, _, act) in enumerate(_KERNEL_LAYERS):
        w = param_refs[2 * li][...]                  # bf16 (in, out)
        b = param_refs[2 * li + 1][...]              # f32  (1, out)
        acc = jnp.dot(h, w, preferred_element_type=jnp.float32) + b
        if act == "relu":
            acc = jnp.maximum(acc, 0.0)
        elif act == "sigmoid":
            # exp + approximate reciprocal -> both on the EUP slot
            acc = pl.reciprocal(1.0 + jnp.exp(-acc), approx=True)
        h = acc.astype(jnp.bfloat16)                 # bf16 between layers and for the store
    out_ref[...] = h                                 # bf16 (TILE_B, 784) store


# ---- wrapper --------------------------------------------------------------
def _round_up(x, m):
    return ((x + m - 1) // m) * m


def _pad_and_cast_params(params):
    """Zero-pad (W, b) to kernel layer shapes (latent only); W -> bf16, b -> f32 (1, out)."""
    flat = []
    for (w, b), (kin, kout, _) in zip(params, _KERNEL_LAYERS):
        fin, fout = w.shape
        if (fin, fout) != (kin, kout):
            w = jnp.zeros((kin, kout), jnp.float32).at[:fin, :fout].set(w)
            b = jnp.zeros((kout,), jnp.float32).at[:fout].set(b)
        flat.append(w.astype(jnp.bfloat16))
        flat.append(b.astype(jnp.float32).reshape(1, kout))
    return flat


def _choose_tile_b(batch):
    """Batch tile: multiple of 16 (bf16 sublane packing), capped at 512.

    When the whole (rounded) batch would fit in one tile but can be split,
    halve it so the grid has >= 2 steps (v7x has 2 TensorCores; free on
    v5e/v6e).  Larger tiles amortize the ~0.35 us per-grid-step overhead.
    """
    b16 = _round_up(batch, 16)
    tile = min(b16, 512)
    if tile == b16 and tile >= 32:
        tile //= 2
    return tile


@jax.jit
def autoencoder_forward(x_nchw, params):
    """x_nchw: (B, 1, 28, 28) float32 -> (B, 1, 28, 28) float32."""
    B = x_nchw.shape[0]
    tile_b = _choose_tile_b(B)
    Bp = _round_up(B, tile_b)
    pad_b = Bp - B

    x2d = x_nchw.reshape(B, INPUT_DIM)               # free reshape, stays f32
    if pad_b:
        x2d = jnp.pad(x2d, ((0, pad_b), (0, 0)))

    flat_params = _pad_and_cast_params(params)

    grid = (Bp // tile_b,)
    # (tile_b, 784): 784 == full last dim (legal); tile_b is a multiple of 16.
    x_spec = pl.BlockSpec((tile_b, INPUT_DIM), lambda i: (i, 0))
    # full-array blocks with a constant index_map -> loaded once, VMEM-resident
    param_specs = [pl.BlockSpec(p.shape, lambda i: (0, 0)) for p in flat_params]
    out_spec = pl.BlockSpec((tile_b, INPUT_DIM), lambda i: (i, 0))

    # advisory cost hint for the XLA scheduler
    total_mac = sum(fi * fo for fi, fo, _ in _KERNEL_LAYERS)
    param_bytes = sum(int(p.size) * p.dtype.itemsize for p in flat_params)
    cost = pl.CostEstimate(
        flops=2 * Bp * total_mac,
        transcendentals=2 * Bp * INPUT_DIM,                       # exp + reciprocal
        bytes_accessed=Bp * INPUT_DIM * 4 + Bp * INPUT_DIM * 2 + param_bytes,
    )

    out = pl.pallas_call(
        _autoencoder_kernel,
        out_shape=jax.ShapeDtypeStruct((Bp, INPUT_DIM), jnp.bfloat16),
        grid=grid,
        in_specs=[x_spec] + param_specs,
        out_specs=out_spec,
        compiler_params=pltpu.CompilerParams(
            dimension_semantics=("parallel",),   # megacore batch sharding on v7x
            vmem_limit_bytes=32 << 20,           # ~2.4 MB bf16 weights + tiles + headroom
        ),
        cost_estimate=cost,
    )(x2d, *flat_params)

    return out[:B].astype(jnp.float32).reshape(B, 1, 28, 28)


# ---- deterministic parameter init (mimics PyTorch nn.Linear default) ------
def init_params(key):
    params = []
    for li, (fan_in, fan_out, _) in enumerate(_LAYERS):
        kw, kb = jax.random.split(jax.random.fold_in(key, li))
        bound = 1.0 / jnp.sqrt(jnp.float32(fan_in))
        w = jax.random.uniform(
            kw, (fan_in, fan_out), jnp.float32, minval=-bound, maxval=bound
        )
        b = jax.random.uniform(
            kb, (fan_out,), jnp.float32, minval=-bound, maxval=bound
        )
        params.append((w, b))
    return params


# ---- pure-JAX f32 reference for correctness check --------------------------
def reference_forward(x_nchw, params):
    h = x_nchw.reshape(x_nchw.shape[0], -1)
    for (w, b), (_, _, act) in zip(params, _LAYERS):
        h = h @ w + b
        if act == "relu":
            h = jnp.maximum(h, 0.0)
        elif act == "sigmoid":
            h = jax.nn.sigmoid(h)
    return h.reshape(x_nchw.shape[0], 1, 28, 28)


if __name__ == "__main__":
    key = jax.random.PRNGKey(0)
    k_params, k_x = jax.random.split(key)

    params = init_params(k_params)
    x = jax.random.uniform(k_x, (2, 1, 28, 28), jnp.float32)

    out = autoencoder_forward(x, params)
    out = jax.block_until_ready(out)

    ref = reference_forward(x, params)
    assert out.shape == (2, 1, 28, 28), out.shape
    # bf16 weights/activations/output + approx reciprocal -> loosened tolerance vs f32 ref
    assert jnp.allclose(out, ref, atol=3e-2, rtol=3e-2), (
        float(jnp.max(jnp.abs(out - ref)))
    )
    print("KERNEL_OK")
</pallas_src>

<mosaic_0001>
module attributes {stable_mosaic.version = 11 : i64} {
  func.func @_autoencoder_kernel(%arg0: i32, %arg1: memref<16x784xf32, #tpu.memory_space<vmem>>, %arg2: memref<784x512xbf16, #tpu.memory_space<vmem>>, %arg3: memref<1x512xf32, #tpu.memory_space<vmem>>, %arg4: memref<512x256xbf16, #tpu.memory_space<vmem>>, %arg5: memref<1x256xf32, #tpu.memory_space<vmem>>, %arg6: memref<256x128xbf16, #tpu.memory_space<vmem>>, %arg7: memref<1x128xf32, #tpu.memory_space<vmem>>, %arg8: memref<128x128xbf16, #tpu.memory_space<vmem>>, %arg9: memref<1x128xf32, #tpu.memory_space<vmem>>, %arg10: memref<128x128xbf16, #tpu.memory_space<vmem>>, %arg11: memref<1x128xf32, #tpu.memory_space<vmem>>, %arg12: memref<128x256xbf16, #tpu.memory_space<vmem>>, %arg13: memref<1x256xf32, #tpu.memory_space<vmem>>, %arg14: memref<256x512xbf16, #tpu.memory_space<vmem>>, %arg15: memref<1x512xf32, #tpu.memory_space<vmem>>, %arg16: memref<512x784xbf16, #tpu.memory_space<vmem>>, %arg17: memref<1x784xf32, #tpu.memory_space<vmem>>, %arg18: memref<16x784xbf16, #tpu.memory_space<vmem>>) attributes {dimension_semantics = [#tpu.dimension_semantics<parallel>], iteration_bounds = array<i64: 1>, scalar_prefetch = 0 : i64, scratch_operands = 0 : i64, tpu.core_type = #tpu.core_type<tc>, window_params = [{transform_indices = @transform_0, window_bounds = array<i64: 16, 784>}, {pipeline_mode = #tpu.pipeline_mode<synchronous>, transform_indices = @transform_1, window_bounds = array<i64: 784, 512>}, {pipeline_mode = #tpu.pipeline_mode<synchronous>, transform_indices = @transform_2, window_bounds = array<i64: 1, 512>}, {pipeline_mode = #tpu.pipeline_mode<synchronous>, transform_indices = @transform_3, window_bounds = array<i64: 512, 256>}, {pipeline_mode = #tpu.pipeline_mode<synchronous>, transform_indices = @transform_4, window_bounds = array<i64: 1, 256>}, {pipeline_mode = #tpu.pipeline_mode<synchronous>, transform_indices = @transform_5, window_bounds = array<i64: 256, 128>}, {pipeline_mode = #tpu.pipeline_mode<synchronous>, transform_indices = @transform_6, window_bounds = array<i64: 1, 128>}, {pipeline_mode = #tpu.pipeline_mode<synchronous>, transform_indices = @transform_7, window_bounds = array<i64: 128, 128>}, {pipeline_mode = #tpu.pipeline_mode<synchronous>, transform_indices = @transform_8, window_bounds = array<i64: 1, 128>}, {pipeline_mode = #tpu.pipeline_mode<synchronous>, transform_indices = @transform_9, window_bounds = array<i64: 128, 128>}, {pipeline_mode = #tpu.pipeline_mode<synchronous>, transform_indices = @transform_10, window_bounds = array<i64: 1, 128>}, {pipeline_mode = #tpu.pipeline_mode<synchronous>, transform_indices = @transform_11, window_bounds = array<i64: 128, 256>}, {pipeline_mode = #tpu.pipeline_mode<synchronous>, transform_indices = @transform_12, window_bounds = array<i64: 1, 256>}, {pipeline_mode = #tpu.pipeline_mode<synchronous>, transform_indices = @transform_13, window_bounds = array<i64: 256, 512>}, {pipeline_mode = #tpu.pipeline_mode<synchronous>, transform_indices = @transform_14, window_bounds = array<i64: 1, 512>}, {pipeline_mode = #tpu.pipeline_mode<synchronous>, transform_indices = @transform_15, window_bounds = array<i64: 512, 784>}, {pipeline_mode = #tpu.pipeline_mode<synchronous>, transform_indices = @transform_16, window_bounds = array<i64: 1, 784>}, {transform_indices = @transform_17, window_bounds = array<i64: 16, 784>}]} {
    %c0 = arith.constant 0 : index
    %c0_0 = arith.constant 0 : index
    %0 = vector.load %arg1[%c0, %c0_0] : memref<16x784xf32, #tpu.memory_space<vmem>>, vector<16x784xf32>
    %1 = arith.truncf %0 : vector<16x784xf32> to vector<16x784xbf16>
    %c0_1 = arith.constant 0 : index
    %c0_2 = arith.constant 0 : index
    %2 = vector.load %arg2[%c0_1, %c0_2] : memref<784x512xbf16, #tpu.memory_space<vmem>>, vector<784x512xbf16>
    %c0_3 = arith.constant 0 : index
    %c0_4 = arith.constant 0 : index
    %3 = vector.load %arg3[%c0_3, %c0_4] : memref<1x512xf32, #tpu.memory_space<vmem>>, vector<1x512xf32>
    %cst = arith.constant dense<0.000000e+00> : vector<16x512xf32>
    %4 = tpu.matmul %1, %2, %cst {dimension_numbers = #tpu.dot_dimension_numbers<[1], [0], [0], [1], [0, 0, 1, 1], [], []>} : vector<16x784xbf16>, vector<784x512xbf16>, vector<16x512xf32> -> vector<16x512xf32>
    %5 = vector.broadcast %3 : vector<1x512xf32> to vector<16x512xf32>
    %6 = arith.addf %4, %5 : vector<16x512xf32>
    %cst_5 = arith.constant 0.000000e+00 : f32
    %7 = vector.broadcast %cst_5 : f32 to vector<16x512xf32>
    %8 = arith.maximumf %6, %7 : vector<16x512xf32>
    %9 = arith.truncf %8 : vector<16x512xf32> to vector<16x512xbf16>
    %c0_6 = arith.constant 0 : index
    %c0_7 = arith.constant 0 : index
    %10 = vector.load %arg4[%c0_6, %c0_7] : memref<512x256xbf16, #tpu.memory_space<vmem>>, vector<512x256xbf16>
    %c0_8 = arith.constant 0 : index
    %c0_9 = arith.constant 0 : index
    %11 = vector.load %arg5[%c0_8, %c0_9] : memref<1x256xf32, #tpu.memory_space<vmem>>, vector<1x256xf32>
    %cst_10 = arith.constant dense<0.000000e+00> : vector<16x256xf32>
    %12 = tpu.matmul %9, %10, %cst_10 {dimension_numbers = #tpu.dot_dimension_numbers<[1], [0], [0], [1], [0, 0, 1, 1], [], []>} : vector<16x512xbf16>, vector<512x256xbf16>, vector<16x256xf32> -> vector<16x256xf32>
    %13 = vector.broadcast %11 : vector<1x256xf32> to vector<16x256xf32>
    %14 = arith.addf %12, %13 : vector<16x256xf32>
    %cst_11 = arith.constant 0.000000e+00 : f32
    %15 = vector.broadcast %cst_11 : f32 to vector<16x256xf32>
    %16 = arith.maximumf %14, %15 : vector<16x256xf32>
    %17 = arith.truncf %16 : vector<16x256xf32> to vector<16x256xbf16>
    %c0_12 = arith.constant 0 : index
    %c0_13 = arith.constant 0 : index
    %18 = vector.load %arg6[%c0_12, %c0_13] : memref<256x128xbf16, #tpu.memory_space<vmem>>, vector<256x128xbf16>
    %c0_14 = arith.constant 0 : index
    %c0_15 = arith.constant 0 : index
    %19 = vector.load %arg7[%c0_14, %c0_15] : memref<1x128xf32, #tpu.memory_space<vmem>>, vector<1x128xf32>
    %cst_16 = arith.constant dense<0.000000e+00> : vector<16x128xf32>
    %20 = tpu.matmul %17, %18, %cst_16 {dimension_numbers = #tpu.dot_dimension_numbers<[1], [0], [0], [1], [0, 0, 1, 1], [], []>} : vector<16x256xbf16>, vector<256x128xbf16>, vector<16x128xf32> -> vector<16x128xf32>
    %21 = vector.broadcast %19 : vector<1x128xf32> to vector<16x128xf32>
    %22 = arith.addf %20, %21 : vector<16x128xf32>
    %cst_17 = arith.constant 0.000000e+00 : f32
    %23 = vector.broadcast %cst_17 : f32 to vector<16x128xf32>
    %24 = arith.maximumf %22, %23 : vector<16x128xf32>
    %25 = arith.truncf %24 : vector<16x128xf32> to vector<16x128xbf16>
    %c0_18 = arith.constant 0 : index
    %c0_19 = arith.constant 0 : index
    %26 = vector.load %arg8[%c0_18, %c0_19] : memref<128x128xbf16, #tpu.memory_space<vmem>>, vector<128x128xbf16>
    %c0_20 = arith.constant 0 : index
    %c0_21 = arith.constant 0 : index
    %27 = vector.load %arg9[%c0_20, %c0_21] : memref<1x128xf32, #tpu.memory_space<vmem>>, vector<1x128xf32>
    %cst_22 = arith.constant dense<0.000000e+00> : vector<16x128xf32>
    %28 = tpu.matmul %25, %26, %cst_22 {dimension_numbers = #tpu.dot_dimension_numbers<[1], [0], [0], [1], [0, 0, 1, 1], [], []>} : vector<16x128xbf16>, vector<128x128xbf16>, vector<16x128xf32> -> vector<16x128xf32>
    %29 = vector.broadcast %27 : vector<1x128xf32> to vector<16x128xf32>
    %30 = arith.addf %28, %29 : vector<16x128xf32>
    %31 = arith.truncf %30 : vector<16x128xf32> to vector<16x128xbf16>
    %c0_23 = arith.constant 0 : index
    %c0_24 = arith.constant 0 : index
    %32 = vector.load %arg10[%c0_23, %c0_24] : memref<128x128xbf16, #tpu.memory_space<vmem>>, vector<128x128xbf16>
    %c0_25 = arith.constant 0 : index
    %c0_26 = arith.constant 0 : index
    %33 = vector.load %arg11[%c0_25, %c0_26] : memref<1x128xf32, #tpu.memory_space<vmem>>, vector<1x128xf32>
    %cst_27 = arith.constant dense<0.000000e+00> : vector<16x128xf32>
    %34 = tpu.matmul %31, %32, %cst_27 {dimension_numbers = #tpu.dot_dimension_numbers<[1], [0], [0], [1], [0, 0, 1, 1], [], []>} : vector<16x128xbf16>, vector<128x128xbf16>, vector<16x128xf32> -> vector<16x128xf32>
    %35 = vector.broadcast %33 : vector<1x128xf32> to vector<16x128xf32>
    %36 = arith.addf %34, %35 : vector<16x128xf32>
    %cst_28 = arith.constant 0.000000e+00 : f32
    %37 = vector.broadcast %cst_28 : f32 to vector<16x128xf32>
    %38 = arith.maximumf %36, %37 : vector<16x128xf32>
    %39 = arith.truncf %38 : vector<16x128xf32> to vector<16x128xbf16>
    %c0_29 = arith.constant 0 : index
    %c0_30 = arith.constant 0 : index
    %40 = vector.load %arg12[%c0_29, %c0_30] : memref<128x256xbf16, #tpu.memory_space<vmem>>, vector<128x256xbf16>
    %c0_31 = arith.constant 0 : index
    %c0_32 = arith.constant 0 : index
    %41 = vector.load %arg13[%c0_31, %c0_32] : memref<1x256xf32, #tpu.memory_space<vmem>>, vector<1x256xf32>
    %cst_33 = arith.constant dense<0.000000e+00> : vector<16x256xf32>
    %42 = tpu.matmul %39, %40, %cst_33 {dimension_numbers = #tpu.dot_dimension_numbers<[1], [0], [0], [1], [0, 0, 1, 1], [], []>} : vector<16x128xbf16>, vector<128x256xbf16>, vector<16x256xf32> -> vector<16x256xf32>
    %43 = vector.broadcast %41 : vector<1x256xf32> to vector<16x256xf32>
    %44 = arith.addf %42, %43 : vector<16x256xf32>
    %cst_34 = arith.constant 0.000000e+00 : f32
    %45 = vector.broadcast %cst_34 : f32 to vector<16x256xf32>
    %46 = arith.maximumf %44, %45 : vector<16x256xf32>
    %47 = arith.truncf %46 : vector<16x256xf32> to vector<16x256xbf16>
    %c0_35 = arith.constant 0 : index
    %c0_36 = arith.constant 0 : index
    %48 = vector.load %arg14[%c0_35, %c0_36] : memref<256x512xbf16, #tpu.memory_space<vmem>>, vector<256x512xbf16>
    %c0_37 = arith.constant 0 : index
    %c0_38 = arith.constant 0 : index
    %49 = vector.load %arg15[%c0_37, %c0_38] : memref<1x512xf32, #tpu.memory_space<vmem>>, vector<1x512xf32>
    %cst_39 = arith.constant dense<0.000000e+00> : vector<16x512xf32>
    %50 = tpu.matmul %47, %48, %cst_39 {dimension_numbers = #tpu.dot_dimension_numbers<[1], [0], [0], [1], [0, 0, 1, 1], [], []>} : vector<16x256xbf16>, vector<256x512xbf16>, vector<16x512xf32> -> vector<16x512xf32>
    %51 = vector.broadcast %49 : vector<1x512xf32> to vector<16x512xf32>
    %52 = arith.addf %50, %51 : vector<16x512xf32>
    %cst_40 = arith.constant 0.000000e+00 : f32
    %53 = vector.broadcast %cst_40 : f32 to vector<16x512xf32>
    %54 = arith.maximumf %52, %53 : vector<16x512xf32>
    %55 = arith.truncf %54 : vector<16x512xf32> to vector<16x512xbf16>
    %c0_41 = arith.constant 0 : index
    %c0_42 = arith.constant 0 : index
    %56 = vector.load %arg16[%c0_41, %c0_42] : memref<512x784xbf16, #tpu.memory_space<vmem>>, vector<512x784xbf16>
    %c0_43 = arith.constant 0 : index
    %c0_44 = arith.constant 0 : index
    %57 = vector.load %arg17[%c0_43, %c0_44] : memref<1x784xf32, #tpu.memory_space<vmem>>, vector<1x784xf32>
    %cst_45 = arith.constant dense<0.000000e+00> : vector<16x784xf32>
    %58 = tpu.matmul %55, %56, %cst_45 {dimension_numbers = #tpu.dot_dimension_numbers<[1], [0], [0], [1], [0, 0, 1, 1], [], []>} : vector<16x512xbf16>, vector<512x784xbf16>, vector<16x784xf32> -> vector<16x784xf32>
    %59 = vector.broadcast %57 : vector<1x784xf32> to vector<16x784xf32>
    %60 = arith.addf %58, %59 : vector<16x784xf32>
    %cst_46 = arith.constant 0.000000e+00 : f32
    %61 = vector.broadcast %cst_46 : f32 to vector<16x784xf32>
    %62 = arith.subf %61, %60 : vector<16x784xf32>
    %63 = math.exp %62 : vector<16x784xf32>
    %cst_47 = arith.constant 1.000000e+00 : f32
    %64 = vector.broadcast %cst_47 : f32 to vector<16x784xf32>
    %65 = arith.addf %64, %63 : vector<16x784xf32>
    %66 = tpu.reciprocal %65 {approx = true} : vector<16x784xf32> -> vector<16x784xf32>
    %67 = arith.truncf %66 : vector<16x784xf32> to vector<16x784xbf16>
    %c0_48 = arith.constant 0 : index
    %c0_49 = arith.constant 0 : index
    %68 = vector.load %arg18[%c0_48, %c0_49] : memref<16x784xbf16, #tpu.memory_space<vmem>>, vector<16x784xbf16>
    tpu.vector_store %arg18[%c0_48, %c0_49], %67 {strides = array<i32>} : memref<16x784xbf16, #tpu.memory_space<vmem>>, vector<16x784xbf16>,
    return
  }
  func.func @transform_0(%arg0: i32) -> (i32, i32) {
    %c0_i32 = arith.constant 0 : i32
    %c0_i32_0 = arith.constant 0 : i32
    return %arg0, %c0_i32 : i32, i32
  }
  func.func @transform_1(%arg0: i32) -> (i32, i32) {
    %c0_i32 = arith.constant 0 : i32
    %c0_i32_0 = arith.constant 0 : i32
    %c0_i32_1 = arith.constant 0 : i32
    return %c0_i32, %c0_i32_0 : i32, i32
  }
  func.func @transform_2(%arg0: i32) -> (i32, i32) {
    %c0_i32 = arith.constant 0 : i32
    %c0_i32_0 = arith.constant 0 : i32
    %c0_i32_1 = arith.constant 0 : i32
    return %c0_i32, %c0_i32_0 : i32, i32
  }
  func.func @transform_3(%arg0: i32) -> (i32, i32) {
    %c0_i32 = arith.constant 0 : i32
    %c0_i32_0 = arith.constant 0 : i32
    %c0_i32_1 = arith.constant 0 : i32
    return %c0_i32, %c0_i32_0 : i32, i32
  }
  func.func @transform_4(%arg0: i32) -> (i32, i32) {
    %c0_i32 = arith.constant 0 : i32
    %c0_i32_0 = arith.constant 0 : i32
    %c0_i32_1 = arith.constant 0 : i32
    return %c0_i32, %c0_i32_0 : i32, i32
  }
  func.func @transform_5(%arg0: i32) -> (i32, i32) {
    %c0_i32 = arith.constant 0 : i32
    %c0_i32_0 = arith.constant 0 : i32
    %c0_i32_1 = arith.constant 0 : i32
    return %c0_i32, %c0_i32_0 : i32, i32
  }
  func.func @transform_6(%arg0: i32) -> (i32, i32) {
    %c0_i32 = arith.constant 0 : i32
    %c0_i32_0 = arith.constant 0 : i32
    %c0_i32_1 = arith.constant 0 : i32
    return %c0_i32, %c0_i32_0 : i32, i32
  }
  func.func @transform_7(%arg0: i32) -> (i32, i32) {
    %c0_i32 = arith.constant 0 : i32
    %c0_i32_0 = arith.constant 0 : i32
    %c0_i32_1 = arith.constant 0 : i32
    return %c0_i32, %c0_i32_0 : i32, i32
  }
  func.func @transform_8(%arg0: i32) -> (i32, i32) {
    %c0_i32 = arith.constant 0 : i32
    %c0_i32_0 = arith.constant 0 : i32
    %c0_i32_1 = arith.constant 0 : i32
    return %c0_i32, %c0_i32_0 : i32, i32
  }
  func.func @transform_9(%arg0: i32) -> (i32, i32) {
    %c0_i32 = arith.constant 0 : i32
    %c0_i32_0 = arith.constant 0 : i32
    %c0_i32_1 = arith.constant 0 : i32
    return %c0_i32, %c0_i32_0 : i32, i32
  }
  func.func @transform_10(%arg0: i32) -> (i32, i32) {
    %c0_i32 = arith.constant 0 : i32
    %c0_i32_0 = arith.constant 0 : i32
    %c0_i32_1 = arith.constant 0 : i32
    return %c0_i32, %c0_i32_0 : i32, i32
  }
  func.func @transform_11(%arg0: i32) -> (i32, i32) {
    %c0_i32 = arith.constant 0 : i32
    %c0_i32_0 = arith.constant 0 : i32
    %c0_i32_1 = arith.constant 0 : i32
    return %c0_i32, %c0_i32_0 : i32, i32
  }
  func.func @transform_12(%arg0: i32) -> (i32, i32) {
    %c0_i32 = arith.constant 0 : i32
    %c0_i32_0 = arith.constant 0 : i32
    %c0_i32_1 = arith.constant 0 : i32
    return %c0_i32, %c0_i32_0 : i32, i32
  }
  func.func @transform_13(%arg0: i32) -> (i32, i32) {
    %c0_i32 = arith.constant 0 : i32
    %c0_i32_0 = arith.constant 0 : i32
    %c0_i32_1 = arith.constant 0 : i32
    return %c0_i32, %c0_i32_0 : i32, i32
  }
  func.func @transform_14(%arg0: i32) -> (i32, i32) {
    %c0_i32 = arith.constant 0 : i32
    %c0_i32_0 = arith.constant 0 : i32
    %c0_i32_1 = arith.constant 0 : i32
    return %c0_i32, %c0_i32_0 : i32, i32
  }
  func.func @transform_15(%arg0: i32) -> (i32, i32) {
    %c0_i32 = arith.constant 0 : i32
    %c0_i32_0 = arith.constant 0 : i32
    %c0_i32_1 = arith.constant 0 : i32
    return %c0_i32, %c0_i32_0 : i32, i32
  }
  func.func @transform_16(%arg0: i32) -> (i32, i32) {
    %c0_i32 = arith.constant 0 : i32
    %c0_i32_0 = arith.constant 0 : i32
    %c0_i32_1 = arith.constant 0 : i32
    return %c0_i32, %c0_i32_0 : i32, i32
  }
  func.func @transform_17(%arg0: i32) -> (i32, i32) {
    %c0_i32 = arith.constant 0 : i32
    %c0_i32_0 = arith.constant 0 : i32
    return %arg0, %c0_i32 : i32, i32
  }
}

</mosaic_0001>

<llo_original>
// kernel: autoencoder_forward.1
$region0: #{autoencoder_forward.1}
  #allocation0 [shape = 'u32[]', space=smem, size = 0x4, offset = 0x4, fixed_abs, tag = 'smem constant byte address 0x4 - core index']
  #allocation1 [shape = 'u32[144,128]{1,0:T(1,128)}', space=vmem, size = 0x12000, scoped, tag = 'internal scratch']
  %s0 = inlined_call_operand.vmem [shape: f32[16,784], index: 0, kind: input, shape index: {}]
  %s1 = inlined_call_operand.vmem [shape: bf16[784,512], index: 1, kind: input, shape index: {}]
  %s2 = inlined_call_operand.vmem [shape: f32[1,512], index: 2, kind: input, shape index: {}]
  %s3 = inlined_call_operand.vmem [shape: bf16[512,256], index: 3, kind: input, shape index: {}]
  %s4 = inlined_call_operand.vmem [shape: f32[1,256], index: 4, kind: input, shape index: {}]
  %s5 = inlined_call_operand.vmem [shape: bf16[256,128], index: 5, kind: input, shape index: {}]
  %s6 = inlined_call_operand.vmem [shape: f32[1,128], index: 6, kind: input, shape index: {}]
  %s7 = inlined_call_operand.vmem [shape: bf16[128,128], index: 7, kind: input, shape index: {}]
  %s8 = inlined_call_operand.vmem [shape: f32[1,128], index: 8, kind: input, shape index: {}]
  %s9 = inlined_call_operand.vmem [shape: bf16[128,128], index: 9, kind: input, shape index: {}]
  %s10 = inlined_call_operand.vmem [shape: f32[1,128], index: 10, kind: input, shape index: {}]
  %s11 = inlined_call_operand.vmem [shape: bf16[128,256], index: 11, kind: input, shape index: {}]
  %s12 = inlined_call_operand.vmem [shape: f32[1,256], index: 12, kind: input, shape index: {}]
  %s13 = inlined_call_operand.vmem [shape: bf16[256,512], index: 13, kind: input, shape index: {}]
  %s14 = inlined_call_operand.vmem [shape: f32[1,512], index: 14, kind: input, shape index: {}]
  %s15 = inlined_call_operand.vmem [shape: bf16[512,784], index: 15, kind: input, shape index: {}]
  %s16 = inlined_call_operand.vmem [shape: f32[1,784], index: 16, kind: input, shape index: {}]
  %s17 = inlined_call_operand.vmem [shape: bf16[16,784], index: 17, kind: output, shape index: {}]
  %s18 = sld [smem:[#allocation0]]
  $region78: #{autoencoder_forward.1} parent=0
    _
  %s20 = ssub.s32 1, %s18
  %s21 = scalar_select 0, %s20, %s18
  // Predicated region
  $region2: #{autoencoder_forward.1} parent=0 // pred_check
    _
  $region3: #{autoencoder_forward.1} parent=0 // pred_check_branch
    %23 = sbr.rel (0) target = $region5
  $region4: #{autoencoder_forward.1} parent=0 // pred_region
    _
  $region5: #{autoencoder_forward.1} parent=0 // pred_fallthru
    _
  // Predicated region
  $region6: #{autoencoder_forward.1} parent=0 // pred_check
    _
  $region7: #{autoencoder_forward.1} parent=0 // pred_check_branch
    %25 = sbr.rel (0) target = $region9
  $region8: #{autoencoder_forward.1} parent=0 // pred_region
    _
  $region9: #{autoencoder_forward.1} parent=0 // pred_fallthru
    _
  // Predicated region
  $region10: #{autoencoder_forward.1} parent=0 // pred_check
    _
  $region11: #{autoencoder_forward.1} parent=0 // pred_check_branch
    %27 = sbr.rel (0) target = $region13
  $region12: #{autoencoder_forward.1} parent=0 // pred_region
    _
  $region13: #{autoencoder_forward.1} parent=0 // pred_fallthru
    _
  // Predicated region
  $region14: #{autoencoder_forward.1} parent=0 // pred_check
    _
  $region15: #{autoencoder_forward.1} parent=0 // pred_check_branch
    %29 = sbr.rel (0) target = $region17
  $region16: #{autoencoder_forward.1} parent=0 // pred_region
    _
  $region17: #{autoencoder_forward.1} parent=0 // pred_fallthru
    _
  // Predicated region
  $region18: #{autoencoder_forward.1} parent=0 // pred_check
    _
  $region19: #{autoencoder_forward.1} parent=0 // pred_check_branch
    %31 = sbr.rel (0) target = $region21
  $region20: #{autoencoder_forward.1} parent=0 // pred_region
    _
  $region21: #{autoencoder_forward.1} parent=0 // pred_fallthru
    _
  // Predicated region
  $region22: #{autoencoder_forward.1} parent=0 // pred_check
    _
  $region23: #{autoencoder_forward.1} parent=0 // pred_check_branch
    %33 = sbr.rel (0) target = $region25
  $region24: #{autoencoder_forward.1} parent=0 // pred_region
    _
  $region25: #{autoencoder_forward.1} parent=0 // pred_fallthru
    _
  // Predicated region
  $region26: #{autoencoder_forward.1} parent=0 // pred_check
    _
  $region27: #{autoencoder_forward.1} parent=0 // pred_check_branch
    %35 = sbr.rel (0) target = $region29
  $region28: #{autoencoder_forward.1} parent=0 // pred_region
    _
  $region29: #{autoencoder_forward.1} parent=0 // pred_fallthru
    _
  // Predicated region
  $region30: #{autoencoder_forward.1} parent=0 // pred_check
    _
  $region31: #{autoencoder_forward.1} parent=0 // pred_check_branch
    %37 = sbr.rel (0) target = $region33
  $region32: #{autoencoder_forward.1} parent=0 // pred_region
    _
  $region33: #{autoencoder_forward.1} parent=0 // pred_fallthru
    _
  // Predicated region
  $region34: #{autoencoder_forward.1} parent=0 // pred_check
    _
  $region35: #{autoencoder_forward.1} parent=0 // pred_check_branch
    %39 = sbr.rel (0) target = $region37
  $region36: #{autoencoder_forward.1} parent=0 // pred_region
    _
  $region37: #{autoencoder_forward.1} parent=0 // pred_fallthru
    _
  // Predicated region
  $region38: #{autoencoder_forward.1} parent=0 // pred_check
    _
  $region39: #{autoencoder_forward.1} parent=0 // pred_check_branch
    %41 = sbr.rel (0) target = $region41
  $region40: #{autoencoder_forward.1} parent=0 // pred_region
    _
  $region41: #{autoencoder_forward.1} parent=0 // pred_fallthru
    _
  // Predicated region
  $region42: #{autoencoder_forward.1} parent=0 // pred_check
    _
  $region43: #{autoencoder_forward.1} parent=0 // pred_check_branch
    %43 = sbr.rel (0) target = $region45
  $region44: #{autoencoder_forward.1} parent=0 // pred_region
    _
  $region45: #{autoencoder_forward.1} parent=0 // pred_fallthru
    _
  // Predicated region
  $region46: #{autoencoder_forward.1} parent=0 // pred_check
    _
  $region47: #{autoencoder_forward.1} parent=0 // pred_check_branch
    %45 = sbr.rel (0) target = $region49
  $region48: #{autoencoder_forward.1} parent=0 // pred_region
    _
  $region49: #{autoencoder_forward.1} parent=0 // pred_fallthru
    _
  // Predicated region
  $region50: #{autoencoder_forward.1} parent=0 // pred_check
    _
  $region51: #{autoencoder_forward.1} parent=0 // pred_check_branch
    %47 = sbr.rel (0) target = $region53
  $region52: #{autoencoder_forward.1} parent=0 // pred_region
    _
  $region53: #{autoencoder_forward.1} parent=0 // pred_fallthru
    _
  // Predicated region
  $region54: #{autoencoder_forward.1} parent=0 // pred_check
    _
  $region55: #{autoencoder_forward.1} parent=0 // pred_check_branch
    %49 = sbr.rel (0) target = $region57
  $region56: #{autoencoder_forward.1} parent=0 // pred_region
    _
  $region57: #{autoencoder_forward.1} parent=0 // pred_fallthru
    _
  // Predicated region
  $region58: #{autoencoder_forward.1} parent=0 // pred_check
    _
  $region59: #{autoencoder_forward.1} parent=0 // pred_check_branch
    %51 = sbr.rel (0) target = $region61
  $region60: #{autoencoder_forward.1} parent=0 // pred_region
    _
  $region61: #{autoencoder_forward.1} parent=0 // pred_fallthru
    _
  // Predicated region
  $region62: #{autoencoder_forward.1} parent=0 // pred_check
    _
  $region63: #{autoencoder_forward.1} parent=0 // pred_check_branch
    %53 = sbr.rel (0) target = $region65
  $region64: #{autoencoder_forward.1} parent=0 // pred_region
    _
  $region65: #{autoencoder_forward.1} parent=0 // pred_fallthru
    _
  // Predicated region
  $region66: #{autoencoder_forward.1} parent=0 // pred_check
    _
  $region67: #{autoencoder_forward.1} parent=0 // pred_check_branch
    %55 = sbr.rel (0) target = $region69
  $region68: #{autoencoder_forward.1} parent=0 // pred_region
    _
  $region69: #{autoencoder_forward.1} parent=0 // pred_fallthru
    _
  %v57 = vld [vmem:[%s0] sm:$0xff]
  %v58 = vld [vmem:[%s0 + $0x8] sm:$0xff]
  %v59 = vld [vmem:[%s0 + $0x10] sm:$0xff]
  %v60 = vld [vmem:[%s0 + $0x18] sm:$0xff]
  %v61 = vld [vmem:[%s0 + $0x20] sm:$0xff]
  %v62 = vld [vmem:[%s0 + $0x28] sm:$0xff]
  %v63 = vld [vmem:[%s0 + $0x30] sm:$0xff]
  %v64 = vld [vmem:[%s0 + $0x38] sm:$0xff]
  %v65 = vld [vmem:[%s0 + $0x40] sm:$0xff]
  %v66 = vld [vmem:[%s0 + $0x48] sm:$0xff]
  %v67 = vld [vmem:[%s0 + $0x50] sm:$0xff]
  %v68 = vld [vmem:[%s0 + $0x58] sm:$0xff]
  %v69 = vld [vmem:[%s0 + $0x60] sm:$0xff]
  %v70 = vld [vmem:[%s0 + $0x68] sm:$0xff]
  %v71 = vpack.c.bf16 %v64, %v57
  %v72 = vpack.c.bf16 %v65, %v58
  %v73 = vpack.c.bf16 %v66, %v59
  %v74 = vpack.c.bf16 %v67, %v60
  %v75 = vpack.c.bf16 %v68, %v61
  %v76 = vpack.c.bf16 %v69, %v62
  %v77 = vpack.c.bf16 %v70, %v63
  %v78 = vld [vmem:[%s1] sm:$0xff]
  %v79 = vld [vmem:[%s1 + $0x8] sm:$0xff]
  %v80 = vld [vmem:[%s1 + $0x10] sm:$0xff]
  %v81 = vld [vmem:[%s1 + $0x18] sm:$0xff]
  %v82 = vld [vmem:[%s1 + $0x20] sm:$0xff]
  %v83 = vld [vmem:[%s1 + $0x28] sm:$0xff]
  %v84 = vld [vmem:[%s1 + $0x30] sm:$0xff]
  %v85 = vld [vmem:[%s1 + $0x38] sm:$0xff]
  %v86 = vld [vmem:[%s1 + $0x40] sm:$0xff]
  %v87 = vld [vmem:[%s1 + $0x48] sm:$0xff]
  %v88 = vld [vmem:[%s1 + $0x50] sm:$0xff]
  %v89 = vld [vmem:[%s1 + $0x58] sm:$0xff]
  %v90 = vld [vmem:[%s1 + $0x60] sm:$0xff]
  %v91 = vld [vmem:[%s1 + $0x68] sm:$0xff]
  %v92 = vld [vmem:[%s1 + $0x70] sm:$0xff]
  %v93 = vld [vmem:[%s1 + $0x78] sm:$0xff]
  %v94 = vld [vmem:[%s1 + $0x80] sm:$0xff]
  %v95 = vld [vmem:[%s1 + $0x88] sm:$0xff]
  %v96 = vld [vmem:[%s1 + $0x90] sm:$0xff]
  %v97 = vld [vmem:[%s1 + $0x98] sm:$0xff]
  %v98 = vld [vmem:[%s1 + $0xa0] sm:$0xff]
  %v99 = vld [vmem:[%s1 + $0xa8] sm:$0xff]
  %v100 = vld [vmem:[%s1 + $0xb0] sm:$0xff]
  %v101 = vld [vmem:[%s1 + $0xb8] sm:$0xff]
  %v102 = vld [vmem:[%s1 + $0xc0] sm:$0xff]
  %v103 = vld [vmem:[%s1 + $0xc8] sm:$0xff]
  %v104 = vld [vmem:[%s1 + $0xd0] sm:$0xff]
  %v105 = vld [vmem:[%s1 + $0xd8] sm:$0xff]
  %v106 = vld [vmem:[%s1 + $0xe0] sm:$0xff]
  %v107 = vld [vmem:[%s1 + $0xe8] sm:$0xff]
  %v108 = vld [vmem:[%s1 + $0xf0] sm:$0xff]
  %v109 = vld [vmem:[%s1 + $0xf8] sm:$0xff]
  %v110 = vld [vmem:[%s1 + $0x100] sm:$0xff]
  %v111 = vld [vmem:[%s1 + $0x108] sm:$0xff]
  %v112 = vld [vmem:[%s1 + $0x110] sm:$0xff]
  %v113 = vld [vmem:[%s1 + $0x118] sm:$0xff]
  %v114 = vld [vmem:[%s1 + $0x120] sm:$0xff]
  %v115 = vld [vmem:[%s1 + $0x128] sm:$0xff]
  %v116 = vld [vmem:[%s1 + $0x130] sm:$0xff]
  %v117 = vld [vmem:[%s1 + $0x138] sm:$0xff]
  %v118 = vld [vmem:[%s1 + $0x140] sm:$0xff]
  %v119 = vld [vmem:[%s1 + $0x148] sm:$0xff]
  %v120 = vld [vmem:[%s1 + $0x150] sm:$0xff]
  %v121 = vld [vmem:[%s1 + $0x158] sm:$0xff]
  %v122 = vld [vmem:[%s1 + $0x160] sm:$0xff]
  %v123 = vld [vmem:[%s1 + $0x168] sm:$0xff]
  %v124 = vld [vmem:[%s1 + $0x170] sm:$0xff]
  %v125 = vld [vmem:[%s1 + $0x178] sm:$0xff]
  %v126 = vld [vmem:[%s1 + $0x180] sm:$0xff]
  %v127 = vld [vmem:[%s1 + $0x188] sm:$0xff]
  %v128 = vld [vmem:[%s1 + $0x190] sm:$0xff]
  %v129 = vld [vmem:[%s1 + $0x198] sm:$0xff]
  %v130 = vld [vmem:[%s1 + $0x1a0] sm:$0xff]
  %v131 = vld [vmem:[%s1 + $0x1a8] sm:$0xff]
  %v132 = vld [vmem:[%s1 + $0x1b0] sm:$0xff]
  %v133 = vld [vmem:[%s1 + $0x1b8] sm:$0xff]
  %v134 = vld [vmem:[%s1 + $0x1c0] sm:$0xff]
  %v135 = vld [vmem:[%s1 + $0x1c8] sm:$0xff]
  %v136 = vld [vmem:[%s1 + $0x1d0] sm:$0xff]
  %v137 = vld [vmem:[%s1 + $0x1d8] sm:$0xff]
  %v138 = vld [vmem:[%s1 + $0x1e0] sm:$0xff]
  %v139 = vld [vmem:[%s1 + $0x1e8] sm:$0xff]
  %v140 = vld [vmem:[%s1 + $0x1f0] sm:$0xff]
  %v141 = vld [vmem:[%s1 + $0x1f8] sm:$0xff]
  %v142 = vld [vmem:[%s1 + $0x200] sm:$0xff]
  %v143 = vld [vmem:[%s1 + $0x208] sm:$0xff]
  %v144 = vld [vmem:[%s1 + $0x210] sm:$0xff]
  %v145 = vld [vmem:[%s1 + $0x218] sm:$0xff]
  %v146 = vld [vmem:[%s1 + $0x220] sm:$0xff]
  %v147 = vld [vmem:[%s1 + $0x228] sm:$0xff]
  %v148 = vld [vmem:[%s1 + $0x230] sm:$0xff]
  %v149 = vld [vmem:[%s1 + $0x238] sm:$0xff]
  %v150 = vld [vmem:[%s1 + $0x240] sm:$0xff]
  %v151 = vld [vmem:[%s1 + $0x248] sm:$0xff]
  %v152 = vld [vmem:[%s1 + $0x250] sm:$0xff]
  %v153 = vld [vmem:[%s1 + $0x258] sm:$0xff]
  %v154 = vld [vmem:[%s1 + $0x260] sm:$0xff]
  %v155 = vld [vmem:[%s1 + $0x268] sm:$0xff]
  %v156 = vld [vmem:[%s1 + $0x270] sm:$0xff]
  %v157 = vld [vmem:[%s1 + $0x278] sm:$0xff]
  %v158 = vld [vmem:[%s1 + $0x280] sm:$0xff]
  %v159 = vld [vmem:[%s1 + $0x288] sm:$0xff]
  %v160 = vld [vmem:[%s1 + $0x290] sm:$0xff]
  %v161 = vld [vmem:[%s1 + $0x298] sm:$0xff]
  %v162 = vld [vmem:[%s1 + $0x2a0] sm:$0xff]
  %v163 = vld [vmem:[%s1 + $0x2a8] sm:$0xff]
  %v164 = vld [vmem:[%s1 + $0x2b0] sm:$0xff]
  %v165 = vld [vmem:[%s1 + $0x2b8] sm:$0xff]
  %v166 = vld [vmem:[%s1 + $0x2c0] sm:$0xff]
  %v167 = vld [vmem:[%s1 + $0x2c8] sm:$0xff]
  %v168 = vld [vmem:[%s1 + $0x2d0] sm:$0xff]
  %v169 = vld [vmem:[%s1 + $0x2d8] sm:$0xff]
  %v170 = vld [vmem:[%s1 + $0x2e0] sm:$0xff]
  %v171 = vld [vmem:[%s1 + $0x2e8] sm:$0xff]
  %v172 = vld [vmem:[%s1 + $0x2f0] sm:$0xff]
  %v173 = vld [vmem:[%s1 + $0x2f8] sm:$0xff]
  %v174 = vld [vmem:[%s1 + $0x300] sm:$0xff]
  %v175 = vld [vmem:[%s1 + $0x308] sm:$0xff]
  %v176 = vld [vmem:[%s1 + $0x310] sm:$0xff]
  %v177 = vld [vmem:[%s1 + $0x318] sm:$0xff]
  %v178 = vld [vmem:[%s1 + $0x320] sm:$0xff]
  %v179 = vld [vmem:[%s1 + $0x328] sm:$0xff]
  %v180 = vld [vmem:[%s1 + $0x330] sm:$0xff]
  %v181 = vld [vmem:[%s1 + $0x338] sm:$0xff]
  %v182 = vld [vmem:[%s1 + $0x340] sm:$0xff]
  %v183 = vld [vmem:[%s1 + $0x348] sm:$0xff]
  %v184 = vld [vmem:[%s1 + $0x350] sm:$0xff]
  %v185 = vld [vmem:[%s1 + $0x358] sm:$0xff]
  %v186 = vld [vmem:[%s1 + $0x360] sm:$0xff]
  %v187 = vld [vmem:[%s1 + $0x368] sm:$0xff]
  %v188 = vld [vmem:[%s1 + $0x370] sm:$0xff]
  %v189 = vld [vmem:[%s1 + $0x378] sm:$0xff]
  %v190 = vld [vmem:[%s1 + $0x380] sm:$0xff]
  %v191 = vld [vmem:[%s1 + $0x388] sm:$0xff]
  %v192 = vld [vmem:[%s1 + $0x390] sm:$0xff]
  %v193 = vld [vmem:[%s1 + $0x398] sm:$0xff]
  %v194 = vld [vmem:[%s1 + $0x3a0] sm:$0xff]
  %v195 = vld [vmem:[%s1 + $0x3a8] sm:$0xff]
  %v196 = vld [vmem:[%s1 + $0x3b0] sm:$0xff]
  %v197 = vld [vmem:[%s1 + $0x3b8] sm:$0xff]
  %v198 = vld [vmem:[%s1 + $0x3c0] sm:$0xff]
  %v199 = vld [vmem:[%s1 + $0x3c8] sm:$0xff]
  %v200 = vld [vmem:[%s1 + $0x3d0] sm:$0xff]
  %v201 = vld [vmem:[%s1 + $0x3d8] sm:$0xff]
  %v202 = vld [vmem:[%s1 + $0x3e0] sm:$0xff]
  %v203 = vld [vmem:[%s1 + $0x3e8] sm:$0xff]
  %v204 = vld [vmem:[%s1 + $0x3f0] sm:$0xff]
  %v205 = vld [vmem:[%s1 + $0x3f8] sm:$0xff]
  %v206 = vld [vmem:[%s1 + $0x400] sm:$0xff]
  %v207 = vld [vmem:[%s1 + $0x408] sm:$0xff]
  %v208 = vld [vmem:[%s1 + $0x410] sm:$0xff]
  %v209 = vld [vmem:[%s1 + $0x418] sm:$0xff]
  %v210 = vld [vmem:[%s1 + $0x420] sm:$0xff]
  %v211 = vld [vmem:[%s1 + $0x428] sm:$0xff]
  %v212 = vld [vmem:[%s1 + $0x430] sm:$0xff]
  %v213 = vld [vmem:[%s1 + $0x438] sm:$0xff]
  %v214 = vld [vmem:[%s1 + $0x440] sm:$0xff]
  %v215 = vld [vmem:[%s1 + $0x448] sm:$0xff]
  %v216 = vld [vmem:[%s1 + $0x450] sm:$0xff]
  %v217 = vld [vmem:[%s1 + $0x458] sm:$0xff]
  %v218 = vld [vmem:[%s1 + $0x460] sm:$0xff]
  %v219 = vld [vmem:[%s1 + $0x468] sm:$0xff]
  %v220 = vld [vmem:[%s1 + $0x470] sm:$0xff]
  %v221 = vld [vmem:[%s1 + $0x478] sm:$0xff]
  %v222 = vld [vmem:[%s1 + $0x480] sm:$0xff]
  %v223 = vld [vmem:[%s1 + $0x488] sm:$0xff]
  %v224 = vld [vmem:[%s1 + $0x490] sm:$0xff]
  %v225 = vld [vmem:[%s1 + $0x498] sm:$0xff]
  %v226 = vld [vmem:[%s1 + $0x4a0] sm:$0xff]
  %v227 = vld [vmem:[%s1 + $0x4a8] sm:$0xff]
  %v228 = vld [vmem:[%s1 + $0x4b0] sm:$0xff]
  %v229 = vld [vmem:[%s1 + $0x4b8] sm:$0xff]
  %v230 = vld [vmem:[%s1 + $0x4c0] sm:$0xff]
  %v231 = vld [vmem:[%s1 + $0x4c8] sm:$0xff]
  %v232 = vld [vmem:[%s1 + $0x4d0] sm:$0xff]
  %v233 = vld [vmem:[%s1 + $0x4d8] sm:$0xff]
  %v234 = vld [vmem:[%s1 + $0x4e0] sm:$0xff]
  %v235 = vld [vmem:[%s1 + $0x4e8] sm:$0xff]
  %v236 = vld [vmem:[%s1 + $0x4f0] sm:$0xff]
  %v237 = vld [vmem:[%s1 + $0x4f8] sm:$0xff]
  %v238 = vld [vmem:[%s1 + $0x500] sm:$0xff]
  %v239 = vld [vmem:[%s1 + $0x508] sm:$0xff]
  %v240 = vld [vmem:[%s1 + $0x510] sm:$0xff]
  %v241 = vld [vmem:[%s1 + $0x518] sm:$0xff]
  %v242 = vld [vmem:[%s1 + $0x520] sm:$0xff]
  %v243 = vld [vmem:[%s1 + $0x528] sm:$0xff]
  %v244 = vld [vmem:[%s1 + $0x530] sm:$0xff]
  %v245 = vld [vmem:[%s1 + $0x538] sm:$0xff]
  %v246 = vld [vmem:[%s1 + $0x540] sm:$0xff]
  %v247 = vld [vmem:[%s1 + $0x548] sm:$0xff]
  %v248 = vld [vmem:[%s1 + $0x550] sm:$0xff]
  %v249 = vld [vmem:[%s1 + $0x558] sm:$0xff]
  %v250 = vld [vmem:[%s1 + $0x560] sm:$0xff]
  %v251 = vld [vmem:[%s1 + $0x568] sm:$0xff]
  %v252 = vld [vmem:[%s1 + $0x570] sm:$0xff]
  %v253 = vld [vmem:[%s1 + $0x578] sm:$0xff]
  %v254 = vld [vmem:[%s1 + $0x580] sm:$0xff]
  %v255 = vld [vmem:[%s1 + $0x588] sm:$0xff]
  %v256 = vld [vmem:[%s1 + $0x590] sm:$0xff]
  %v257 = vld [vmem:[%s1 + $0x598] sm:$0xff]
  %v258 = vld [vmem:[%s1 + $0x5a0] sm:$0xff]
  %v259 = vld [vmem:[%s1 + $0x5a8] sm:$0xff]
  %v260 = vld [vmem:[%s1 + $0x5b0] sm:$0xff]
  %v261 = vld [vmem:[%s1 + $0x5b8] sm:$0xff]
  %v262 = vld [vmem:[%s1 + $0x5c0] sm:$0xff]
  %v263 = vld [vmem:[%s1 + $0x5c8] sm:$0xff]
  %v264 = vld [vmem:[%s1 + $0x5d0] sm:$0xff]
  %v265 = vld [vmem:[%s1 + $0x5d8] sm:$0xff]
  %v266 = vld [vmem:[%s1 + $0x5e0] sm:$0xff]
  %v267 = vld [vmem:[%s1 + $0x5e8] sm:$0xff]
  %v268 = vld [vmem:[%s1 + $0x5f0] sm:$0xff]
  %v269 = vld [vmem:[%s1 + $0x5f8] sm:$0xff]
  %v270 = vld [vmem:[%s1 + $0x600] sm:$0xff]
  %v271 = vld [vmem:[%s1 + $0x608] sm:$0xff]
  %v272 = vld [vmem:[%s1 + $0x610] sm:$0xff]
  %v273 = vld [vmem:[%s1 + $0x618] sm:$0xff]
  %v274 = vld [vmem:[%s2] sm:$0xf]
  %v276 = vlaneseq
  %v277 = vshrl.u32 %v276, 7
  %v278 = vsub.s32 0, %v277
  %v279 = vrot.slane %v274, %v278
  %v280 = vlaneseq
  %v281 = vshrl.u32 %v280, 7
  %v282 = vsub.s32 1, %v281
  %v283 = vrot.slane %v274, %v282
  %v284 = vlaneseq
  %v285 = vshrl.u32 %v284, 7
  %v286 = vsub.s32 2, %v285
  %v287 = vrot.slane %v274, %v286
  %v288 = vlaneseq
  %v289 = vshrl.u32 %v288, 7
  %v290 = vsub.s32 3, %v289
  %v291 = vrot.slane %v274, %v290
  %v492 = vunpack.c.l.b16 %v78
  %v493 = vunpack.c.h.b16 %v78
  %v494 = vunpack.c.l.b16 %v79
  %v495 = vunpack.c.h.b16 %v79
  %v496 = vunpack.c.l.b16 %v80
  %v497 = vunpack.c.h.b16 %v80
  %v498 = vunpack.c.l.b16 %v81
  %v499 = vunpack.c.h.b16 %v81
  %v500 = vunpack.c.l.b16 %v82
  %v501 = vunpack.c.h.b16 %v82
  %v502 = vunpack.c.l.b16 %v83
  %v503 = vunpack.c.h.b16 %v83
  %v504 = vunpack.c.l.b16 %v84
  %v505 = vunpack.c.h.b16 %v84
  %v506 = vunpack.c.l.b16 %v85
  %v507 = vunpack.c.h.b16 %v85
  %v508 = vunpack.c.l.b16 %v86
  %v509 = vunpack.c.h.b16 %v86
  %v510 = vunpack.c.l.b16 %v87
  %v511 = vunpack.c.h.b16 %v87
  %v512 = vunpack.c.l.b16 %v88
  %v513 = vunpack.c.h.b16 %v88
  %v514 = vunpack.c.l.b16 %v89
  %v515 = vunpack.c.h.b16 %v89
  %v516 = vunpack.c.l.b16 %v90
  %v517 = vunpack.c.h.b16 %v90
  %v518 = vunpack.c.l.b16 %v91
  %v519 = vunpack.c.h.b16 %v91
  %v520 = vunpack.c.l.b16 %v92
  %v521 = vunpack.c.h.b16 %v92
  %v522 = vunpack.c.l.b16 %v93
  %v523 = vunpack.c.h.b16 %v93
  %v524 = vunpack.c.l.b16 %v94
  %v525 = vunpack.c.h.b16 %v94
  %v526 = vunpack.c.l.b16 %v95
  %v527 = vunpack.c.h.b16 %v95
  %v528 = vunpack.c.l.b16 %v96
  %v529 = vunpack.c.h.b16 %v96
  %v530 = vunpack.c.l.b16 %v97
  %v531 = vunpack.c.h.b16 %v97
  %v532 = vunpack.c.l.b16 %v98
  %v533 = vunpack.c.h.b16 %v98
  %v534 = vunpack.c.l.b16 %v99
  %v535 = vunpack.c.h.b16 %v99
  %v536 = vunpack.c.l.b16 %v100
  %v537 = vunpack.c.h.b16 %v100
  %v538 = vunpack.c.l.b16 %v101
  %v539 = vunpack.c.h.b16 %v101
  %v540 = vunpack.c.l.b16 %v102
  %v541 = vunpack.c.h.b16 %v102
  %v542 = vunpack.c.l.b16 %v103
  %v543 = vunpack.c.h.b16 %v103
  %v544 = vunpack.c.l.b16 %v104
  %v545 = vunpack.c.h.b16 %v104
  %v546 = vunpack.c.l.b16 %v105
  %v547 = vunpack.c.h.b16 %v105
  %v548 = vunpack.c.l.b16 %v106
  %v549 = vunpack.c.h.b16 %v106
  %v550 = vunpack.c.l.b16 %v107
  %v551 = vunpack.c.h.b16 %v107
  %v552 = vunpack.c.l.b16 %v108
  %v553 = vunpack.c.h.b16 %v108
  %v554 = vunpack.c.l.b16 %v109
  %v555 = vunpack.c.h.b16 %v109
  %v556 = vunpack.c.l.b16 %v110
  %v557 = vunpack.c.h.b16 %v110
  %v558 = vunpack.c.l.b16 %v111
  %v559 = vunpack.c.h.b16 %v111
  %v560 = vunpack.c.l.b16 %v112
  %v561 = vunpack.c.h.b16 %v112
  %v562 = vunpack.c.l.b16 %v113
  %v563 = vunpack.c.h.b16 %v113
  %v564 = vunpack.c.l.b16 %v114
  %v565 = vunpack.c.h.b16 %v114
  %v566 = vunpack.c.l.b16 %v115
  %v567 = vunpack.c.h.b16 %v115
  %v568 = vunpack.c.l.b16 %v116
  %v569 = vunpack.c.h.b16 %v116
  %v570 = vunpack.c.l.b16 %v117
  %v571 = vunpack.c.h.b16 %v117
  %v572 = vunpack.c.l.b16 %v118
  %v573 = vunpack.c.h.b16 %v118
  %v574 = vunpack.c.l.b16 %v119
  %v575 = vunpack.c.h.b16 %v119
  %v576 = vunpack.c.l.b16 %v120
  %v577 = vunpack.c.h.b16 %v120
  %v578 = vunpack.c.l.b16 %v121
  %v579 = vunpack.c.h.b16 %v121
  %v580 = vunpack.c.l.b16 %v122
  %v581 = vunpack.c.h.b16 %v122
  %v582 = vunpack.c.l.b16 %v123
  %v583 = vunpack.c.h.b16 %v123
  %v584 = vunpack.c.l.b16 %v124
  %v585 = vunpack.c.h.b16 %v124
  %v586 = vunpack.c.l.b16 %v125
  %v587 = vunpack.c.h.b16 %v125
  %v588 = vunpack.c.l.b16 %v126
  %v589 = vunpack.c.h.b16 %v126
  %v590 = vunpack.c.l.b16 %v127
  %v591 = vunpack.c.h.b16 %v127
  %v592 = vunpack.c.l.b16 %v128
  %v593 = vunpack.c.h.b16 %v128
  %v594 = vunpack.c.l.b16 %v129
  %v595 = vunpack.c.h.b16 %v129
  %v596 = vunpack.c.l.b16 %v130
  %v597 = vunpack.c.h.b16 %v130
  %v598 = vunpack.c.l.b16 %v131
  %v599 = vunpack.c.h.b16 %v131
  %v600 = vunpack.c.l.b16 %v132
  %v601 = vunpack.c.h.b16 %v132
  %v602 = vunpack.c.l.b16 %v133
  %v603 = vunpack.c.h.b16 %v133
  %v604 = vunpack.c.l.b16 %v134
  %v605 = vunpack.c.h.b16 %v134
  %v606 = vunpack.c.l.b16 %v135
  %v607 = vunpack.c.h.b16 %v135
  %v608 = vunpack.c.l.b16 %v136
  %v609 = vunpack.c.h.b16 %v136
  %v610 = vunpack.c.l.b16 %v137
  %v611 = vunpack.c.h.b16 %v137
  %v612 = vunpack.c.l.b16 %v138
  %v613 = vunpack.c.h.b16 %v138
  %v614 = vunpack.c.l.b16 %v139
  %v615 = vunpack.c.h.b16 %v139
  %v616 = vunpack.c.l.b16 %v140
  %v617 = vunpack.c.h.b16 %v140
  %v618 = vunpack.c.l.b16 %v141
  %v619 = vunpack.c.h.b16 %v141
  %v620 = vunpack.c.l.b16 %v142
  %v621 = vunpack.c.h.b16 %v142
  %v622 = vunpack.c.l.b16 %v143
  %v623 = vunpack.c.h.b16 %v143
  %v624 = vunpack.c.l.b16 %v144
  %v625 = vunpack.c.h.b16 %v144
  %v626 = vunpack.c.l.b16 %v145
  %v627 = vunpack.c.h.b16 %v145
  %v628 = vunpack.c.l.b16 %v146
  %v629 = vunpack.c.h.b16 %v146
  %v630 = vunpack.c.l.b16 %v147
  %v631 = vunpack.c.h.b16 %v147
  %v632 = vunpack.c.l.b16 %v148
  %v633 = vunpack.c.h.b16 %v148
  %v634 = vunpack.c.l.b16 %v149
  %v635 = vunpack.c.h.b16 %v149
  %v636 = vunpack.c.l.b16 %v150
  %v637 = vunpack.c.h.b16 %v150
  %v638 = vunpack.c.l.b16 %v151
  %v639 = vunpack.c.h.b16 %v151
  %v640 = vunpack.c.l.b16 %v152
  %v641 = vunpack.c.h.b16 %v152
  %v642 = vunpack.c.l.b16 %v153
  %v643 = vunpack.c.h.b16 %v153
  %v644 = vunpack.c.l.b16 %v154
  %v645 = vunpack.c.h.b16 %v154
  %v646 = vunpack.c.l.b16 %v155
  %v647 = vunpack.c.h.b16 %v155
  %v648 = vunpack.c.l.b16 %v156
  %v649 = vunpack.c.h.b16 %v156
  %v650 = vunpack.c.l.b16 %v157
  %v651 = vunpack.c.h.b16 %v157
  %v652 = vunpack.c.l.b16 %v158
  %v653 = vunpack.c.h.b16 %v158
  %v654 = vunpack.c.l.b16 %v159
  %v655 = vunpack.c.h.b16 %v159
  %v656 = vunpack.c.l.b16 %v160
  %v657 = vunpack.c.h.b16 %v160
  %v658 = vunpack.c.l.b16 %v161
  %v659 = vunpack.c.h.b16 %v161
  %v660 = vunpack.c.l.b16 %v162
  %v661 = vunpack.c.h.b16 %v162
  %v662 = vunpack.c.l.b16 %v163
  %v663 = vunpack.c.h.b16 %v163
  %v664 = vunpack.c.l.b16 %v164
  %v665 = vunpack.c.h.b16 %v164
  %v666 = vunpack.c.l.b16 %v165
  %v667 = vunpack.c.h.b16 %v165
  %v668 = vunpack.c.l.b16 %v166
  %v669 = vunpack.c.h.b16 %v166
  %v670 = vunpack.c.l.b16 %v167
  %v671 = vunpack.c.h.b16 %v167
  %v672 = vunpack.c.l.b16 %v168
  %v673 = vunpack.c.h.b16 %v168
  %v674 = vunpack.c.l.b16 %v169
  %v675 = vunpack.c.h.b16 %v169
  %v676 = vunpack.c.l.b16 %v170
  %v677 = vunpack.c.h.b16 %v170
  %v678 = vunpack.c.l.b16 %v171
  %v679 = vunpack.c.h.b16 %v171
  %v680 = vunpack.c.l.b16 %v172
  %v681 = vunpack.c.h.b16 %v172
  %v682 = vunpack.c.l.b16 %v173
  %v683 = vunpack.c.h.b16 %v173
  %v684 = vunpack.c.l.b16 %v174
  %v685 = vunpack.c.h.b16 %v174
  %v686 = vunpack.c.l.b16 %v175
  %v687 = vunpack.c.h.b16 %v175
  %v688 = vunpack.c.l.b16 %v176
  %v689 = vunpack.c.h.b16 %v176
  %v690 = vunpack.c.l.b16 %v177
  %v691 = vunpack.c.h.b16 %v177
  %v692 = vunpack.c.l.b16 %v178
  %v693 = vunpack.c.h.b16 %v178
  %v694 = vunpack.c.l.b16 %v179
  %v695 = vunpack.c.h.b16 %v179
  %v696 = vunpack.c.l.b16 %v180
  %v697 = vunpack.c.h.b16 %v180
  %v698 = vunpack.c.l.b16 %v181
  %v699 = vunpack.c.h.b16 %v181
  %v700 = vunpack.c.l.b16 %v182
  %v701 = vunpack.c.h.b16 %v182
  %v702 = vunpack.c.l.b16 %v183
  %v703 = vunpack.c.h.b16 %v183
  %v704 = vunpack.c.l.b16 %v184
  %v705 = vunpack.c.h.b16 %v184
  %v706 = vunpack.c.l.b16 %v185
  %v707 = vunpack.c.h.b16 %v185
  %v708 = vunpack.c.l.b16 %v186
  %v709 = vunpack.c.h.b16 %v186
  %v710 = vunpack.c.l.b16 %v187
  %v711 = vunpack.c.h.b16 %v187
  %v712 = vunpack.c.l.b16 %v188
  %v713 = vunpack.c.h.b16 %v188
  %v714 = vunpack.c.l.b16 %v189
  %v715 = vunpack.c.h.b16 %v189
  %v716 = vunpack.c.l.b16 %v190
  %v717 = vunpack.c.h.b16 %v190
  %v718 = vunpack.c.l.b16 %v191
  %v719 = vunpack.c.h.b16 %v191
  %v720 = vunpack.c.l.b16 %v192
  %v721 = vunpack.c.h.b16 %v192
  %v722 = vunpack.c.l.b16 %v193
  %v723 = vunpack.c.h.b16 %v193
  %v724 = vunpack.c.l.b16 %v194
  %v725 = vunpack.c.h.b16 %v194
  %v726 = vunpack.c.l.b16 %v195
  %v727 = vunpack.c.h.b16 %v195
  %v728 = vunpack.c.l.b16 %v196
  %v729 = vunpack.c.h.b16 %v196
  %v730 = vunpack.c.l.b16 %v197
  %v731 = vunpack.c.h.b16 %v197
  %v732 = vunpack.c.l.b16 %v198
  %v733 = vunpack.c.h.b16 %v198
  %v734 = vunpack.c.l.b16 %v199
  %v735 = vunpack.c.h.b16 %v199
  %v736 = vunpack.c.l.b16 %v200
  %v737 = vunpack.c.h.b16 %v200
  %v738 = vunpack.c.l.b16 %v201
  %v739 = vunpack.c.h.b16 %v201
  %v740 = vunpack.c.l.b16 %v202
  %v741 = vunpack.c.h.b16 %v202
  %v742 = vunpack.c.l.b16 %v203
  %v743 = vunpack.c.h.b16 %v203
  %v744 = vunpack.c.l.b16 %v204
  %v745 = vunpack.c.h.b16 %v204
  %v746 = vunpack.c.l.b16 %v205
  %v747 = vunpack.c.h.b16 %v205
  %v748 = vunpack.c.l.b16 %v206
  %v749 = vunpack.c.h.b16 %v206
  %v750 = vunpack.c.l.b16 %v207
  %v751 = vunpack.c.h.b16 %v207
  %v752 = vunpack.c.l.b16 %v208
  %v753 = vunpack.c.h.b16 %v208
  %v754 = vunpack.c.l.b16 %v209
  %v755 = vunpack.c.h.b16 %v209
  %v756 = vunpack.c.l.b16 %v210
  %v757 = vunpack.c.h.b16 %v210
  %v758 = vunpack.c.l.b16 %v211
  %v759 = vunpack.c.h.b16 %v211
  %v760 = vunpack.c.l.b16 %v212
  %v761 = vunpack.c.h.b16 %v212
  %v762 = vunpack.c.l.b16 %v213
  %v763 = vunpack.c.h.b16 %v213
  %v764 = vunpack.c.l.b16 %v214
  %v765 = vunpack.c.h.b16 %v214
  %v766 = vunpack.c.l.b16 %v215
  %v767 = vunpack.c.h.b16 %v215
  %v768 = vunpack.c.l.b16 %v216
  %v769 = vunpack.c.h.b16 %v216
  %v770 = vunpack.c.l.b16 %v217
  %v771 = vunpack.c.h.b16 %v217
  %v772 = vunpack.c.l.b16 %v218
  %v773 = vunpack.c.h.b16 %v218
  %v774 = vunpack.c.l.b16 %v219
  %v775 = vunpack.c.h.b16 %v219
  %v776 = vunpack.c.l.b16 %v220
  %v777 = vunpack.c.h.b16 %v220
  %v778 = vunpack.c.l.b16 %v221
  %v779 = vunpack.c.h.b16 %v221
  %v780 = vunpack.c.l.b16 %v222
  %v781 = vunpack.c.h.b16 %v222
  %v782 = vunpack.c.l.b16 %v223
  %v783 = vunpack.c.h.b16 %v223
  %v784 = vunpack.c.l.b16 %v224
  %v785 = vunpack.c.h.b16 %v224
  %v786 = vunpack.c.l.b16 %v225
  %v787 = vunpack.c.h.b16 %v225
  %v788 = vunpack.c.l.b16 %v226
  %v789 = vunpack.c.h.b16 %v226
  %v790 = vunpack.c.l.b16 %v227
  %v791 = vunpack.c.h.b16 %v227
  %v792 = vunpack.c.l.b16 %v228
  %v793 = vunpack.c.h.b16 %v228
  %v794 = vunpack.c.l.b16 %v229
  %v795 = vunpack.c.h.b16 %v229
  %v796 = vunpack.c.l.b16 %v230
  %v797 = vunpack.c.h.b16 %v230
  %v798 = vunpack.c.l.b16 %v231
  %v799 = vunpack.c.h.b16 %v231
  %v800 = vunpack.c.l.b16 %v232
  %v801 = vunpack.c.h.b16 %v232
  %v802 = vunpack.c.l.b16 %v233
  %v803 = vunpack.c.h.b16 %v233
  %v804 = vunpack.c.l.b16 %v234
  %v805 = vunpack.c.h.b16 %v234
  %v806 = vunpack.c.l.b16 %v235
  %v807 = vunpack.c.h.b16 %v235
  %v808 = vunpack.c.l.b16 %v236
  %v809 = vunpack.c.h.b16 %v236
  %v810 = vunpack.c.l.b16 %v237
  %v811 = vunpack.c.h.b16 %v237
  %v812 = vunpack.c.l.b16 %v238
  %v813 = vunpack.c.h.b16 %v238
  %v814 = vunpack.c.l.b16 %v239
  %v815 = vunpack.c.h.b16 %v239
  %v816 = vunpack.c.l.b16 %v240
  %v817 = vunpack.c.h.b16 %v240
  %v818 = vunpack.c.l.b16 %v241
  %v819 = vunpack.c.h.b16 %v241
  %v820 = vunpack.c.l.b16 %v242
  %v821 = vunpack.c.h.b16 %v242
  %v822 = vunpack.c.l.b16 %v243
  %v823 = vunpack.c.h.b16 %v243
  %v824 = vunpack.c.l.b16 %v244
  %v825 = vunpack.c.h.b16 %v244
  %v826 = vunpack.c.l.b16 %v245
  %v827 = vunpack.c.h.b16 %v245
  %v828 = vunpack.c.l.b16 %v246
  %v829 = vunpack.c.h.b16 %v246
  %v830 = vunpack.c.l.b16 %v247
  %v831 = vunpack.c.h.b16 %v247
  %v832 = vunpack.c.l.b16 %v248
  %v833 = vunpack.c.h.b16 %v248
  %v834 = vunpack.c.l.b16 %v249
  %v835 = vunpack.c.h.b16 %v249
  %v836 = vunpack.c.l.b16 %v250
  %v837 = vunpack.c.h.b16 %v250
  %v838 = vunpack.c.l.b16 %v251
  %v839 = vunpack.c.h.b16 %v251
  %v840 = vunpack.c.l.b16 %v252
  %v841 = vunpack.c.h.b16 %v252
  %v842 = vunpack.c.l.b16 %v253
  %v843 = vunpack.c.h.b16 %v253
  %v844 = vunpack.c.l.b16 %v254
  %v845 = vunpack.c.h.b16 %v254
  %v846 = vunpack.c.l.b16 %v255
  %v847 = vunpack.c.h.b16 %v255
  %v848 = vunpack.c.l.b16 %v256
  %v849 = vunpack.c.h.b16 %v256
  %v850 = vunpack.c.l.b16 %v257
  %v851 = vunpack.c.h.b16 %v257
  %v852 = vunpack.c.l.b16 %v258
  %v853 = vunpack.c.h.b16 %v258
  %v854 = vunpack.c.l.b16 %v259
  %v855 = vunpack.c.h.b16 %v259
  %v856 = vunpack.c.l.b16 %v260
  %v857 = vunpack.c.h.b16 %v260
  %v858 = vunpack.c.l.b16 %v261
  %v859 = vunpack.c.h.b16 %v261
  %v860 = vunpack.c.l.b16 %v262
  %v861 = vunpack.c.h.b16 %v262
  %v862 = vunpack.c.l.b16 %v263
  %v863 = vunpack.c.h.b16 %v263
  %v864 = vunpack.c.l.b16 %v264
  %v865 = vunpack.c.h.b16 %v264
  %v866 = vunpack.c.l.b16 %v265
  %v867 = vunpack.c.h.b16 %v265
  %v868 = vunpack.c.l.b16 %v266
  %v869 = vunpack.c.h.b16 %v266
  %v870 = vunpack.c.l.b16 %v267
  %v871 = vunpack.c.h.b16 %v267
  %v872 = vunpack.c.l.b16 %v268
  %v873 = vunpack.c.h.b16 %v268
  %v874 = vunpack.c.l.b16 %v269
  %v875 = vunpack.c.h.b16 %v269
  %v876 = vunpack.c.l.b16 %v270
  %v877 = vunpack.c.h.b16 %v270
  %v878 = vunpack.c.l.b16 %v271
  %v879 = vunpack.c.h.b16 %v271
  %v880 = vunpack.c.l.b16 %v272
  %v881 = vunpack.c.h.b16 %v272
  %v882 = vunpack.c.l.b16 %v273
  %v883 = vunpack.c.h.b16 %v273
  %v884 = vpack.c.b16 %v496, %v492
  %v885 = vpack.c.b16 %v497, %v493
  %v886 = vpack.c.b16 %v498, %v494
  %v887 = vpack.c.b16 %v499, %v495
  %v888 = vpack.c.b16 %v504, %v500
  %v889 = vpack.c.b16 %v505, %v501
  %v890 = vpack.c.b16 %v506, %v502
  %v891 = vpack.c.b16 %v507, %v503
  %v892 = vpack.c.b16 %v512, %v508
  %v893 = vpack.c.b16 %v513, %v509
  %v894 = vpack.c.b16 %v514, %v510
  %v895 = vpack.c.b16 %v515, %v511
  %v896 = vpack.c.b16 %v520, %v516
  %v897 = vpack.c.b16 %v521, %v517
  %v898 = vpack.c.b16 %v522, %v518
  %v899 = vpack.c.b16 %v523, %v519
  %v900 = vpack.c.b16 %v528, %v524
  %v901 = vpack.c.b16 %v529, %v525
  %v902 = vpack.c.b16 %v530, %v526
  %v903 = vpack.c.b16 %v531, %v527
  %v904 = vpack.c.b16 %v536, %v532
  %v905 = vpack.c.b16 %v537, %v533
  %v906 = vpack.c.b16 %v538, %v534
  %v907 = vpack.c.b16 %v539, %v535
  %v908 = vpack.c.b16 %v544, %v540
  %v909 = vpack.c.b16 %v545, %v541
  %v910 = vpack.c.b16 %v546, %v542
  %v911 = vpack.c.b16 %v547, %v543
  %v912 = vpack.c.b16 %v552, %v548
  %v913 = vpack.c.b16 %v553, %v549
  %v914 = vpack.c.b16 %v554, %v550
  %v915 = vpack.c.b16 %v555, %v551
  %v916 = vpack.c.b16 %v560, %v556
  %v917 = vpack.c.b16 %v561, %v557
  %v918 = vpack.c.b16 %v562, %v558
  %v919 = vpack.c.b16 %v563, %v559
  %v920 = vpack.c.b16 %v568, %v564
  %v921 = vpack.c.b16 %v569, %v565
  %v922 = vpack.c.b16 %v570, %v566
  %v923 = vpack.c.b16 %v571, %v567
  %v924 = vpack.c.b16 %v576, %v572
  %v925 = vpack.c.b16 %v577, %v573
  %v926 = vpack.c.b16 %v578, %v574
  %v927 = vpack.c.b16 %v579, %v575
  %v928 = vpack.c.b16 %v584, %v580
  %v929 = vpack.c.b16 %v585, %v581
  %v930 = vpack.c.b16 %v586, %v582
  %v931 = vpack.c.b16 %v587, %v583
  %v932 = vpack.c.b16 %v592, %v588
  %v933 = vpack.c.b16 %v593, %v589
  %v934 = vpack.c.b16 %v594, %v590
  %v935 = vpack.c.b16 %v595, %v591
  %v936 = vpack.c.b16 %v600, %v596
  %v937 = vpack.c.b16 %v601, %v597
  %v938 = vpack.c.b16 %v602, %v598
  %v939 = vpack.c.b16 %v603, %v599
  %v940 = vpack.c.b16 %v608, %v604
  %v941 = vpack.c.b16 %v609, %v605
  %v942 = vpack.c.b16 %v610, %v606
  %v943 = vpack.c.b16 %v611, %v607
  %v944 = vpack.c.b16 %v616, %v612
  %v945 = vpack.c.b16 %v617, %v613
  %v946 = vpack.c.b16 %v618, %v614
  %v947 = vpack.c.b16 %v619, %v615
  %v948 = vpack.c.b16 %v624, %v620
  %v949 = vpack.c.b16 %v625, %v621
  %v950 = vpack.c.b16 %v626, %v622
  %v951 = vpack.c.b16 %v627, %v623
  %v952 = vpack.c.b16 %v632, %v628
  %v953 = vpack.c.b16 %v633, %v629
  %v954 = vpack.c.b16 %v634, %v630
  %v955 = vpack.c.b16 %v635, %v631
  %v956 = vpack.c.b16 %v640, %v636
  %v957 = vpack.c.b16 %v641, %v637
  %v958 = vpack.c.b16 %v642, %v638
  %v959 = vpack.c.b16 %v643, %v639
  %v960 = vpack.c.b16 %v648, %v644
  %v961 = vpack.c.b16 %v649, %v645
  %v962 = vpack.c.b16 %v650, %v646
  %v963 = vpack.c.b16 %v651, %v647
  %v964 = vpack.c.b16 %v656, %v652
  %v965 = vpack.c.b16 %v657, %v653
  %v966 = vpack.c.b16 %v658, %v654
  %v967 = vpack.c.b16 %v659, %v655
  %v968 = vpack.c.b16 %v664, %v660
  %v969 = vpack.c.b16 %v665, %v661
  %v970 = vpack.c.b16 %v666, %v662
  %v971 = vpack.c.b16 %v667, %v663
  %v972 = vpack.c.b16 %v672, %v668
  %v973 = vpack.c.b16 %v673, %v669
  %v974 = vpack.c.b16 %v674, %v670
  %v975 = vpack.c.b16 %v675, %v671
  %v976 = vpack.c.b16 %v680, %v676
  %v977 = vpack.c.b16 %v681, %v677
  %v978 = vpack.c.b16 %v682, %v678
  %v979 = vpack.c.b16 %v683, %v679
  %v980 = vpack.c.b16 %v688, %v684
  %v981 = vpack.c.b16 %v689, %v685
  %v982 = vpack.c.b16 %v690, %v686
  %v983 = vpack.c.b16 %v691, %v687
  %v984 = vpack.c.b16 %v696, %v692
  %v985 = vpack.c.b16 %v697, %v693
  %v986 = vpack.c.b16 %v698, %v694
  %v987 = vpack.c.b16 %v699, %v695
  %v988 = vpack.c.b16 %v704, %v700
  %v989 = vpack.c.b16 %v705, %v701
  %v990 = vpack.c.b16 %v706, %v702
  %v991 = vpack.c.b16 %v707, %v703
  %v992 = vpack.c.b16 %v712, %v708
  %v993 = vpack.c.b16 %v713, %v709
  %v994 = vpack.c.b16 %v714, %v710
  %v995 = vpack.c.b16 %v715, %v711
  %v996 = vpack.c.b16 %v720, %v716
  %v997 = vpack.c.b16 %v721, %v717
  %v998 = vpack.c.b16 %v722, %v718
  %v999 = vpack.c.b16 %v723, %v719
  %v1000 = vpack.c.b16 %v728, %v724
  %v1001 = vpack.c.b16 %v729, %v725
  %v1002 = vpack.c.b16 %v730, %v726
  %v1003 = vpack.c.b16 %v731, %v727
  %v1004 = vpack.c.b16 %v736, %v732
  %v1005 = vpack.c.b16 %v737, %v733
  %v1006 = vpack.c.b16 %v738, %v734
  %v1007 = vpack.c.b16 %v739, %v735
  %v1008 = vpack.c.b16 %v744, %v740
  %v1009 = vpack.c.b16 %v745, %v741
  %v1010 = vpack.c.b16 %v746, %v742
  %v1011 = vpack.c.b16 %v747, %v743
  %v1012 = vpack.c.b16 %v752, %v748
  %v1013 = vpack.c.b16 %v753, %v749
  %v1014 = vpack.c.b16 %v754, %v750
  %v1015 = vpack.c.b16 %v755, %v751
  %v1016 = vpack.c.b16 %v760, %v756
  %v1017 = vpack.c.b16 %v761, %v757
  %v1018 = vpack.c.b16 %v762, %v758
  %v1019 = vpack.c.b16 %v763, %v759
  %v1020 = vpack.c.b16 %v768, %v764
  %v1021 = vpack.c.b16 %v769, %v765
  %v1022 = vpack.c.b16 %v770, %v766
  %v1023 = vpack.c.b16 %v771, %v767
  %v1024 = vpack.c.b16 %v776, %v772
  %v1025 = vpack.c.b16 %v777, %v773
  %v1026 = vpack.c.b16 %v778, %v774
  %v1027 = vpack.c.b16 %v779, %v775
  %v1028 = vpack.c.b16 %v784, %v780
  %v1029 = vpack.c.b16 %v785, %v781
  %v1030 = vpack.c.b16 %v786, %v782
  %v1031 = vpack.c.b16 %v787, %v783
  %v1032 = vpack.c.b16 %v792, %v788
  %v1033 = vpack.c.b16 %v793, %v789
  %v1034 = vpack.c.b16 %v794, %v790
  %v1035 = vpack.c.b16 %v795, %v791
  %v1036 = vpack.c.b16 %v800, %v796
  %v1037 = vpack.c.b16 %v801, %v797
  %v1038 = vpack.c.b16 %v802, %v798
  %v1039 = vpack.c.b16 %v803, %v799
  %v1040 = vpack.c.b16 %v808, %v804
  %v1041 = vpack.c.b16 %v809, %v805
  %v1042 = vpack.c.b16 %v810, %v806
  %v1043 = vpack.c.b16 %v811, %v807
  %v1044 = vpack.c.b16 %v816, %v812
  %v1045 = vpack.c.b16 %v817, %v813
  %v1046 = vpack.c.b16 %v818, %v814
  %v1047 = vpack.c.b16 %v819, %v815
  %v1048 = vpack.c.b16 %v824, %v820
  %v1049 = vpack.c.b16 %v825, %v821
  %v1050 = vpack.c.b16 %v826, %v822
  %v1051 = vpack.c.b16 %v827, %v823
  %v1052 = vpack.c.b16 %v832, %v828
  %v1053 = vpack.c.b16 %v833, %v829
  %v1054 = vpack.c.b16 %v834, %v830
  %v1055 = vpack.c.b16 %v835, %v831
  %v1056 = vpack.c.b16 %v840, %v836
  %v1057 = vpack.c.b16 %v841, %v837
  %v1058 = vpack.c.b16 %v842, %v838
  %v1059 = vpack.c.b16 %v843, %v839
  %v1060 = vpack.c.b16 %v848, %v844
  %v1061 = vpack.c.b16 %v849, %v845
  %v1062 = vpack.c.b16 %v850, %v846
  %v1063 = vpack.c.b16 %v851, %v847
  %v1064 = vpack.c.b16 %v856, %v852
  %v1065 = vpack.c.b16 %v857, %v853
  %v1066 = vpack.c.b16 %v858, %v854
  %v1067 = vpack.c.b16 %v859, %v855
  %v1068 = vpack.c.b16 %v864, %v860
  %v1069 = vpack.c.b16 %v865, %v861
  %v1070 = vpack.c.b16 %v866, %v862
  %v1071 = vpack.c.b16 %v867, %v863
  %v1072 = vpack.c.b16 %v872, %v868
  %v1073 = vpack.c.b16 %v873, %v869
  %v1074 = vpack.c.b16 %v874, %v870
  %v1075 = vpack.c.b16 %v875, %v871
  %v1076 = vpack.c.b16 %v880, %v876
  %v1077 = vpack.c.b16 %v881, %v877
  %v1078 = vpack.c.b16 %v882, %v878
  %v1079 = vpack.c.b16 %v883, %v879
  %vm1276 = vcmask 130048
  %v1278 = vsel %vm1276, %v77, 0
  %1280 = vmatprep.subr.bf16.mxu0 %v885
  %1281 = vmatpush1.bf16.msra.mxu0 %v884
  %1282 = vmatprep.subr.bf16.mxu0 %v889
  %1283 = vmatpush1.bf16.msra.mxu0 %v888
  %1284 = vmatprep.subr.bf16.mxu0 %v893
  %1285 = vmatpush1.bf16.msra.mxu0 %v892
  %1286 = vmatprep.subr.bf16.mxu0 %v897
  %1287 = vmatpush1.bf16.msra.mxu0 %v896
  %1288 = vmatprep.subr.bf16.mxu0 %v901
  %1289 = vmatpush1.bf16.msra.mxu0 %v900
  %1290 = vmatprep.subr.bf16.mxu0 %v905
  %1291 = vmatpush1.bf16.msra.mxu0 %v904
  %1292 = vmatprep.subr.bf16.mxu0 %v909
  %1293 = vmatpush1.bf16.msra.mxu0 %v908
  %1294 = vmatprep.subr.bf16.mxu0 %v913
  %1295 = vmatpush1.bf16.msra.mxu0 %v912
  %1296 = vmatprep.subr.bf16.mxu0 %v917
  %1297 = vmatpush1.bf16.msra.mxu0 %v916
  %1298 = vmatprep.subr.bf16.mxu0 %v921
  %1299 = vmatpush1.bf16.msra.mxu0 %v920
  %1300 = vmatprep.subr.bf16.mxu0 %v925
  %1301 = vmatpush1.bf16.msra.mxu0 %v924
  %1302 = vmatprep.subr.bf16.mxu0 %v929
  %1303 = vmatpush1.bf16.msra.mxu0 %v928
  %1304 = vmatprep.subr.bf16.mxu0 %v933
  %1305 = vmatpush1.bf16.msra.mxu0 %v932
  %1306 = vmatprep.subr.bf16.mxu0 %v937
  %1307 = vmatpush1.bf16.msra.mxu0 %v936
  %1308 = vmatprep.subr.bf16.mxu0 %v941
  %1309 = vmatpush1.bf16.msra.mxu0 %v940
  %1310 = vmatprep.subr.bf16.mxu0 %v945
  %1311 = vmatpush1.bf16.msra.mxu0 %v944
  %1312 = vmatprep.mubr.bf16.mxu0 %v72
  %1313 = vmatmul.mubr.bf16.gmra.mrb[0].mxu0 %v71
  %v1314 = vpop.f32.mrb[0].mxu0
  %v1315 = vadd.f32 %v279, %v1314
  %v1316 = vpop.f32.mrb[0].mxu0
  %v1317 = vadd.f32 %v283, %v1316
  %v1318 = vpop.f32.mrb[0].mxu0
  %v1319 = vadd.f32 %v279, %v1318
  %v1320 = vpop.f32.mrb[0].mxu0
  %v1321 = vadd.f32 %v283, %v1320
  %1322 = vdwg.mxu0
  %1323 = vmatprep.subr.bf16.mxu0 %v949
  %1324 = vmatpush1.bf16.msra.mxu0 %v948
  %1325 = vmatprep.subr.bf16.mxu0 %v953
  %1326 = vmatpush1.bf16.msra.mxu0 %v952
  %1327 = vmatprep.subr.bf16.mxu0 %v957
  %1328 = vmatpush1.bf16.msra.mxu0 %v956
  %1329 = vmatprep.subr.bf16.mxu0 %v961
  %1330 = vmatpush1.bf16.msra.mxu0 %v960
  %1331 = vmatprep.subr.bf16.mxu0 %v965
  %1332 = vmatpush1.bf16.msra.mxu0 %v964
  %1333 = vmatprep.subr.bf16.mxu0 %v969
  %1334 = vmatpush1.bf16.msra.mxu0 %v968
  %1335 = vmatprep.subr.bf16.mxu0 %v973
  %1336 = vmatpush1.bf16.msra.mxu0 %v972
  %1337 = vmatprep.subr.bf16.mxu0 %v977
  %1338 = vmatpush1.bf16.msra.mxu0 %v976
  %1339 = vmatprep.subr.bf16.mxu0 %v981
  %1340 = vmatpush1.bf16.msra.mxu0 %v980
  %1341 = vmatprep.subr.bf16.mxu0 %v985
  %1342 = vmatpush1.bf16.msra.mxu0 %v984
  %1343 = vmatprep.subr.bf16.mxu0 %v989
  %1344 = vmatpush1.bf16.msra.mxu0 %v988
  %1345 = vmatprep.subr.bf16.mxu0 %v993
  %1346 = vmatpush1.bf16.msra.mxu0 %v992
  %1347 = vmatprep.subr.bf16.mxu0 %v997
  %1348 = vmatpush1.bf16.msra.mxu0 %v996
  %1349 = vmatprep.subr.bf16.mxu0 %v1001
  %1350 = vmatpush1.bf16.msra.mxu0 %v1000
  %1351 = vmatprep.subr.bf16.mxu0 %v1005
  %1352 = vmatpush1.bf16.msra.mxu0 %v1004
  %1353 = vmatprep.subr.bf16.mxu0 %v1009
  %1354 = vmatpush1.bf16.msra.mxu0 %v1008
  %1355 = vmatprep.mubr.bf16.mxu0 %v74
  %1356 = vmatmul.mubr.bf16.gmra.mrb[0].mxu0 %v73
  %v1357 = vpop.f32.mrb[0].mxu0
  %v1358 = vadd.f32 %v1315, %v1357
  %v1359 = vpop.f32.mrb[0].mxu0
  %v1360 = vadd.f32 %v1317, %v1359
  %v1361 = vpop.f32.mrb[0].mxu0
  %v1362 = vadd.f32 %v1319, %v1361
  %v1363 = vpop.f32.mrb[0].mxu0
  %v1364 = vadd.f32 %v1321, %v1363
  %1365 = vdwg.mxu0
  %1366 = vmatprep.subr.bf16.mxu0 %v1013
  %1367 = vmatpush1.bf16.msra.mxu0 %v1012
  %1368 = vmatprep.subr.bf16.mxu0 %v1017
  %1369 = vmatpush1.bf16.msra.mxu0 %v1016
  %1370 = vmatprep.subr.bf16.mxu0 %v1021
  %1371 = vmatpush1.bf16.msra.mxu0 %v1020
  %1372 = vmatprep.subr.bf16.mxu0 %v1025
  %1373 = vmatpush1.bf16.msra.mxu0 %v1024
  %1374 = vmatprep.subr.bf16.mxu0 %v1029
  %1375 = vmatpush1.bf16.msra.mxu0 %v1028
  %1376 = vmatprep.subr.bf16.mxu0 %v1033
  %1377 = vmatpush1.bf16.msra.mxu0 %v1032
  %1378 = vmatprep.subr.bf16.mxu0 %v1037
  %1379 = vmatpush1.bf16.msra.mxu0 %v1036
  %1380 = vmatprep.subr.bf16.mxu0 %v1041
  %1381 = vmatpush1.bf16.msra.mxu0 %v1040
  %1382 = vmatprep.subr.bf16.mxu0 %v1045
  %1383 = vmatpush1.bf16.msra.mxu0 %v1044
  %1384 = vmatprep.subr.bf16.mxu0 %v1049
  %1385 = vmatpush1.bf16.msra.mxu0 %v1048
  %1386 = vmatprep.subr.bf16.mxu0 %v1053
  %1387 = vmatpush1.bf16.msra.mxu0 %v1052
  %1388 = vmatprep.subr.bf16.mxu0 %v1057
  %1389 = vmatpush1.bf16.msra.mxu0 %v1056
  %1390 = vmatprep.subr.bf16.mxu0 %v1061
  %1391 = vmatpush1.bf16.msra.mxu0 %v1060
  %1392 = vmatprep.subr.bf16.mxu0 %v1065
  %1393 = vmatpush1.bf16.msra.mxu0 %v1064
  %1394 = vmatprep.subr.bf16.mxu0 %v1069
  %1395 = vmatpush1.bf16.msra.mxu0 %v1068
  %1396 = vmatprep.subr.bf16.mxu0 %v1073
  %1397 = vmatpush1.bf16.msra.mxu0 %v1072
  %1398 = vmatprep.mubr.bf16.mxu0 %v76
  %1399 = vmatmul.mubr.bf16.gmra.mrb[0].mxu0 %v75
  %v1400 = vpop.f32.mrb[0].mxu0
  %v1401 = vadd.f32 %v1358, %v1400
  %v1402 = vpop.f32.mrb[0].mxu0
  %v1403 = vadd.f32 %v1360, %v1402
  %v1404 = vpop.f32.mrb[0].mxu0
  %v1405 = vadd.f32 %v1362, %v1404
  %v1406 = vpop.f32.mrb[0].mxu0
  %v1407 = vadd.f32 %v1364, %v1406
  %1408 = vdwg.mxu0
  %1409 = vmatprep.subr.bf16.mxu0 %v1077
  %1410 = vmatpush1.bf16.msra.mxu0 %v1076
  %1411 = vmatprep.subr.bf16.mxu0 0
  %1412 = vmatpush1.bf16.msra.mxu0 0
  %1413 = vmatprep.subr.bf16.mxu0 0
  %1414 = vmatpush1.bf16.msra.mxu0 0
  %1415 = vmatprep.subr.bf16.mxu0 0
  %1416 = vmatpush1.bf16.msra.mxu0 0
  %1417 = vmatprep.subr.bf16.mxu0 0
  %1418 = vmatpush1.bf16.msra.mxu0 0
  %1419 = vmatprep.subr.bf16.mxu0 0
  %1420 = vmatpush1.bf16.msra.mxu0 0
  %1421 = vmatprep.subr.bf16.mxu0 0
  %1422 = vmatpush1.bf16.msra.mxu0 0
  %1423 = vmatprep.subr.bf16.mxu0 0
  %1424 = vmatpush1.bf16.msra.mxu0 0
  %1425 = vmatprep.subr.bf16.mxu0 0
  %1426 = vmatpush1.bf16.msra.mxu0 0
  %1427 = vmatprep.subr.bf16.mxu0 0
  %1428 = vmatpush1.bf16.msra.mxu0 0
  %1429 = vmatprep.subr.bf16.mxu0 0
  %1430 = vmatpush1.bf16.msra.mxu0 0
  %1431 = vmatprep.subr.bf16.mxu0 0
  %1432 = vmatpush1.bf16.msra.mxu0 0
  %1433 = vmatprep.subr.bf16.mxu0 0
  %1434 = vmatpush1.bf16.msra.mxu0 0
  %1435 = vmatprep.subr.bf16.mxu0 0
  %1436 = vmatpush1.bf16.msra.mxu0 0
  %1437 = vmatprep.subr.bf16.mxu0 0
  %1438 = vmatpush1.bf16.msra.mxu0 0
  %1439 = vmatprep.subr.bf16.mxu0 0
  %1440 = vmatpush1.bf16.msra.mxu0 0
  %1441 = vmatprep.mubr.bf16.mxu0 0
  %1442 = vmatmul.mubr.bf16.gmra.mrb[0].mxu0 %v1278
  %v1443 = vpop.f32.mrb[0].mxu0
  %v1444 = vadd.f32 %v1401, %v1443
  %v1445 = vpop.f32.mrb[0].mxu0
  %v1446 = vadd.f32 %v1403, %v1445
  %v1447 = vpop.f32.mrb[0].mxu0
  %v1448 = vadd.f32 %v1405, %v1447
  %v1449 = vpop.f32.mrb[0].mxu0
  %v1450 = vadd.f32 %v1407, %v1449
  %1451 = vdwg.mxu0
  %1452 = vmatprep.subr.bf16.mxu0 %v887
  %1453 = vmatpush1.bf16.msra.mxu0 %v886
  %1454 = vmatprep.subr.bf16.mxu0 %v891
  %1455 = vmatpush1.bf16.msra.mxu0 %v890
  %1456 = vmatprep.subr.bf16.mxu0 %v895
  %1457 = vmatpush1.bf16.msra.mxu0 %v894
  %1458 = vmatprep.subr.bf16.mxu0 %v899
  %1459 = vmatpush1.bf16.msra.mxu0 %v898
  %1460 = vmatprep.subr.bf16.mxu0 %v903
  %1461 = vmatpush1.bf16.msra.mxu0 %v902
  %1462 = vmatprep.subr.bf16.mxu0 %v907
  %1463 = vmatpush1.bf16.msra.mxu0 %v906
  %1464 = vmatprep.subr.bf16.mxu0 %v911
  %1465 = vmatpush1.bf16.msra.mxu0 %v910
  %1466 = vmatprep.subr.bf16.mxu0 %v915
  %1467 = vmatpush1.bf16.msra.mxu0 %v914
  %1468 = vmatprep.subr.bf16.mxu0 %v919
  %1469 = vmatpush1.bf16.msra.mxu0 %v918
  %1470 = vmatprep.subr.bf16.mxu0 %v923
  %1471 = vmatpush1.bf16.msra.mxu0 %v922
  %1472 = vmatprep.subr.bf16.mxu0 %v927
  %1473 = vmatpush1.bf16.msra.mxu0 %v926
  %1474 = vmatprep.subr.bf16.mxu0 %v931
  %1475 = vmatpush1.bf16.msra.mxu0 %v930
  %1476 = vmatprep.subr.bf16.mxu0 %v935
  %1477 = vmatpush1.bf16.msra.mxu0 %v934
  %1478 = vmatprep.subr.bf16.mxu0 %v939
  %1479 = vmatpush1.bf16.msra.mxu0 %v938
  %1480 = vmatprep.subr.bf16.mxu0 %v943
  %1481 = vmatpush1.bf16.msra.mxu0 %v942
  %1482 = vmatprep.subr.bf16.mxu0 %v947
  %1483 = vmatpush1.bf16.msra.mxu0 %v946
  %1484 = vmatprep.mubr.bf16.mxu0 %v72
  %1485 = vmatmul.mubr.bf16.gmra.mrb[0].mxu0 %v71
  %v1486 = vpop.f32.mrb[0].mxu0
  %v1487 = vadd.f32 %v287, %v1486
  %v1488 = vpop.f32.mrb[0].mxu0
  %v1489 = vadd.f32 %v291, %v1488
  %v1490 = vpop.f32.mrb[0].mxu0
  %v1491 = vadd.f32 %v287, %v1490
  %v1492 = vpop.f32.mrb[0].mxu0
  %v1493 = vadd.f32 %v291, %v1492
  %1494 = vdwg.mxu0
  %1495 = vmatprep.subr.bf16.mxu0 %v951
  %1496 = vmatpush1.bf16.msra.mxu0 %v950
  %1497 = vmatprep.subr.bf16.mxu0 %v955
  %1498 = vmatpush1.bf16.msra.mxu0 %v954
  %1499 = vmatprep.subr.bf16.mxu0 %v959
  %1500 = vmatpush1.bf16.msra.mxu0 %v958
  %1501 = vmatprep.subr.bf16.mxu0 %v963
  %1502 = vmatpush1.bf16.msra.mxu0 %v962
  %1503 = vmatprep.subr.bf16.mxu0 %v967
  %1504 = vmatpush1.bf16.msra.mxu0 %v966
  %1505 = vmatprep.subr.bf16.mxu0 %v971
  %1506 = vmatpush1.bf16.msra.mxu0 %v970
  %1507 = vmatprep.subr.bf16.mxu0 %v975
  %1508 = vmatpush1.bf16.msra.mxu0 %v974
  %1509 = vmatprep.subr.bf16.mxu0 %v979
  %1510 = vmatpush1.bf16.msra.mxu0 %v978
  %1511 = vmatprep.subr.bf16.mxu0 %v983
  %1512 = vmatpush1.bf16.msra.mxu0 %v982
  %1513 = vmatprep.subr.bf16.mxu0 %v987
  %1514 = vmatpush1.bf16.msra.mxu0 %v986
  %1515 = vmatprep.subr.bf16.mxu0 %v991
  %1516 = vmatpush1.bf16.msra.mxu0 %v990
  %1517 = vmatprep.subr.bf16.mxu0 %v995
  %1518 = vmatpush1.bf16.msra.mxu0 %v994
  %1519 = vmatprep.subr.bf16.mxu0 %v999
  %1520 = vmatpush1.bf16.msra.mxu0 %v998
  %1521 = vmatprep.subr.bf16.mxu0 %v1003
  %1522 = vmatpush1.bf16.msra.mxu0 %v1002
  %1523 = vmatprep.subr.bf16.mxu0 %v1007
  %1524 = vmatpush1.bf16.msra.mxu0 %v1006
  %1525 = vmatprep.subr.bf16.mxu0 %v1011
  %1526 = vmatpush1.bf16.msra.mxu0 %v1010
  %1527 = vmatprep.mubr.bf16.mxu0 %v74
  %1528 = vmatmul.mubr.bf16.gmra.mrb[0].mxu0 %v73
  %v1529 = vpop.f32.mrb[0].mxu0
  %v1530 = vadd.f32 %v1487, %v1529
  %v1531 = vpop.f32.mrb[0].mxu0
  %v1532 = vadd.f32 %v1489, %v1531
  %v1533 = vpop.f32.mrb[0].mxu0
  %v1534 = vadd.f32 %v1491, %v1533
  %v1535 = vpop.f32.mrb[0].mxu0
  %v1536 = vadd.f32 %v1493, %v1535
  %1537 = vdwg.mxu0
  %1538 = vmatprep.subr.bf16.mxu0 %v1015
  %1539 = vmatpush1.bf16.msra.mxu0 %v1014
  %1540 = vmatprep.subr.bf16.mxu0 %v1019
  %1541 = vmatpush1.bf16.msra.mxu0 %v1018
  %1542 = vmatprep.subr.bf16.mxu0 %v1023
  %1543 = vmatpush1.bf16.msra.mxu0 %v1022
  %1544 = vmatprep.subr.bf16.mxu0 %v1027
  %1545 = vmatpush1.bf16.msra.mxu0 %v1026
  %1546 = vmatprep.subr.bf16.mxu0 %v1031
  %1547 = vmatpush1.bf16.msra.mxu0 %v1030
  %1548 = vmatprep.subr.bf16.mxu0 %v1035
  %1549 = vmatpush1.bf16.msra.mxu0 %v1034
  %1550 = vmatprep.subr.bf16.mxu0 %v1039
  %1551 = vmatpush1.bf16.msra.mxu0 %v1038
  %1552 = vmatprep.subr.bf16.mxu0 %v1043
  %1553 = vmatpush1.bf16.msra.mxu0 %v1042
  %1554 = vmatprep.subr.bf16.mxu0 %v1047
  %1555 = vmatpush1.bf16.msra.mxu0 %v1046
  %1556 = vmatprep.subr.bf16.mxu0 %v1051
  %1557 = vmatpush1.bf16.msra.mxu0 %v1050
  %1558 = vmatprep.subr.bf16.mxu0 %v1055
  %1559 = vmatpush1.bf16.msra.mxu0 %v1054
  %1560 = vmatprep.subr.bf16.mxu0 %v1059
  %1561 = vmatpush1.bf16.msra.mxu0 %v1058
  %1562 = vmatprep.subr.bf16.mxu0 %v1063
  %1563 = vmatpush1.bf16.msra.mxu0 %v1062
  %1564 = vmatprep.subr.bf16.mxu0 %v1067
  %1565 = vmatpush1.bf16.msra.mxu0 %v1066
  %1566 = vmatprep.subr.bf16.mxu0 %v1071
  %1567 = vmatpush1.bf16.msra.mxu0 %v1070
  %1568 = vmatprep.subr.bf16.mxu0 %v1075
  %1569 = vmatpush1.bf16.msra.mxu0 %v1074
  %1570 = vmatprep.mubr.bf16.mxu0 %v76
  %1571 = vmatmul.mubr.bf16.gmra.mrb[0].mxu0 %v75
  %v1572 = vpop.f32.mrb[0].mxu0
  %v1573 = vadd.f32 %v1530, %v1572
  %v1574 = vpop.f32.mrb[0].mxu0
  %v1575 = vadd.f32 %v1532, %v1574
  %v1576 = vpop.f32.mrb[0].mxu0
  %v1577 = vadd.f32 %v1534, %v1576
  %v1578 = vpop.f32.mrb[0].mxu0
  %v1579 = vadd.f32 %v1536, %v1578
  %1580 = vdwg.mxu0
  %1581 = vmatprep.subr.bf16.mxu0 %v1079
  %1582 = vmatpush1.bf16.msra.mxu0 %v1078
  %1583 = vmatprep.subr.bf16.mxu0 0
  %1584 = vmatpush1.bf16.msra.mxu0 0
  %1585 = vmatprep.subr.bf16.mxu0 0
  %1586 = vmatpush1.bf16.msra.mxu0 0
  %1587 = vmatprep.subr.bf16.mxu0 0
  %1588 = vmatpush1.bf16.msra.mxu0 0
  %1589 = vmatprep.subr.bf16.mxu0 0
  %1590 = vmatpush1.bf16.msra.mxu0 0
  %1591 = vmatprep.subr.bf16.mxu0 0
  %1592 = vmatpush1.bf16.msra.mxu0 0
  %1593 = vmatprep.subr.bf16.mxu0 0
  %1594 = vmatpush1.bf16.msra.mxu0 0
  %1595 = vmatprep.subr.bf16.mxu0 0
  %1596 = vmatpush1.bf16.msra.mxu0 0
  %1597 = vmatprep.subr.bf16.mxu0 0
  %1598 = vmatpush1.bf16.msra.mxu0 0
  %1599 = vmatprep.subr.bf16.mxu0 0
  %1600 = vmatpush1.bf16.msra.mxu0 0
  %1601 = vmatprep.subr.bf16.mxu0 0
  %1602 = vmatpush1.bf16.msra.mxu0 0
  %1603 = vmatprep.subr.bf16.mxu0 0
  %1604 = vmatpush1.bf16.msra.mxu0 0
  %1605 = vmatprep.subr.bf16.mxu0 0
  %1606 = vmatpush1.bf16.msra.mxu0 0
  %1607 = vmatprep.subr.bf16.mxu0 0
  %1608 = vmatpush1.bf16.msra.mxu0 0
  %1609 = vmatprep.subr.bf16.mxu0 0
  %1610 = vmatpush1.bf16.msra.mxu0 0
  %1611 = vmatprep.subr.bf16.mxu0 0
  %1612 = vmatpush1.bf16.msra.mxu0 0
  %1613 = vmatprep.mubr.bf16.mxu0 0
  %1614 = vmatmul.mubr.bf16.gmra.mrb[0].mxu0 %v1278
  %v1615 = vpop.f32.mrb[0].mxu0
  %v1616 = vadd.f32 %v1573, %v1615
  %v1617 = vpop.f32.mrb[0].mxu0
  %v1618 = vadd.f32 %v1575, %v1617
  %v1619 = vpop.f32.mrb[0].mxu0
  %v1620 = vadd.f32 %v1577, %v1619
  %v1621 = vpop.f32.mrb[0].mxu0
  %v1622 = vadd.f32 %v1579, %v1621
  %1623 = vdwg.mxu0
  %v1624 = vmax.f32 %v1444, 0.0
  %v1625 = vmax.f32 %v1446, 0.0
  %v1626 = vmax.f32 %v1616, 0.0
  %v1627 = vmax.f32 %v1618, 0.0
  %v1628 = vmax.f32 %v1448, 0.0
  %v1629 = vmax.f32 %v1450, 0.0
  %v1630 = vmax.f32 %v1620, 0.0
  %v1631 = vmax.f32 %v1622, 0.0
  %v1632 = vpack.c.bf16 %v1628, %v1624
  %v1633 = vpack.c.bf16 %v1629, %v1625
  %v1634 = vpack.c.bf16 %v1630, %v1626
  %v1635 = vpack.c.bf16 %v1631, %v1627
  %v1636 = vld [vmem:[%s3] sm:$0xff]
  %v1637 = vld [vmem:[%s3 + $0x8] sm:$0xff]
  %v1638 = vld [vmem:[%s3 + $0x10] sm:$0xff]
  %v1639 = vld [vmem:[%s3 + $0x18] sm:$0xff]
  %v1640 = vld [vmem:[%s3 + $0x20] sm:$0xff]
  %v1641 = vld [vmem:[%s3 + $0x28] sm:$0xff]
  %v1642 = vld [vmem:[%s3 + $0x30] sm:$0xff]
  %v1643 = vld [vmem:[%s3 + $0x38] sm:$0xff]
  %v1644 = vld [vmem:[%s3 + $0x40] sm:$0xff]
  %v1645 = vld [vmem:[%s3 + $0x48] sm:$0xff]
  %v1646 = vld [vmem:[%s3 + $0x50] sm:$0xff]
  %v1647 = vld [vmem:[%s3 + $0x58] sm:$0xff]
  %v1648 = vld [vmem:[%s3 + $0x60] sm:$0xff]
  %v1649 = vld [vmem:[%s3 + $0x68] sm:$0xff]
  %v1650 = vld [vmem:[%s3 + $0x70] sm:$0xff]
  %v1651 = vld [vmem:[%s3 + $0x78] sm:$0xff]
  %v1652 = vld [vmem:[%s3 + $0x80] sm:$0xff]
  %v1653 = vld [vmem:[%s3 + $0x88] sm:$0xff]
  %v1654 = vld [vmem:[%s3 + $0x90] sm:$0xff]
  %v1655 = vld [vmem:[%s3 + $0x98] sm:$0xff]
  %v1656 = vld [vmem:[%s3 + $0xa0] sm:$0xff]
  %v1657 = vld [vmem:[%s3 + $0xa8] sm:$0xff]
  %v1658 = vld [vmem:[%s3 + $0xb0] sm:$0xff]
  %v1659 = vld [vmem:[%s3 + $0xb8] sm:$0xff]
  %v1660 = vld [vmem:[%s3 + $0xc0] sm:$0xff]
  %v1661 = vld [vmem:[%s3 + $0xc8] sm:$0xff]
  %v1662 = vld [vmem:[%s3 + $0xd0] sm:$0xff]
  %v1663 = vld [vmem:[%s3 + $0xd8] sm:$0xff]
  %v1664 = vld [vmem:[%s3 + $0xe0] sm:$0xff]
  %v1665 = vld [vmem:[%s3 + $0xe8] sm:$0xff]
  %v1666 = vld [vmem:[%s3 + $0xf0] sm:$0xff]
  %v1667 = vld [vmem:[%s3 + $0xf8] sm:$0xff]
  %v1668 = vld [vmem:[%s3 + $0x100] sm:$0xff]
  %v1669 = vld [vmem:[%s3 + $0x108] sm:$0xff]
  %v1670 = vld [vmem:[%s3 + $0x110] sm:$0xff]
  %v1671 = vld [vmem:[%s3 + $0x118] sm:$0xff]
  %v1672 = vld [vmem:[%s3 + $0x120] sm:$0xff]
  %v1673 = vld [vmem:[%s3 + $0x128] sm:$0xff]
  %v1674 = vld [vmem:[%s3 + $0x130] sm:$0xff]
  %v1675 = vld [vmem:[%s3 + $0x138] sm:$0xff]
  %v1676 = vld [vmem:[%s3 + $0x140] sm:$0xff]
  %v1677 = vld [vmem:[%s3 + $0x148] sm:$0xff]
  %v1678 = vld [vmem:[%s3 + $0x150] sm:$0xff]
  %v1679 = vld [vmem:[%s3 + $0x158] sm:$0xff]
  %v1680 = vld [vmem:[%s3 + $0x160] sm:$0xff]
  %v1681 = vld [vmem:[%s3 + $0x168] sm:$0xff]
  %v1682 = vld [vmem:[%s3 + $0x170] sm:$0xff]
  %v1683 = vld [vmem:[%s3 + $0x178] sm:$0xff]
  %v1684 = vld [vmem:[%s3 + $0x180] sm:$0xff]
  %v1685 = vld [vmem:[%s3 + $0x188] sm:$0xff]
  %v1686 = vld [vmem:[%s3 + $0x190] sm:$0xff]
  %v1687 = vld [vmem:[%s3 + $0x198] sm:$0xff]
  %v1688 = vld [vmem:[%s3 + $0x1a0] sm:$0xff]
  %v1689 = vld [vmem:[%s3 + $0x1a8] sm:$0xff]
  %v1690 = vld [vmem:[%s3 + $0x1b0] sm:$0xff]
  %v1691 = vld [vmem:[%s3 + $0x1b8] sm:$0xff]
  %v1692 = vld [vmem:[%s3 + $0x1c0] sm:$0xff]
  %v1693 = vld [vmem:[%s3 + $0x1c8] sm:$0xff]
  %v1694 = vld [vmem:[%s3 + $0x1d0] sm:$0xff]
  %v1695 = vld [vmem:[%s3 + $0x1d8] sm:$0xff]
  %v1696 = vld [vmem:[%s3 + $0x1e0] sm:$0xff]
  %v1697 = vld [vmem:[%s3 + $0x1e8] sm:$0xff]
  %v1698 = vld [vmem:[%s3 + $0x1f0] sm:$0xff]
  %v1699 = vld [vmem:[%s3 + $0x1f8] sm:$0xff]
  %v1700 = vld [vmem:[%s4] sm:$0x3]
  %v1702 = vlaneseq
  %v1703 = vshrl.u32 %v1702, 7
  %v1704 = vsub.s32 0, %v1703
  %v1705 = vrot.slane %v1700, %v1704
  %v1706 = vlaneseq
  %v1707 = vshrl.u32 %v1706, 7
  %v1708 = vsub.s32 1, %v1707
  %v1709 = vrot.slane %v1700, %v1708
  %v1776 = vunpack.c.l.b16 %v1636
  %v1777 = vunpack.c.h.b16 %v1636
  %v1778 = vunpack.c.l.b16 %v1637
  %v1779 = vunpack.c.h.b16 %v1637
  %v1780 = vunpack.c.l.b16 %v1638
  %v1781 = vunpack.c.h.b16 %v1638
  %v1782 = vunpack.c.l.b16 %v1639
  %v1783 = vunpack.c.h.b16 %v1639
  %v1784 = vunpack.c.l.b16 %v1640
  %v1785 = vunpack.c.h.b16 %v1640
  %v1786 = vunpack.c.l.b16 %v1641
  %v1787 = vunpack.c.h.b16 %v1641
  %v1788 = vunpack.c.l.b16 %v1642
  %v1789 = vunpack.c.h.b16 %v1642
  %v1790 = vunpack.c.l.b16 %v1643
  %v1791 = vunpack.c.h.b16 %v1643
  %v1792 = vunpack.c.l.b16 %v1644
  %v1793 = vunpack.c.h.b16 %v1644
  %v1794 = vunpack.c.l.b16 %v1645
  %v1795 = vunpack.c.h.b16 %v1645
  %v1796 = vunpack.c.l.b16 %v1646
  %v1797 = vunpack.c.h.b16 %v1646
  %v1798 = vunpack.c.l.b16 %v1647
  %v1799 = vunpack.c.h.b16 %v1647
  %v1800 = vunpack.c.l.b16 %v1648
  %v1801 = vunpack.c.h.b16 %v1648
  %v1802 = vunpack.c.l.b16 %v1649
  %v1803 = vunpack.c.h.b16 %v1649
  %v1804 = vunpack.c.l.b16 %v1650
  %v1805 = vunpack.c.h.b16 %v1650
  %v1806 = vunpack.c.l.b16 %v1651
  %v1807 = vunpack.c.h.b16 %v1651
  %v1808 = vunpack.c.l.b16 %v1652
  %v1809 = vunpack.c.h.b16 %v1652
  %v1810 = vunpack.c.l.b16 %v1653
  %v1811 = vunpack.c.h.b16 %v1653
  %v1812 = vunpack.c.l.b16 %v1654
  %v1813 = vunpack.c.h.b16 %v1654
  %v1814 = vunpack.c.l.b16 %v1655
  %v1815 = vunpack.c.h.b16 %v1655
  %v1816 = vunpack.c.l.b16 %v1656
  %v1817 = vunpack.c.h.b16 %v1656
  %v1818 = vunpack.c.l.b16 %v1657
  %v1819 = vunpack.c.h.b16 %v1657
  %v1820 = vunpack.c.l.b16 %v1658
  %v1821 = vunpack.c.h.b16 %v1658
  %v1822 = vunpack.c.l.b16 %v1659
  %v1823 = vunpack.c.h.b16 %v1659
  %v1824 = vunpack.c.l.b16 %v1660
  %v1825 = vunpack.c.h.b16 %v1660
  %v1826 = vunpack.c.l.b16 %v1661
  %v1827 = vunpack.c.h.b16 %v1661
  %v1828 = vunpack.c.l.b16 %v1662
  %v1829 = vunpack.c.h.b16 %v1662
  %v1830 = vunpack.c.l.b16 %v1663
  %v1831 = vunpack.c.h.b16 %v1663
  %v1832 = vunpack.c.l.b16 %v1664
  %v1833 = vunpack.c.h.b16 %v1664
  %v1834 = vunpack.c.l.b16 %v1665
  %v1835 = vunpack.c.h.b16 %v1665
  %v1836 = vunpack.c.l.b16 %v1666
  %v1837 = vunpack.c.h.b16 %v1666
  %v1838 = vunpack.c.l.b16 %v1667
  %v1839 = vunpack.c.h.b16 %v1667
  %v1840 = vunpack.c.l.b16 %v1668
  %v1841 = vunpack.c.h.b16 %v1668
  %v1842 = vunpack.c.l.b16 %v1669
  %v1843 = vunpack.c.h.b16 %v1669
  %v1844 = vunpack.c.l.b16 %v1670
  %v1845 = vunpack.c.h.b16 %v1670
  %v1846 = vunpack.c.l.b16 %v1671
  %v1847 = vunpack.c.h.b16 %v1671
  %v1848 = vunpack.c.l.b16 %v1672
  %v1849 = vunpack.c.h.b16 %v1672
  %v1850 = vunpack.c.l.b16 %v1673
  %v1851 = vunpack.c.h.b16 %v1673
  %v1852 = vunpack.c.l.b16 %v1674
  %v1853 = vunpack.c.h.b16 %v1674
  %v1854 = vunpack.c.l.b16 %v1675
  %v1855 = vunpack.c.h.b16 %v1675
  %v1856 = vunpack.c.l.b16 %v1676
  %v1857 = vunpack.c.h.b16 %v1676
  %v1858 = vunpack.c.l.b16 %v1677
  %v1859 = vunpack.c.h.b16 %v1677
  %v1860 = vunpack.c.l.b16 %v1678
  %v1861 = vunpack.c.h.b16 %v1678
  %v1862 = vunpack.c.l.b16 %v1679
  %v1863 = vunpack.c.h.b16 %v1679
  %v1864 = vunpack.c.l.b16 %v1680
  %v1865 = vunpack.c.h.b16 %v1680
  %v1866 = vunpack.c.l.b16 %v1681
  %v1867 = vunpack.c.h.b16 %v1681
  %v1868 = vunpack.c.l.b16 %v1682
  %v1869 = vunpack.c.h.b16 %v1682
  %v1870 = vunpack.c.l.b16 %v1683
  %v1871 = vunpack.c.h.b16 %v1683
  %v1872 = vunpack.c.l.b16 %v1684
  %v1873 = vunpack.c.h.b16 %v1684
  %v1874 = vunpack.c.l.b16 %v1685
  %v1875 = vunpack.c.h.b16 %v1685
  %v1876 = vunpack.c.l.b16 %v1686
  %v1877 = vunpack.c.h.b16 %v1686
  %v1878 = vunpack.c.l.b16 %v1687
  %v1879 = vunpack.c.h.b16 %v1687
  %v1880 = vunpack.c.l.b16 %v1688
  %v1881 = vunpack.c.h.b16 %v1688
  %v1882 = vunpack.c.l.b16 %v1689
  %v1883 = vunpack.c.h.b16 %v1689
  %v1884 = vunpack.c.l.b16 %v1690
  %v1885 = vunpack.c.h.b16 %v1690
  %v1886 = vunpack.c.l.b16 %v1691
  %v1887 = vunpack.c.h.b16 %v1691
  %v1888 = vunpack.c.l.b16 %v1692
  %v1889 = vunpack.c.h.b16 %v1692
  %v1890 = vunpack.c.l.b16 %v1693
  %v1891 = vunpack.c.h.b16 %v1693
  %v1892 = vunpack.c.l.b16 %v1694
  %v1893 = vunpack.c.h.b16 %v1694
  %v1894 = vunpack.c.l.b16 %v1695
  %v1895 = vunpack.c.h.b16 %v1695
  %v1896 = vunpack.c.l.b16 %v1696
  %v1897 = vunpack.c.h.b16 %v1696
  %v1898 = vunpack.c.l.b16 %v1697
  %v1899 = vunpack.c.h.b16 %v1697
  %v1900 = vunpack.c.l.b16 %v1698
  %v1901 = vunpack.c.h.b16 %v1698
  %v1902 = vunpack.c.l.b16 %v1699
  %v1903 = vunpack.c.h.b16 %v1699
  %v1904 = vpack.c.b16 %v1778, %v1776
  %v1905 = vpack.c.b16 %v1779, %v1777
  %v1906 = vpack.c.b16 %v1782, %v1780
  %v1907 = vpack.c.b16 %v1783, %v1781
  %v1908 = vpack.c.b16 %v1786, %v1784
  %v1909 = vpack.c.b16 %v1787, %v1785
  %v1910 = vpack.c.b16 %v1790, %v1788
  %v1911 = vpack.c.b16 %v1791, %v1789
  %v1912 = vpack.c.b16 %v1794, %v1792
  %v1913 = vpack.c.b16 %v1795, %v1793
  %v1914 = vpack.c.b16 %v1798, %v1796
  %v1915 = vpack.c.b16 %v1799, %v1797
  %v1916 = vpack.c.b16 %v1802, %v1800
  %v1917 = vpack.c.b16 %v1803, %v1801
  %v1918 = vpack.c.b16 %v1806, %v1804
  %v1919 = vpack.c.b16 %v1807, %v1805
  %v1920 = vpack.c.b16 %v1810, %v1808
  %v1921 = vpack.c.b16 %v1811, %v1809
  %v1922 = vpack.c.b16 %v1814, %v1812
  %v1923 = vpack.c.b16 %v1815, %v1813
  %v1924 = vpack.c.b16 %v1818, %v1816
  %v1925 = vpack.c.b16 %v1819, %v1817
  %v1926 = vpack.c.b16 %v1822, %v1820
  %v1927 = vpack.c.b16 %v1823, %v1821
  %v1928 = vpack.c.b16 %v1826, %v1824
  %v1929 = vpack.c.b16 %v1827, %v1825
  %v1930 = vpack.c.b16 %v1830, %v1828
  %v1931 = vpack.c.b16 %v1831, %v1829
  %v1932 = vpack.c.b16 %v1834, %v1832
  %v1933 = vpack.c.b16 %v1835, %v1833
  %v1934 = vpack.c.b16 %v1838, %v1836
  %v1935 = vpack.c.b16 %v1839, %v1837
  %v1936 = vpack.c.b16 %v1842, %v1840
  %v1937 = vpack.c.b16 %v1843, %v1841
  %v1938 = vpack.c.b16 %v1846, %v1844
  %v1939 = vpack.c.b16 %v1847, %v1845
  %v1940 = vpack.c.b16 %v1850, %v1848
  %v1941 = vpack.c.b16 %v1851, %v1849
  %v1942 = vpack.c.b16 %v1854, %v1852
  %v1943 = vpack.c.b16 %v1855, %v1853
  %v1944 = vpack.c.b16 %v1858, %v1856
  %v1945 = vpack.c.b16 %v1859, %v1857
  %v1946 = vpack.c.b16 %v1862, %v1860
  %v1947 = vpack.c.b16 %v1863, %v1861
  %v1948 = vpack.c.b16 %v1866, %v1864
  %v1949 = vpack.c.b16 %v1867, %v1865
  %v1950 = vpack.c.b16 %v1870, %v1868
  %v1951 = vpack.c.b16 %v1871, %v1869
  %v1952 = vpack.c.b16 %v1874, %v1872
  %v1953 = vpack.c.b16 %v1875, %v1873
  %v1954 = vpack.c.b16 %v1878, %v1876
  %v1955 = vpack.c.b16 %v1879, %v1877
  %v1956 = vpack.c.b16 %v1882, %v1880
  %v1957 = vpack.c.b16 %v1883, %v1881
  %v1958 = vpack.c.b16 %v1886, %v1884
  %v1959 = vpack.c.b16 %v1887, %v1885
  %v1960 = vpack.c.b16 %v1890, %v1888
  %v1961 = vpack.c.b16 %v1891, %v1889
  %v1962 = vpack.c.b16 %v1894, %v1892
  %v1963 = vpack.c.b16 %v1895, %v1893
  %v1964 = vpack.c.b16 %v1898, %v1896
  %v1965 = vpack.c.b16 %v1899, %v1897
  %v1966 = vpack.c.b16 %v1902, %v1900
  %v1967 = vpack.c.b16 %v1903, %v1901
  %2032 = vmatprep.subr.bf16.mxu0 %v1905
  %2033 = vmatpush1.bf16.msra.mxu0 %v1904
  %2034 = vmatprep.subr.bf16.mxu0 %v1907
  %2035 = vmatpush1.bf16.msra.mxu0 %v1906
  %2036 = vmatprep.subr.bf16.mxu0 %v1909
  %2037 = vmatpush1.bf16.msra.mxu0 %v1908
  %2038 = vmatprep.subr.bf16.mxu0 %v1911
  %2039 = vmatpush1.bf16.msra.mxu0 %v1910
  %2040 = vmatprep.subr.bf16.mxu0 %v1913
  %2041 = vmatpush1.bf16.msra.mxu0 %v1912
  %2042 = vmatprep.subr.bf16.mxu0 %v1915
  %2043 = vmatpush1.bf16.msra.mxu0 %v1914
  %2044 = vmatprep.subr.bf16.mxu0 %v1917
  %2045 = vmatpush1.bf16.msra.mxu0 %v1916
  %2046 = vmatprep.subr.bf16.mxu0 %v1919
  %2047 = vmatpush1.bf16.msra.mxu0 %v1918
  %2048 = vmatprep.subr.bf16.mxu0 %v1921
  %2049 = vmatpush1.bf16.msra.mxu0 %v1920
  %2050 = vmatprep.subr.bf16.mxu0 %v1923
  %2051 = vmatpush1.bf16.msra.mxu0 %v1922
  %2052 = vmatprep.subr.bf16.mxu0 %v1925
  %2053 = vmatpush1.bf16.msra.mxu0 %v1924
  %2054 = vmatprep.subr.bf16.mxu0 %v1927
  %2055 = vmatpush1.bf16.msra.mxu0 %v1926
  %2056 = vmatprep.subr.bf16.mxu0 %v1929
  %2057 = vmatpush1.bf16.msra.mxu0 %v1928
  %2058 = vmatprep.subr.bf16.mxu0 %v1931
  %2059 = vmatpush1.bf16.msra.mxu0 %v1930
  %2060 = vmatprep.subr.bf16.mxu0 %v1933
  %2061 = vmatpush1.bf16.msra.mxu0 %v1932
  %2062 = vmatprep.subr.bf16.mxu0 %v1935
  %2063 = vmatpush1.bf16.msra.mxu0 %v1934
  %2064 = vmatprep.mubr.bf16.mxu0 %v1633
  %2065 = vmatmul.mubr.bf16.gmra.mrb[0].mxu0 %v1632
  %v2066 = vpop.f32.mrb[0].mxu0
  %v2067 = vadd.f32 %v1705, %v2066
  %v2068 = vpop.f32.mrb[0].mxu0
  %v2069 = vadd.f32 %v1709, %v2068
  %v2070 = vpop.f32.mrb[0].mxu0
  %v2071 = vadd.f32 %v1705, %v2070
  %v2072 = vpop.f32.mrb[0].mxu0
  %v2073 = vadd.f32 %v1709, %v2072
  %2074 = vdwg.mxu0
  %2075 = vmatprep.subr.bf16.mxu0 %v1937
  %2076 = vmatpush1.bf16.msra.mxu0 %v1936
  %2077 = vmatprep.subr.bf16.mxu0 %v1939
  %2078 = vmatpush1.bf16.msra.mxu0 %v1938
  %2079 = vmatprep.subr.bf16.mxu0 %v1941
  %2080 = vmatpush1.bf16.msra.mxu0 %v1940
  %2081 = vmatprep.subr.bf16.mxu0 %v1943
  %2082 = vmatpush1.bf16.msra.mxu0 %v1942
  %2083 = vmatprep.subr.bf16.mxu0 %v1945
  %2084 = vmatpush1.bf16.msra.mxu0 %v1944
  %2085 = vmatprep.subr.bf16.mxu0 %v1947
  %2086 = vmatpush1.bf16.msra.mxu0 %v1946
  %2087 = vmatprep.subr.bf16.mxu0 %v1949
  %2088 = vmatpush1.bf16.msra.mxu0 %v1948
  %2089 = vmatprep.subr.bf16.mxu0 %v1951
  %2090 = vmatpush1.bf16.msra.mxu0 %v1950
  %2091 = vmatprep.subr.bf16.mxu0 %v1953
  %2092 = vmatpush1.bf16.msra.mxu0 %v1952
  %2093 = vmatprep.subr.bf16.mxu0 %v1955
  %2094 = vmatpush1.bf16.msra.mxu0 %v1954
  %2095 = vmatprep.subr.bf16.mxu0 %v1957
  %2096 = vmatpush1.bf16.msra.mxu0 %v1956
  %2097 = vmatprep.subr.bf16.mxu0 %v1959
  %2098 = vmatpush1.bf16.msra.mxu0 %v1958
  %2099 = vmatprep.subr.bf16.mxu0 %v1961
  %2100 = vmatpush1.bf16.msra.mxu0 %v1960
  %2101 = vmatprep.subr.bf16.mxu0 %v1963
  %2102 = vmatpush1.bf16.msra.mxu0 %v1962
  %2103 = vmatprep.subr.bf16.mxu0 %v1965
  %2104 = vmatpush1.bf16.msra.mxu0 %v1964
  %2105 = vmatprep.subr.bf16.mxu0 %v1967
  %2106 = vmatpush1.bf16.msra.mxu0 %v1966
  %2107 = vmatprep.mubr.bf16.mxu0 %v1635
  %2108 = vmatmul.mubr.bf16.gmra.mrb[0].mxu0 %v1634
  %v2109 = vpop.f32.mrb[0].mxu0
  %v2110 = vadd.f32 %v2067, %v2109
  %v2111 = vpop.f32.mrb[0].mxu0
  %v2112 = vadd.f32 %v2069, %v2111
  %v2113 = vpop.f32.mrb[0].mxu0
  %v2114 = vadd.f32 %v2071, %v2113
  %v2115 = vpop.f32.mrb[0].mxu0
  %v2116 = vadd.f32 %v2073, %v2115
  %2117 = vdwg.mxu0
  %v2118 = vmax.f32 %v2110, 0.0
  %v2119 = vmax.f32 %v2112, 0.0
  %v2120 = vmax.f32 %v2114, 0.0
  %v2121 = vmax.f32 %v2116, 0.0
  %v2122 = vpack.c.bf16 %v2120, %v2118
  %v2123 = vpack.c.bf16 %v2121, %v2119
  %v2124 = vld [vmem:[%s5] sm:$0xf]
  %v2125 = vld [vmem:[%s5 + $0x4] sm:$0xf]
  %v2126 = vld [vmem:[%s5 + $0x8] sm:$0xf]
  %v2127 = vld [vmem:[%s5 + $0xc] sm:$0xf]
  %v2128 = vld [vmem:[%s5 + $0x10] sm:$0xf]
  %v2129 = vld [vmem:[%s5 + $0x14] sm:$0xf]
  %v2130 = vld [vmem:[%s5 + $0x18] sm:$0xf]
  %v2131 = vld [vmem:[%s5 + $0x1c] sm:$0xf]
  %v2132 = vld [vmem:[%s5 + $0x20] sm:$0xf]
  %v2133 = vld [vmem:[%s5 + $0x24] sm:$0xf]
  %v2134 = vld [vmem:[%s5 + $0x28] sm:$0xf]
  %v2135 = vld [vmem:[%s5 + $0x2c] sm:$0xf]
  %v2136 = vld [vmem:[%s5 + $0x30] sm:$0xf]
  %v2137 = vld [vmem:[%s5 + $0x34] sm:$0xf]
  %v2138 = vld [vmem:[%s5 + $0x38] sm:$0xf]
  %v2139 = vld [vmem:[%s5 + $0x3c] sm:$0xf]
  %v2140 = vld [vmem:[%s5 + $0x40] sm:$0xf]
  %v2141 = vld [vmem:[%s5 + $0x44] sm:$0xf]
  %v2142 = vld [vmem:[%s5 + $0x48] sm:$0xf]
  %v2143 = vld [vmem:[%s5 + $0x4c] sm:$0xf]
  %v2144 = vld [vmem:[%s5 + $0x50] sm:$0xf]
  %v2145 = vld [vmem:[%s5 + $0x54] sm:$0xf]
  %v2146 = vld [vmem:[%s5 + $0x58] sm:$0xf]
  %v2147 = vld [vmem:[%s5 + $0x5c] sm:$0xf]
  %v2148 = vld [vmem:[%s5 + $0x60] sm:$0xf]
  %v2149 = vld [vmem:[%s5 + $0x64] sm:$0xf]
  %v2150 = vld [vmem:[%s5 + $0x68] sm:$0xf]
  %v2151 = vld [vmem:[%s5 + $0x6c] sm:$0xf]
  %v2152 = vld [vmem:[%s5 + $0x70] sm:$0xf]
  %v2153 = vld [vmem:[%s5 + $0x74] sm:$0xf]
  %v2154 = vld [vmem:[%s5 + $0x78] sm:$0xf]
  %v2155 = vld [vmem:[%s5 + $0x7c] sm:$0xf]
  %v2156 = vld [vmem:[%s6] sm:$0x1]
  %v2158 = vlaneseq
  %v2159 = vshrl.u32 %v2158, 7
  %v2160 = vsub.s32 0, %v2159
  %v2161 = vrot.slane %v2156, %v2160
  %v2195 = vunpack.c.l.b16 %v2124
  %v2196 = vunpack.c.l.b16 %v2125
  %v2197 = vunpack.c.l.b16 %v2126
  %v2198 = vunpack.c.l.b16 %v2127
  %v2199 = vunpack.c.l.b16 %v2128
  %v2200 = vunpack.c.l.b16 %v2129
  %v2201 = vunpack.c.l.b16 %v2130
  %v2202 = vunpack.c.l.b16 %v2131
  %v2203 = vunpack.c.l.b16 %v2132
  %v2204 = vunpack.c.l.b16 %v2133
  %v2205 = vunpack.c.l.b16 %v2134
  %v2206 = vunpack.c.l.b16 %v2135
  %v2207 = vunpack.c.l.b16 %v2136
  %v2208 = vunpack.c.l.b16 %v2137
  %v2209 = vunpack.c.l.b16 %v2138
  %v2210 = vunpack.c.l.b16 %v2139
  %v2211 = vunpack.c.l.b16 %v2140
  %v2212 = vunpack.c.l.b16 %v2141
  %v2213 = vunpack.c.l.b16 %v2142
  %v2214 = vunpack.c.l.b16 %v2143
  %v2215 = vunpack.c.l.b16 %v2144
  %v2216 = vunpack.c.l.b16 %v2145
  %v2217 = vunpack.c.l.b16 %v2146
  %v2218 = vunpack.c.l.b16 %v2147
  %v2219 = vunpack.c.l.b16 %v2148
  %v2220 = vunpack.c.l.b16 %v2149
  %v2221 = vunpack.c.l.b16 %v2150
  %v2222 = vunpack.c.l.b16 %v2151
  %v2223 = vunpack.c.l.b16 %v2152
  %v2224 = vunpack.c.l.b16 %v2153
  %v2225 = vunpack.c.l.b16 %v2154
  %v2226 = vunpack.c.l.b16 %v2155
  %v2227 = vpack.c.b16 %v2196, %v2195
  %v2228 = vpack.c.b16 %v2198, %v2197
  %v2229 = vpack.c.b16 %v2200, %v2199
  %v2230 = vpack.c.b16 %v2202, %v2201
  %v2231 = vpack.c.b16 %v2204, %v2203
  %v2232 = vpack.c.b16 %v2206, %v2205
  %v2233 = vpack.c.b16 %v2208, %v2207
  %v2234 = vpack.c.b16 %v2210, %v2209
  %v2235 = vpack.c.b16 %v2212, %v2211
  %v2236 = vpack.c.b16 %v2214, %v2213
  %v2237 = vpack.c.b16 %v2216, %v2215
  %v2238 = vpack.c.b16 %v2218, %v2217
  %v2239 = vpack.c.b16 %v2220, %v2219
  %v2240 = vpack.c.b16 %v2222, %v2221
  %v2241 = vpack.c.b16 %v2224, %v2223
  %v2242 = vpack.c.b16 %v2226, %v2225
  %2259 = vmatprep.subr.bf16.mxu0 0
  %2260 = vmatpush1.bf16.msra.mxu0 %v2227
  %2261 = vmatprep.subr.bf16.mxu0 0
  %2262 = vmatpush1.bf16.msra.mxu0 %v2228
  %2263 = vmatprep.subr.bf16.mxu0 0
  %2264 = vmatpush1.bf16.msra.mxu0 %v2229
  %2265 = vmatprep.subr.bf16.mxu0 0
  %2266 = vmatpush1.bf16.msra.mxu0 %v2230
  %2267 = vmatprep.subr.bf16.mxu0 0
  %2268 = vmatpush1.bf16.msra.mxu0 %v2231
  %2269 = vmatprep.subr.bf16.mxu0 0
  %2270 = vmatpush1.bf16.msra.mxu0 %v2232
  %2271 = vmatprep.subr.bf16.mxu0 0
  %2272 = vmatpush1.bf16.msra.mxu0 %v2233
  %2273 = vmatprep.subr.bf16.mxu0 0
  %2274 = vmatpush1.bf16.msra.mxu0 %v2234
  %2275 = vmatprep.subr.bf16.mxu0 0
  %2276 = vmatpush1.bf16.msra.mxu0 %v2235
  %2277 = vmatprep.subr.bf16.mxu0 0
  %2278 = vmatpush1.bf16.msra.mxu0 %v2236
  %2279 = vmatprep.subr.bf16.mxu0 0
  %2280 = vmatpush1.bf16.msra.mxu0 %v2237
  %2281 = vmatprep.subr.bf16.mxu0 0
  %2282 = vmatpush1.bf16.msra.mxu0 %v2238
  %2283 = vmatprep.subr.bf16.mxu0 0
  %2284 = vmatpush1.bf16.msra.mxu0 %v2239
  %2285 = vmatprep.subr.bf16.mxu0 0
  %2286 = vmatpush1.bf16.msra.mxu0 %v2240
  %2287 = vmatprep.subr.bf16.mxu0 0
  %2288 = vmatpush1.bf16.msra.mxu0 %v2241
  %2289 = vmatprep.subr.bf16.mxu0 0
  %2290 = vmatpush1.bf16.msra.mxu0 %v2242
  %2291 = vmatprep.mubr.bf16.mxu0 %v2123
  %2292 = vmatmul.mubr.bf16.gmra.mrb[0].mxu0 %v2122
  %v2293 = vpop.f32.mrb[0].mxu0
  %v2294 = vadd.f32 %v2161, %v2293
  %v2295 = vpop.f32.mrb[0].mxu0
  %v2296 = vpop.f32.mrb[0].mxu0
  %v2297 = vadd.f32 %v2161, %v2296
  %v2298 = vpop.f32.mrb[0].mxu0
  %2299 = vdwg.mxu0
  %v2300 = vmax.f32 %v2294, 0.0
  %v2301 = vmax.f32 %v2297, 0.0
  %v2302 = vpack.c.bf16 %v2301, %v2300
  %v2303 = vld [vmem:[%s7] sm:$0xf]
  %v2304 = vld [vmem:[%s7 + $0x4] sm:$0xf]
  %v2305 = vld [vmem:[%s7 + $0x8] sm:$0xf]
  %v2306 = vld [vmem:[%s7 + $0xc] sm:$0xf]
  %v2307 = vld [vmem:[%s7 + $0x10] sm:$0xf]
  %v2308 = vld [vmem:[%s7 + $0x14] sm:$0xf]
  %v2309 = vld [vmem:[%s7 + $0x18] sm:$0xf]
  %v2310 = vld [vmem:[%s7 + $0x1c] sm:$0xf]
  %v2311 = vld [vmem:[%s7 + $0x20] sm:$0xf]
  %v2312 = vld [vmem:[%s7 + $0x24] sm:$0xf]
  %v2313 = vld [vmem:[%s7 + $0x28] sm:$0xf]
  %v2314 = vld [vmem:[%s7 + $0x2c] sm:$0xf]
  %v2315 = vld [vmem:[%s7 + $0x30] sm:$0xf]
  %v2316 = vld [vmem:[%s7 + $0x34] sm:$0xf]
  %v2317 = vld [vmem:[%s7 + $0x38] sm:$0xf]
  %v2318 = vld [vmem:[%s7 + $0x3c] sm:$0xf]
  %v2319 = vld [vmem:[%s8] sm:$0x1]
  %v2321 = vlaneseq
  %v2322 = vshrl.u32 %v2321, 7
  %v2323 = vsub.s32 0, %v2322
  %v2324 = vrot.slane %v2319, %v2323
  %v2342 = vunpack.c.l.b16 %v2303
  %v2343 = vunpack.c.l.b16 %v2304
  %v2344 = vunpack.c.l.b16 %v2305
  %v2345 = vunpack.c.l.b16 %v2306
  %v2346 = vunpack.c.l.b16 %v2307
  %v2347 = vunpack.c.l.b16 %v2308
  %v2348 = vunpack.c.l.b16 %v2309
  %v2349 = vunpack.c.l.b16 %v2310
  %v2350 = vunpack.c.l.b16 %v2311
  %v2351 = vunpack.c.l.b16 %v2312
  %v2352 = vunpack.c.l.b16 %v2313
  %v2353 = vunpack.c.l.b16 %v2314
  %v2354 = vunpack.c.l.b16 %v2315
  %v2355 = vunpack.c.l.b16 %v2316
  %v2356 = vunpack.c.l.b16 %v2317
  %v2357 = vunpack.c.l.b16 %v2318
  %v2358 = vpack.c.b16 %v2343, %v2342
  %v2359 = vpack.c.b16 %v2345, %v2344
  %v2360 = vpack.c.b16 %v2347, %v2346
  %v2361 = vpack.c.b16 %v2349, %v2348
  %v2362 = vpack.c.b16 %v2351, %v2350
  %v2363 = vpack.c.b16 %v2353, %v2352
  %v2364 = vpack.c.b16 %v2355, %v2354
  %v2365 = vpack.c.b16 %v2357, %v2356
  %2374 = vmatprep.subr.bf16.mxu0 0
  %2375 = vmatpush1.bf16.msra.mxu0 %v2358
  %2376 = vmatprep.subr.bf16.mxu0 0
  %2377 = vmatpush1.bf16.msra.mxu0 %v2359
  %2378 = vmatprep.subr.bf16.mxu0 0
  %2379 = vmatpush1.bf16.msra.mxu0 %v2360
  %2380 = vmatprep.subr.bf16.mxu0 0
  %2381 = vmatpush1.bf16.msra.mxu0 %v2361
  %2382 = vmatprep.subr.bf16.mxu0 0
  %2383 = vmatpush1.bf16.msra.mxu0 %v2362
  %2384 = vmatprep.subr.bf16.mxu0 0
  %2385 = vmatpush1.bf16.msra.mxu0 %v2363
  %2386 = vmatprep.subr.bf16.mxu0 0
  %2387 = vmatpush1.bf16.msra.mxu0 %v2364
  %2388 = vmatprep.subr.bf16.mxu0 0
  %2389 = vmatpush1.bf16.msra.mxu0 %v2365
  %2390 = vmatprep.subr.bf16.mxu0 0
  %2391 = vmatpush1.bf16.msra.mxu0 0
  %2392 = vmatprep.subr.bf16.mxu0 0
  %2393 = vmatpush1.bf16.msra.mxu0 0
  %2394 = vmatprep.subr.bf16.mxu0 0
  %2395 = vmatpush1.bf16.msra.mxu0 0
  %2396 = vmatprep.subr.bf16.mxu0 0
  %2397 = vmatpush1.bf16.msra.mxu0 0
  %2398 = vmatprep.subr.bf16.mxu0 0
  %2399 = vmatpush1.bf16.msra.mxu0 0
  %2400 = vmatprep.subr.bf16.mxu0 0
  %2401 = vmatpush1.bf16.msra.mxu0 0
  %2402 = vmatprep.subr.bf16.mxu0 0
  %2403 = vmatpush1.bf16.msra.mxu0 0
  %2404 = vmatprep.subr.bf16.mxu0 0
  %2405 = vmatpush1.bf16.msra.mxu0 0
  %2406 = vmatprep.mubr.bf16.mxu0 0
  %2407 = vmatmul.mubr.bf16.gmra.mrb[0].mxu0 %v2302
  %v2408 = vpop.f32.mrb[0].mxu0
  %v2409 = vadd.f32 %v2324, %v2408
  %v2410 = vpop.f32.mrb[0].mxu0
  %v2411 = vpop.f32.mrb[0].mxu0
  %v2412 = vadd.f32 %v2324, %v2411
  %v2413 = vpop.f32.mrb[0].mxu0
  %2414 = vdwg.mxu0
  %v2415 = vpack.c.bf16 %v2412, %v2409
  %v2416 = vld [vmem:[%s9] sm:$0xf]
  %v2417 = vld [vmem:[%s9 + $0x4] sm:$0xf]
  %v2418 = vld [vmem:[%s9 + $0x8] sm:$0xf]
  %v2419 = vld [vmem:[%s9 + $0xc] sm:$0xf]
  %v2420 = vld [vmem:[%s9 + $0x10] sm:$0xf]
  %v2421 = vld [vmem:[%s9 + $0x14] sm:$0xf]
  %v2422 = vld [vmem:[%s9 + $0x18] sm:$0xf]
  %v2423 = vld [vmem:[%s9 + $0x1c] sm:$0xf]
  %v2424 = vld [vmem:[%s9 + $0x20] sm:$0xf]
  %v2425 = vld [vmem:[%s9 + $0x24] sm:$0xf]
  %v2426 = vld [vmem:[%s9 + $0x28] sm:$0xf]
  %v2427 = vld [vmem:[%s9 + $0x2c] sm:$0xf]
  %v2428 = vld [vmem:[%s9 + $0x30] sm:$0xf]
  %v2429 = vld [vmem:[%s9 + $0x34] sm:$0xf]
  %v2430 = vld [vmem:[%s9 + $0x38] sm:$0xf]
  %v2431 = vld [vmem:[%s9 + $0x3c] sm:$0xf]
  %v2432 = vld [vmem:[%s10] sm:$0x1]
  %v2434 = vlaneseq
  %v2435 = vshrl.u32 %v2434, 7
  %v2436 = vsub.s32 0, %v2435
  %v2437 = vrot.slane %v2432, %v2436
  %v2455 = vunpack.c.l.b16 %v2416
  %v2456 = vunpack.c.l.b16 %v2417
  %v2457 = vunpack.c.l.b16 %v2418
  %v2458 = vunpack.c.l.b16 %v2419
  %v2459 = vunpack.c.l.b16 %v2420
  %v2460 = vunpack.c.l.b16 %v2421
  %v2461 = vunpack.c.l.b16 %v2422
  %v2462 = vunpack.c.l.b16 %v2423
  %v2463 = vunpack.c.l.b16 %v2424
  %v2464 = vunpack.c.l.b16 %v2425
  %v2465 = vunpack.c.l.b16 %v2426
  %v2466 = vunpack.c.l.b16 %v2427
  %v2467 = vunpack.c.l.b16 %v2428
  %v2468 = vunpack.c.l.b16 %v2429
  %v2469 = vunpack.c.l.b16 %v2430
  %v2470 = vunpack.c.l.b16 %v2431
  %v2471 = vpack.c.b16 %v2456, %v2455
  %v2472 = vpack.c.b16 %v2458, %v2457
  %v2473 = vpack.c.b16 %v2460, %v2459
  %v2474 = vpack.c.b16 %v2462, %v2461
  %v2475 = vpack.c.b16 %v2464, %v2463
  %v2476 = vpack.c.b16 %v2466, %v2465
  %v2477 = vpack.c.b16 %v2468, %v2467
  %v2478 = vpack.c.b16 %v2470, %v2469
  %2487 = vmatprep.subr.bf16.mxu0 0
  %2488 = vmatpush1.bf16.msra.mxu0 %v2471
  %2489 = vmatprep.subr.bf16.mxu0 0
  %2490 = vmatpush1.bf16.msra.mxu0 %v2472
  %2491 = vmatprep.subr.bf16.mxu0 0
  %2492 = vmatpush1.bf16.msra.mxu0 %v2473
  %2493 = vmatprep.subr.bf16.mxu0 0
  %2494 = vmatpush1.bf16.msra.mxu0 %v2474
  %2495 = vmatprep.subr.bf16.mxu0 0
  %2496 = vmatpush1.bf16.msra.mxu0 %v2475
  %2497 = vmatprep.subr.bf16.mxu0 0
  %2498 = vmatpush1.bf16.msra.mxu0 %v2476
  %2499 = vmatprep.subr.bf16.mxu0 0
  %2500 = vmatpush1.bf16.msra.mxu0 %v2477
  %2501 = vmatprep.subr.bf16.mxu0 0
  %2502 = vmatpush1.bf16.msra.mxu0 %v2478
  %2503 = vmatprep.subr.bf16.mxu0 0
  %2504 = vmatpush1.bf16.msra.mxu0 0
  %2505 = vmatprep.subr.bf16.mxu0 0
  %2506 = vmatpush1.bf16.msra.mxu0 0
  %2507 = vmatprep.subr.bf16.mxu0 0
  %2508 = vmatpush1.bf16.msra.mxu0 0
  %2509 = vmatprep.subr.bf16.mxu0 0
  %2510 = vmatpush1.bf16.msra.mxu0 0
  %2511 = vmatprep.subr.bf16.mxu0 0
  %2512 = vmatpush1.bf16.msra.mxu0 0
  %2513 = vmatprep.subr.bf16.mxu0 0
  %2514 = vmatpush1.bf16.msra.mxu0 0
  %2515 = vmatprep.subr.bf16.mxu0 0
  %2516 = vmatpush1.bf16.msra.mxu0 0
  %2517 = vmatprep.subr.bf16.mxu0 0
  %2518 = vmatpush1.bf16.msra.mxu0 0
  %2519 = vmatprep.mubr.bf16.mxu0 0
  %2520 = vmatmul.mubr.bf16.gmra.mrb[0].mxu0 %v2415
  %v2521 = vpop.f32.mrb[0].mxu0
  %v2522 = vadd.f32 %v2437, %v2521
  %v2523 = vpop.f32.mrb[0].mxu0
  %v2524 = vpop.f32.mrb[0].mxu0
  %v2525 = vadd.f32 %v2437, %v2524
  %v2526 = vpop.f32.mrb[0].mxu0
  %2527 = vdwg.mxu0
  %v2528 = vmax.f32 %v2522, 0.0
  %v2529 = vmax.f32 %v2525, 0.0
  %v2530 = vpack.c.bf16 %v2529, %v2528
  %v2531 = vld [vmem:[%s11] sm:$0xff]
  %v2532 = vld [vmem:[%s11 + $0x8] sm:$0xff]
  %v2533 = vld [vmem:[%s11 + $0x10] sm:$0xff]
  %v2534 = vld [vmem:[%s11 + $0x18] sm:$0xff]
  %v2535 = vld [vmem:[%s11 + $0x20] sm:$0xff]
  %v2536 = vld [vmem:[%s11 + $0x28] sm:$0xff]
  %v2537 = vld [vmem:[%s11 + $0x30] sm:$0xff]
  %v2538 = vld [vmem:[%s11 + $0x38] sm:$0xff]
  %v2539 = vld [vmem:[%s11 + $0x40] sm:$0xff]
  %v2540 = vld [vmem:[%s11 + $0x48] sm:$0xff]
  %v2541 = vld [vmem:[%s11 + $0x50] sm:$0xff]
  %v2542 = vld [vmem:[%s11 + $0x58] sm:$0xff]
  %v2543 = vld [vmem:[%s11 + $0x60] sm:$0xff]
  %v2544 = vld [vmem:[%s11 + $0x68] sm:$0xff]
  %v2545 = vld [vmem:[%s11 + $0x70] sm:$0xff]
  %v2546 = vld [vmem:[%s11 + $0x78] sm:$0xff]
  %v2547 = vld [vmem:[%s12] sm:$0x3]
  %v2549 = vlaneseq
  %v2550 = vshrl.u32 %v2549, 7
  %v2551 = vsub.s32 0, %v2550
  %v2552 = vrot.slane %v2547, %v2551
  %v2553 = vlaneseq
  %v2554 = vshrl.u32 %v2553, 7
  %v2555 = vsub.s32 1, %v2554
  %v2556 = vrot.slane %v2547, %v2555
  %v2575 = vunpack.c.l.b16 %v2531
  %v2576 = vunpack.c.h.b16 %v2531
  %v2577 = vunpack.c.l.b16 %v2532
  %v2578 = vunpack.c.h.b16 %v2532
  %v2579 = vunpack.c.l.b16 %v2533
  %v2580 = vunpack.c.h.b16 %v2533
  %v2581 = vunpack.c.l.b16 %v2534
  %v2582 = vunpack.c.h.b16 %v2534
  %v2583 = vunpack.c.l.b16 %v2535
  %v2584 = vunpack.c.h.b16 %v2535
  %v2585 = vunpack.c.l.b16 %v2536
  %v2586 = vunpack.c.h.b16 %v2536
  %v2587 = vunpack.c.l.b16 %v2537
  %v2588 = vunpack.c.h.b16 %v2537
  %v2589 = vunpack.c.l.b16 %v2538
  %v2590 = vunpack.c.h.b16 %v2538
  %v2591 = vunpack.c.l.b16 %v2539
  %v2592 = vunpack.c.h.b16 %v2539
  %v2593 = vunpack.c.l.b16 %v2540
  %v2594 = vunpack.c.h.b16 %v2540
  %v2595 = vunpack.c.l.b16 %v2541
  %v2596 = vunpack.c.h.b16 %v2541
  %v2597 = vunpack.c.l.b16 %v2542
  %v2598 = vunpack.c.h.b16 %v2542
  %v2599 = vunpack.c.l.b16 %v2543
  %v2600 = vunpack.c.h.b16 %v2543
  %v2601 = vunpack.c.l.b16 %v2544
  %v2602 = vunpack.c.h.b16 %v2544
  %v2603 = vunpack.c.l.b16 %v2545
  %v2604 = vunpack.c.h.b16 %v2545
  %v2605 = vunpack.c.l.b16 %v2546
  %v2606 = vunpack.c.h.b16 %v2546
  %v2607 = vpack.c.b16 %v2577, %v2575
  %v2608 = vpack.c.b16 %v2578, %v2576
  %v2609 = vpack.c.b16 %v2581, %v2579
  %v2610 = vpack.c.b16 %v2582, %v2580
  %v2611 = vpack.c.b16 %v2585, %v2583
  %v2612 = vpack.c.b16 %v2586, %v2584
  %v2613 = vpack.c.b16 %v2589, %v2587
  %v2614 = vpack.c.b16 %v2590, %v2588
  %v2615 = vpack.c.b16 %v2593, %v2591
  %v2616 = vpack.c.b16 %v2594, %v2592
  %v2617 = vpack.c.b16 %v2597, %v2595
  %v2618 = vpack.c.b16 %v2598, %v2596
  %v2619 = vpack.c.b16 %v2601, %v2599
  %v2620 = vpack.c.b16 %v2602, %v2600
  %v2621 = vpack.c.b16 %v2605, %v2603
  %v2622 = vpack.c.b16 %v2606, %v2604
  %2639 = vmatprep.subr.bf16.mxu0 %v2608
  %2640 = vmatpush1.bf16.msra.mxu0 %v2607
  %2641 = vmatprep.subr.bf16.mxu0 %v2610
  %2642 = vmatpush1.bf16.msra.mxu0 %v2609
  %2643 = vmatprep.subr.bf16.mxu0 %v2612
  %2644 = vmatpush1.bf16.msra.mxu0 %v2611
  %2645 = vmatprep.subr.bf16.mxu0 %v2614
  %2646 = vmatpush1.bf16.msra.mxu0 %v2613
  %2647 = vmatprep.subr.bf16.mxu0 %v2616
  %2648 = vmatpush1.bf16.msra.mxu0 %v2615
  %2649 = vmatprep.subr.bf16.mxu0 %v2618
  %2650 = vmatpush1.bf16.msra.mxu0 %v2617
  %2651 = vmatprep.subr.bf16.mxu0 %v2620
  %2652 = vmatpush1.bf16.msra.mxu0 %v2619
  %2653 = vmatprep.subr.bf16.mxu0 %v2622
  %2654 = vmatpush1.bf16.msra.mxu0 %v2621
  %2655 = vmatprep.subr.bf16.mxu0 0
  %2656 = vmatpush1.bf16.msra.mxu0 0
  %2657 = vmatprep.subr.bf16.mxu0 0
  %2658 = vmatpush1.bf16.msra.mxu0 0
  %2659 = vmatprep.subr.bf16.mxu0 0
  %2660 = vmatpush1.bf16.msra.mxu0 0
  %2661 = vmatprep.subr.bf16.mxu0 0
  %2662 = vmatpush1.bf16.msra.mxu0 0
  %2663 = vmatprep.subr.bf16.mxu0 0
  %2664 = vmatpush1.bf16.msra.mxu0 0
  %2665 = vmatprep.subr.bf16.mxu0 0
  %2666 = vmatpush1.bf16.msra.mxu0 0
  %2667 = vmatprep.subr.bf16.mxu0 0
  %2668 = vmatpush1.bf16.msra.mxu0 0
  %2669 = vmatprep.subr.bf16.mxu0 0
  %2670 = vmatpush1.bf16.msra.mxu0 0
  %2671 = vmatprep.mubr.bf16.mxu0 0
  %2672 = vmatmul.mubr.bf16.gmra.mrb[0].mxu0 %v2530
  %v2673 = vpop.f32.mrb[0].mxu0
  %v2674 = vadd.f32 %v2552, %v2673
  %v2675 = vpop.f32.mrb[0].mxu0
  %v2676 = vadd.f32 %v2556, %v2675
  %v2677 = vpop.f32.mrb[0].mxu0
  %v2678 = vadd.f32 %v2552, %v2677
  %v2679 = vpop.f32.mrb[0].mxu0
  %v2680 = vadd.f32 %v2556, %v2679
  %2681 = vdwg.mxu0
  %v2682 = vmax.f32 %v2674, 0.0
  %v2683 = vmax.f32 %v2676, 0.0
  %v2684 = vmax.f32 %v2678, 0.0
  %v2685 = vmax.f32 %v2680, 0.0
  %v2686 = vpack.c.bf16 %v2684, %v2682
  %v2687 = vpack.c.bf16 %v2685, %v2683
  %v2688 = vld [vmem:[%s13] sm:$0xff]
  %v2689 = vld [vmem:[%s13 + $0x8] sm:$0xff]
  %v2690 = vld [vmem:[%s13 + $0x10] sm:$0xff]
  %v2691 = vld [vmem:[%s13 + $0x18] sm:$0xff]
  %v2692 = vld [vmem:[%s13 + $0x20] sm:$0xff]
  %v2693 = vld [vmem:[%s13 + $0x28] sm:$0xff]
  %v2694 = vld [vmem:[%s13 + $0x30] sm:$0xff]
  %v2695 = vld [vmem:[%s13 + $0x38] sm:$0xff]
  %v2696 = vld [vmem:[%s13 + $0x40] sm:$0xff]
  %v2697 = vld [vmem:[%s13 + $0x48] sm:$0xff]
  %v2698 = vld [vmem:[%s13 + $0x50] sm:$0xff]
  %v2699 = vld [vmem:[%s13 + $0x58] sm:$0xff]
  %v2700 = vld [vmem:[%s13 + $0x60] sm:$0xff]
  %v2701 = vld [vmem:[%s13 + $0x68] sm:$0xff]
  %v2702 = vld [vmem:[%s13 + $0x70] sm:$0xff]
  %v2703 = vld [vmem:[%s13 + $0x78] sm:$0xff]
  %v2704 = vld [vmem:[%s13 + $0x80] sm:$0xff]
  %v2705 = vld [vmem:[%s13 + $0x88] sm:$0xff]
  %v2706 = vld [vmem:[%s13 + $0x90] sm:$0xff]
  %v2707 = vld [vmem:[%s13 + $0x98] sm:$0xff]
  %v2708 = vld [vmem:[%s13 + $0xa0] sm:$0xff]
  %v2709 = vld [vmem:[%s13 + $0xa8] sm:$0xff]
  %v2710 = vld [vmem:[%s13 + $0xb0] sm:$0xff]
  %v2711 = vld [vmem:[%s13 + $0xb8] sm:$0xff]
  %v2712 = vld [vmem:[%s13 + $0xc0] sm:$0xff]
  %v2713 = vld [vmem:[%s13 + $0xc8] sm:$0xff]
  %v2714 = vld [vmem:[%s13 + $0xd0] sm:$0xff]
  %v2715 = vld [vmem:[%s13 + $0xd8] sm:$0xff]
  %v2716 = vld [vmem:[%s13 + $0xe0] sm:$0xff]
  %v2717 = vld [vmem:[%s13 + $0xe8] sm:$0xff]
  %v2718 = vld [vmem:[%s13 + $0xf0] sm:$0xff]
  %v2719 = vld [vmem:[%s13 + $0xf8] sm:$0xff]
  %v2720 = vld [vmem:[%s13 + $0x100] sm:$0xff]
  %v2721 = vld [vmem:[%s13 + $0x108] sm:$0xff]
  %v2722 = vld [vmem:[%s13 + $0x110] sm:$0xff]
  %v2723 = vld [vmem:[%s13 + $0x118] sm:$0xff]
  %v2724 = vld [vmem:[%s13 + $0x120] sm:$0xff]
  %v2725 = vld [vmem:[%s13 + $0x128] sm:$0xff]
  %v2726 = vld [vmem:[%s13 + $0x130] sm:$0xff]
  %v2727 = vld [vmem:[%s13 + $0x138] sm:$0xff]
  %v2728 = vld [vmem:[%s13 + $0x140] sm:$0xff]
  %v2729 = vld [vmem:[%s13 + $0x148] sm:$0xff]
  %v2730 = vld [vmem:[%s13 + $0x150] sm:$0xff]
  %v2731 = vld [vmem:[%s13 + $0x158] sm:$0xff]
  %v2732 = vld [vmem:[%s13 + $0x160] sm:$0xff]
  %v2733 = vld [vmem:[%s13 + $0x168] sm:$0xff]
  %v2734 = vld [vmem:[%s13 + $0x170] sm:$0xff]
  %v2735 = vld [vmem:[%s13 + $0x178] sm:$0xff]
  %v2736 = vld [vmem:[%s13 + $0x180] sm:$0xff]
  %v2737 = vld [vmem:[%s13 + $0x188] sm:$0xff]
  %v2738 = vld [vmem:[%s13 + $0x190] sm:$0xff]
  %v2739 = vld [vmem:[%s13 + $0x198] sm:$0xff]
  %v2740 = vld [vmem:[%s13 + $0x1a0] sm:$0xff]
  %v2741 = vld [vmem:[%s13 + $0x1a8] sm:$0xff]
  %v2742 = vld [vmem:[%s13 + $0x1b0] sm:$0xff]
  %v2743 = vld [vmem:[%s13 + $0x1b8] sm:$0xff]
  %v2744 = vld [vmem:[%s13 + $0x1c0] sm:$0xff]
  %v2745 = vld [vmem:[%s13 + $0x1c8] sm:$0xff]
  %v2746 = vld [vmem:[%s13 + $0x1d0] sm:$0xff]
  %v2747 = vld [vmem:[%s13 + $0x1d8] sm:$0xff]
  %v2748 = vld [vmem:[%s13 + $0x1e0] sm:$0xff]
  %v2749 = vld [vmem:[%s13 + $0x1e8] sm:$0xff]
  %v2750 = vld [vmem:[%s13 + $0x1f0] sm:$0xff]
  %v2751 = vld [vmem:[%s13 + $0x1f8] sm:$0xff]
  %v2752 = vld [vmem:[%s14] sm:$0xf]
  %v2754 = vlaneseq
  %v2755 = vshrl.u32 %v2754, 7
  %v2756 = vsub.s32 0, %v2755
  %v2757 = vrot.slane %v2752, %v2756
  %v2758 = vlaneseq
  %v2759 = vshrl.u32 %v2758, 7
  %v2760 = vsub.s32 1, %v2759
  %v2761 = vrot.slane %v2752, %v2760
  %v2762 = vlaneseq
  %v2763 = vshrl.u32 %v2762, 7
  %v2764 = vsub.s32 2, %v2763
  %v2765 = vrot.slane %v2752, %v2764
  %v2766 = vlaneseq
  %v2767 = vshrl.u32 %v2766, 7
  %v2768 = vsub.s32 3, %v2767
  %v2769 = vrot.slane %v2752, %v2768
  %v2838 = vunpack.c.l.b16 %v2688
  %v2839 = vunpack.c.h.b16 %v2688
  %v2840 = vunpack.c.l.b16 %v2689
  %v2841 = vunpack.c.h.b16 %v2689
  %v2842 = vunpack.c.l.b16 %v2690
  %v2843 = vunpack.c.h.b16 %v2690
  %v2844 = vunpack.c.l.b16 %v2691
  %v2845 = vunpack.c.h.b16 %v2691
  %v2846 = vunpack.c.l.b16 %v2692
  %v2847 = vunpack.c.h.b16 %v2692
  %v2848 = vunpack.c.l.b16 %v2693
  %v2849 = vunpack.c.h.b16 %v2693
  %v2850 = vunpack.c.l.b16 %v2694
  %v2851 = vunpack.c.h.b16 %v2694
  %v2852 = vunpack.c.l.b16 %v2695
  %v2853 = vunpack.c.h.b16 %v2695
  %v2854 = vunpack.c.l.b16 %v2696
  %v2855 = vunpack.c.h.b16 %v2696
  %v2856 = vunpack.c.l.b16 %v2697
  %v2857 = vunpack.c.h.b16 %v2697
  %v2858 = vunpack.c.l.b16 %v2698
  %v2859 = vunpack.c.h.b16 %v2698
  %v2860 = vunpack.c.l.b16 %v2699
  %v2861 = vunpack.c.h.b16 %v2699
  %v2862 = vunpack.c.l.b16 %v2700
  %v2863 = vunpack.c.h.b16 %v2700
  %v2864 = vunpack.c.l.b16 %v2701
  %v2865 = vunpack.c.h.b16 %v2701
  %v2866 = vunpack.c.l.b16 %v2702
  %v2867 = vunpack.c.h.b16 %v2702
  %v2868 = vunpack.c.l.b16 %v2703
  %v2869 = vunpack.c.h.b16 %v2703
  %v2870 = vunpack.c.l.b16 %v2704
  %v2871 = vunpack.c.h.b16 %v2704
  %v2872 = vunpack.c.l.b16 %v2705
  %v2873 = vunpack.c.h.b16 %v2705
  %v2874 = vunpack.c.l.b16 %v2706
  %v2875 = vunpack.c.h.b16 %v2706
  %v2876 = vunpack.c.l.b16 %v2707
  %v2877 = vunpack.c.h.b16 %v2707
  %v2878 = vunpack.c.l.b16 %v2708
  %v2879 = vunpack.c.h.b16 %v2708
  %v2880 = vunpack.c.l.b16 %v2709
  %v2881 = vunpack.c.h.b16 %v2709
  %v2882 = vunpack.c.l.b16 %v2710
  %v2883 = vunpack.c.h.b16 %v2710
  %v2884 = vunpack.c.l.b16 %v2711
  %v2885 = vunpack.c.h.b16 %v2711
  %v2886 = vunpack.c.l.b16 %v2712
  %v2887 = vunpack.c.h.b16 %v2712
  %v2888 = vunpack.c.l.b16 %v2713
  %v2889 = vunpack.c.h.b16 %v2713
  %v2890 = vunpack.c.l.b16 %v2714
  %v2891 = vunpack.c.h.b16 %v2714
  %v2892 = vunpack.c.l.b16 %v2715
  %v2893 = vunpack.c.h.b16 %v2715
  %v2894 = vunpack.c.l.b16 %v2716
  %v2895 = vunpack.c.h.b16 %v2716
  %v2896 = vunpack.c.l.b16 %v2717
  %v2897 = vunpack.c.h.b16 %v2717
  %v2898 = vunpack.c.l.b16 %v2718
  %v2899 = vunpack.c.h.b16 %v2718
  %v2900 = vunpack.c.l.b16 %v2719
  %v2901 = vunpack.c.h.b16 %v2719
  %v2902 = vunpack.c.l.b16 %v2720
  %v2903 = vunpack.c.h.b16 %v2720
  %v2904 = vunpack.c.l.b16 %v2721
  %v2905 = vunpack.c.h.b16 %v2721
  %v2906 = vunpack.c.l.b16 %v2722
  %v2907 = vunpack.c.h.b16 %v2722
  %v2908 = vunpack.c.l.b16 %v2723
  %v2909 = vunpack.c.h.b16 %v2723
  %v2910 = vunpack.c.l.b16 %v2724
  %v2911 = vunpack.c.h.b16 %v2724
  %v2912 = vunpack.c.l.b16 %v2725
  %v2913 = vunpack.c.h.b16 %v2725
  %v2914 = vunpack.c.l.b16 %v2726
  %v2915 = vunpack.c.h.b16 %v2726
  %v2916 = vunpack.c.l.b16 %v2727
  %v2917 = vunpack.c.h.b16 %v2727
  %v2918 = vunpack.c.l.b16 %v2728
  %v2919 = vunpack.c.h.b16 %v2728
  %v2920 = vunpack.c.l.b16 %v2729
  %v2921 = vunpack.c.h.b16 %v2729
  %v2922 = vunpack.c.l.b16 %v2730
  %v2923 = vunpack.c.h.b16 %v2730
  %v2924 = vunpack.c.l.b16 %v2731
  %v2925 = vunpack.c.h.b16 %v2731
  %v2926 = vunpack.c.l.b16 %v2732
  %v2927 = vunpack.c.h.b16 %v2732
  %v2928 = vunpack.c.l.b16 %v2733
  %v2929 = vunpack.c.h.b16 %v2733
  %v2930 = vunpack.c.l.b16 %v2734
  %v2931 = vunpack.c.h.b16 %v2734
  %v2932 = vunpack.c.l.b16 %v2735
  %v2933 = vunpack.c.h.b16 %v2735
  %v2934 = vunpack.c.l.b16 %v2736
  %v2935 = vunpack.c.h.b16 %v2736
  %v2936 = vunpack.c.l.b16 %v2737
  %v2937 = vunpack.c.h.b16 %v2737
  %v2938 = vunpack.c.l.b16 %v2738
  %v2939 = vunpack.c.h.b16 %v2738
  %v2940 = vunpack.c.l.b16 %v2739
  %v2941 = vunpack.c.h.b16 %v2739
  %v2942 = vunpack.c.l.b16 %v2740
  %v2943 = vunpack.c.h.b16 %v2740
  %v2944 = vunpack.c.l.b16 %v2741
  %v2945 = vunpack.c.h.b16 %v2741
  %v2946 = vunpack.c.l.b16 %v2742
  %v2947 = vunpack.c.h.b16 %v2742
  %v2948 = vunpack.c.l.b16 %v2743
  %v2949 = vunpack.c.h.b16 %v2743
  %v2950 = vunpack.c.l.b16 %v2744
  %v2951 = vunpack.c.h.b16 %v2744
  %v2952 = vunpack.c.l.b16 %v2745
  %v2953 = vunpack.c.h.b16 %v2745
  %v2954 = vunpack.c.l.b16 %v2746
  %v2955 = vunpack.c.h.b16 %v2746
  %v2956 = vunpack.c.l.b16 %v2747
  %v2957 = vunpack.c.h.b16 %v2747
  %v2958 = vunpack.c.l.b16 %v2748
  %v2959 = vunpack.c.h.b16 %v2748
  %v2960 = vunpack.c.l.b16 %v2749
  %v2961 = vunpack.c.h.b16 %v2749
  %v2962 = vunpack.c.l.b16 %v2750
  %v2963 = vunpack.c.h.b16 %v2750
  %v2964 = vunpack.c.l.b16 %v2751
  %v2965 = vunpack.c.h.b16 %v2751
  %v2966 = vpack.c.b16 %v2842, %v2838
  %v2967 = vpack.c.b16 %v2843, %v2839
  %v2968 = vpack.c.b16 %v2844, %v2840
  %v2969 = vpack.c.b16 %v2845, %v2841
  %v2970 = vpack.c.b16 %v2850, %v2846
  %v2971 = vpack.c.b16 %v2851, %v2847
  %v2972 = vpack.c.b16 %v2852, %v2848
  %v2973 = vpack.c.b16 %v2853, %v2849
  %v2974 = vpack.c.b16 %v2858, %v2854
  %v2975 = vpack.c.b16 %v2859, %v2855
  %v2976 = vpack.c.b16 %v2860, %v2856
  %v2977 = vpack.c.b16 %v2861, %v2857
  %v2978 = vpack.c.b16 %v2866, %v2862
  %v2979 = vpack.c.b16 %v2867, %v2863
  %v2980 = vpack.c.b16 %v2868, %v2864
  %v2981 = vpack.c.b16 %v2869, %v2865
  %v2982 = vpack.c.b16 %v2874, %v2870
  %v2983 = vpack.c.b16 %v2875, %v2871
  %v2984 = vpack.c.b16 %v2876, %v2872
  %v2985 = vpack.c.b16 %v2877, %v2873
  %v2986 = vpack.c.b16 %v2882, %v2878
  %v2987 = vpack.c.b16 %v2883, %v2879
  %v2988 = vpack.c.b16 %v2884, %v2880
  %v2989 = vpack.c.b16 %v2885, %v2881
  %v2990 = vpack.c.b16 %v2890, %v2886
  %v2991 = vpack.c.b16 %v2891, %v2887
  %v2992 = vpack.c.b16 %v2892, %v2888
  %v2993 = vpack.c.b16 %v2893, %v2889
  %v2994 = vpack.c.b16 %v2898, %v2894
  %v2995 = vpack.c.b16 %v2899, %v2895
  %v2996 = vpack.c.b16 %v2900, %v2896
  %v2997 = vpack.c.b16 %v2901, %v2897
  %v2998 = vpack.c.b16 %v2906, %v2902
  %v2999 = vpack.c.b16 %v2907, %v2903
  %v3000 = vpack.c.b16 %v2908, %v2904
  %v3001 = vpack.c.b16 %v2909, %v2905
  %v3002 = vpack.c.b16 %v2914, %v2910
  %v3003 = vpack.c.b16 %v2915, %v2911
  %v3004 = vpack.c.b16 %v2916, %v2912
  %v3005 = vpack.c.b16 %v2917, %v2913
  %v3006 = vpack.c.b16 %v2922, %v2918
  %v3007 = vpack.c.b16 %v2923, %v2919
  %v3008 = vpack.c.b16 %v2924, %v2920
  %v3009 = vpack.c.b16 %v2925, %v2921
  %v3010 = vpack.c.b16 %v2930, %v2926
  %v3011 = vpack.c.b16 %v2931, %v2927
  %v3012 = vpack.c.b16 %v2932, %v2928
  %v3013 = vpack.c.b16 %v2933, %v2929
  %v3014 = vpack.c.b16 %v2938, %v2934
  %v3015 = vpack.c.b16 %v2939, %v2935
  %v3016 = vpack.c.b16 %v2940, %v2936
  %v3017 = vpack.c.b16 %v2941, %v2937
  %v3018 = vpack.c.b16 %v2946, %v2942
  %v3019 = vpack.c.b16 %v2947, %v2943
  %v3020 = vpack.c.b16 %v2948, %v2944
  %v3021 = vpack.c.b16 %v2949, %v2945
  %v3022 = vpack.c.b16 %v2954, %v2950
  %v3023 = vpack.c.b16 %v2955, %v2951
  %v3024 = vpack.c.b16 %v2956, %v2952
  %v3025 = vpack.c.b16 %v2957, %v2953
  %v3026 = vpack.c.b16 %v2962, %v2958
  %v3027 = vpack.c.b16 %v2963, %v2959
  %v3028 = vpack.c.b16 %v2964, %v2960
  %v3029 = vpack.c.b16 %v2965, %v2961
  %3094 = vmatprep.subr.bf16.mxu0 %v2967
  %3095 = vmatpush1.bf16.msra.mxu0 %v2966
  %3096 = vmatprep.subr.bf16.mxu0 %v2971
  %3097 = vmatpush1.bf16.msra.mxu0 %v2970
  %3098 = vmatprep.subr.bf16.mxu0 %v2975
  %3099 = vmatpush1.bf16.msra.mxu0 %v2974
  %3100 = vmatprep.subr.bf16.mxu0 %v2979
  %3101 = vmatpush1.bf16.msra.mxu0 %v2978
  %3102 = vmatprep.subr.bf16.mxu0 %v2983
  %3103 = vmatpush1.bf16.msra.mxu0 %v2982
  %3104 = vmatprep.subr.bf16.mxu0 %v2987
  %3105 = vmatpush1.bf16.msra.mxu0 %v2986
  %3106 = vmatprep.subr.bf16.mxu0 %v2991
  %3107 = vmatpush1.bf16.msra.mxu0 %v2990
  %3108 = vmatprep.subr.bf16.mxu0 %v2995
  %3109 = vmatpush1.bf16.msra.mxu0 %v2994
  %3110 = vmatprep.subr.bf16.mxu0 %v2999
  %3111 = vmatpush1.bf16.msra.mxu0 %v2998
  %3112 = vmatprep.subr.bf16.mxu0 %v3003
  %3113 = vmatpush1.bf16.msra.mxu0 %v3002
  %3114 = vmatprep.subr.bf16.mxu0 %v3007
  %3115 = vmatpush1.bf16.msra.mxu0 %v3006
  %3116 = vmatprep.subr.bf16.mxu0 %v3011
  %3117 = vmatpush1.bf16.msra.mxu0 %v3010
  %3118 = vmatprep.subr.bf16.mxu0 %v3015
  %3119 = vmatpush1.bf16.msra.mxu0 %v3014
  %3120 = vmatprep.subr.bf16.mxu0 %v3019
  %3121 = vmatpush1.bf16.msra.mxu0 %v3018
  %3122 = vmatprep.subr.bf16.mxu0 %v3023
  %3123 = vmatpush1.bf16.msra.mxu0 %v3022
  %3124 = vmatprep.subr.bf16.mxu0 %v3027
  %3125 = vmatpush1.bf16.msra.mxu0 %v3026
  %3126 = vmatprep.mubr.bf16.mxu0 %v2687
  %3127 = vmatmul.mubr.bf16.gmra.mrb[0].mxu0 %v2686
  %v3128 = vpop.f32.mrb[0].mxu0
  %v3129 = vadd.f32 %v2757, %v3128
  %v3130 = vpop.f32.mrb[0].mxu0
  %v3131 = vadd.f32 %v2761, %v3130
  %v3132 = vpop.f32.mrb[0].mxu0
  %v3133 = vadd.f32 %v2757, %v3132
  %v3134 = vpop.f32.mrb[0].mxu0
  %v3135 = vadd.f32 %v2761, %v3134
  %3136 = vdwg.mxu0
  %3137 = vmatprep.subr.bf16.mxu0 %v2969
  %3138 = vmatpush1.bf16.msra.mxu0 %v2968
  %3139 = vmatprep.subr.bf16.mxu0 %v2973
  %3140 = vmatpush1.bf16.msra.mxu0 %v2972
  %3141 = vmatprep.subr.bf16.mxu0 %v2977
  %3142 = vmatpush1.bf16.msra.mxu0 %v2976
  %3143 = vmatprep.subr.bf16.mxu0 %v2981
  %3144 = vmatpush1.bf16.msra.mxu0 %v2980
  %3145 = vmatprep.subr.bf16.mxu0 %v2985
  %3146 = vmatpush1.bf16.msra.mxu0 %v2984
  %3147 = vmatprep.subr.bf16.mxu0 %v2989
  %3148 = vmatpush1.bf16.msra.mxu0 %v2988
  %3149 = vmatprep.subr.bf16.mxu0 %v2993
  %3150 = vmatpush1.bf16.msra.mxu0 %v2992
  %3151 = vmatprep.subr.bf16.mxu0 %v2997
  %3152 = vmatpush1.bf16.msra.mxu0 %v2996
  %3153 = vmatprep.subr.bf16.mxu0 %v3001
  %3154 = vmatpush1.bf16.msra.mxu0 %v3000
  %3155 = vmatprep.subr.bf16.mxu0 %v3005
  %3156 = vmatpush1.bf16.msra.mxu0 %v3004
  %3157 = vmatprep.subr.bf16.mxu0 %v3009
  %3158 = vmatpush1.bf16.msra.mxu0 %v3008
  %3159 = vmatprep.subr.bf16.mxu0 %v3013
  %3160 = vmatpush1.bf16.msra.mxu0 %v3012
  %3161 = vmatprep.subr.bf16.mxu0 %v3017
  %3162 = vmatpush1.bf16.msra.mxu0 %v3016
  %3163 = vmatprep.subr.bf16.mxu0 %v3021
  %3164 = vmatpush1.bf16.msra.mxu0 %v3020
  %3165 = vmatprep.subr.bf16.mxu0 %v3025
  %3166 = vmatpush1.bf16.msra.mxu0 %v3024
  %3167 = vmatprep.subr.bf16.mxu0 %v3029
  %3168 = vmatpush1.bf16.msra.mxu0 %v3028
  %3169 = vmatprep.mubr.bf16.mxu0 %v2687
  %3170 = vmatmul.mubr.bf16.gmra.mrb[0].mxu0 %v2686
  %v3171 = vpop.f32.mrb[0].mxu0
  %v3172 = vadd.f32 %v2765, %v3171
  %v3173 = vpop.f32.mrb[0].mxu0
  %v3174 = vadd.f32 %v2769, %v3173
  %v3175 = vpop.f32.mrb[0].mxu0
  %v3176 = vadd.f32 %v2765, %v3175
  %v3177 = vpop.f32.mrb[0].mxu0
  %v3178 = vadd.f32 %v2769, %v3177
  %3179 = vdwg.mxu0
  %v3180 = vmax.f32 %v3129, 0.0
  %v3181 = vmax.f32 %v3131, 0.0
  %v3182 = vmax.f32 %v3172, 0.0
  %v3183 = vmax.f32 %v3174, 0.0
  %v3184 = vmax.f32 %v3133, 0.0
  %v3185 = vmax.f32 %v3135, 0.0
  %v3186 = vmax.f32 %v3176, 0.0
  %v3187 = vmax.f32 %v3178, 0.0
  %v3188 = vpack.c.bf16 %v3184, %v3180
  %v3189 = vpack.c.bf16 %v3185, %v3181
  %v3190 = vpack.c.bf16 %v3186, %v3182
  %v3191 = vpack.c.bf16 %v3187, %v3183
  %v3192 = vld [vmem:[%s15] sm:$0xff]
  %v3193 = vld [vmem:[%s15 + $0x8] sm:$0xff]
  %v3194 = vld [vmem:[%s15 + $0x10] sm:$0xff]
  %v3195 = vld [vmem:[%s15 + $0x18] sm:$0xf]
  %v3196 = vld [vmem:[%s15 + $0x1c] sm:$0xff]
  %v3197 = vld [vmem:[%s15 + $0x24] sm:$0xff]
  %v3198 = vld [vmem:[%s15 + $0x2c] sm:$0xff]
  %v3199 = vld [vmem:[%s15 + $0x34] sm:$0xf]
  %v3200 = vld [vmem:[%s15 + $0x38] sm:$0xff]
  %v3201 = vld [vmem:[%s15 + $0x40] sm:$0xff]
  %v3202 = vld [vmem:[%s15 + $0x48] sm:$0xff]
  %v3203 = vld [vmem:[%s15 + $0x50] sm:$0xf]
  %v3204 = vld [vmem:[%s15 + $0x54] sm:$0xff]
  %v3205 = vld [vmem:[%s15 + $0x5c] sm:$0xff]
  %v3206 = vld [vmem:[%s15 + $0x64] sm:$0xff]
  %v3207 = vld [vmem:[%s15 + $0x6c] sm:$0xf]
  %v3208 = vld [vmem:[%s15 + $0x70] sm:$0xff]
  %v3209 = vld [vmem:[%s15 + $0x78] sm:$0xff]
  %v3210 = vld [vmem:[%s15 + $0x80] sm:$0xff]
  %v3211 = vld [vmem:[%s15 + $0x88] sm:$0xf]
  %v3212 = vld [vmem:[%s15 + $0x8c] sm:$0xff]
  %v3213 = vld [vmem:[%s15 + $0x94] sm:$0xff]
  %v3214 = vld [vmem:[%s15 + $0x9c] sm:$0xff]
  %v3215 = vld [vmem:[%s15 + $0xa4] sm:$0xf]
  %v3216 = vld [vmem:[%s15 + $0xa8] sm:$0xff]
  %v3217 = vld [vmem:[%s15 + $0xb0] sm:$0xff]
  %v3218 = vld [vmem:[%s15 + $0xb8] sm:$0xff]
  %v3219 = vld [vmem:[%s15 + $0xc0] sm:$0xf]
  %v3220 = vld [vmem:[%s15 + $0xc4] sm:$0xff]
  %v3221 = vld [vmem:[%s15 + $0xcc] sm:$0xff]
  %v3222 = vld [vmem:[%s15 + $0xd4] sm:$0xff]
  %v3223 = vld [vmem:[%s15 + $0xdc] sm:$0xf]
  %v3224 = vld [vmem:[%s15 + $0xe0] sm:$0xff]
  %v3225 = vld [vmem:[%s15 + $0xe8] sm:$0xff]
  %v3226 = vld [vmem:[%s15 + $0xf0] sm:$0xff]
  %v3227 = vld [vmem:[%s15 + $0xf8] sm:$0xf]
  %v3228 = vld [vmem:[%s15 + $0xfc] sm:$0xff]
  %v3229 = vld [vmem:[%s15 + $0x104] sm:$0xff]
  %v3230 = vld [vmem:[%s15 + $0x10c] sm:$0xff]
  %v3231 = vld [vmem:[%s15 + $0x114] sm:$0xf]
  %v3232 = vld [vmem:[%s15 + $0x118] sm:$0xff]
  %v3233 = vld [vmem:[%s15 + $0x120] sm:$0xff]
  %v3234 = vld [vmem:[%s15 + $0x128] sm:$0xff]
  %v3235 = vld [vmem:[%s15 + $0x130] sm:$0xf]
  %v3236 = vld [vmem:[%s15 + $0x134] sm:$0xff]
  %v3237 = vld [vmem:[%s15 + $0x13c] sm:$0xff]
  %v3238 = vld [vmem:[%s15 + $0x144] sm:$0xff]
  %v3239 = vld [vmem:[%s15 + $0x14c] sm:$0xf]
  %v3240 = vld [vmem:[%s15 + $0x150] sm:$0xff]
  %v3241 = vld [vmem:[%s15 + $0x158] sm:$0xff]
  %v3242 = vld [vmem:[%s15 + $0x160] sm:$0xff]
  %v3243 = vld [vmem:[%s15 + $0x168] sm:$0xf]
  %v3244 = vld [vmem:[%s15 + $0x16c] sm:$0xff]
  %v3245 = vld [vmem:[%s15 + $0x174] sm:$0xff]
  %v3246 = vld [vmem:[%s15 + $0x17c] sm:$0xff]
  %v3247 = vld [vmem:[%s15 + $0x184] sm:$0xf]
  %v3248 = vld [vmem:[%s15 + $0x188] sm:$0xff]
  %v3249 = vld [vmem:[%s15 + $0x190] sm:$0xff]
  %v3250 = vld [vmem:[%s15 + $0x198] sm:$0xff]
  %v3251 = vld [vmem:[%s15 + $0x1a0] sm:$0xf]
  %v3252 = vld [vmem:[%s15 + $0x1a4] sm:$0xff]
  %v3253 = vld [vmem:[%s15 + $0x1ac] sm:$0xff]
  %v3254 = vld [vmem:[%s15 + $0x1b4] sm:$0xff]
  %v3255 = vld [vmem:[%s15 + $0x1bc] sm:$0xf]
  %v3256 = vld [vmem:[%s15 + $0x1c0] sm:$0xff]
  %v3257 = vld [vmem:[%s15 + $0x1c8] sm:$0xff]
  %v3258 = vld [vmem:[%s15 + $0x1d0] sm:$0xff]
  %v3259 = vld [vmem:[%s15 + $0x1d8] sm:$0xf]
  %v3260 = vld [vmem:[%s15 + $0x1dc] sm:$0xff]
  %v3261 = vld [vmem:[%s15 + $0x1e4] sm:$0xff]
  %v3262 = vld [vmem:[%s15 + $0x1ec] sm:$0xff]
  %v3263 = vld [vmem:[%s15 + $0x1f4] sm:$0xf]
  %v3264 = vld [vmem:[%s15 + $0x1f8] sm:$0xff]
  %v3265 = vld [vmem:[%s15 + $0x200] sm:$0xff]
  %v3266 = vld [vmem:[%s15 + $0x208] sm:$0xff]
  %v3267 = vld [vmem:[%s15 + $0x210] sm:$0xf]
  %v3268 = vld [vmem:[%s15 + $0x214] sm:$0xff]
  %v3269 = vld [vmem:[%s15 + $0x21c] sm:$0xff]
  %v3270 = vld [vmem:[%s15 + $0x224] sm:$0xff]
  %v3271 = vld [vmem:[%s15 + $0x22c] sm:$0xf]
  %v3272 = vld [vmem:[%s15 + $0x230] sm:$0xff]
  %v3273 = vld [vmem:[%s15 + $0x238] sm:$0xff]
  %v3274 = vld [vmem:[%s15 + $0x240] sm:$0xff]
  %v3275 = vld [vmem:[%s15 + $0x248] sm:$0xf]
  %v3276 = vld [vmem:[%s15 + $0x24c] sm:$0xff]
  %v3277 = vld [vmem:[%s15 + $0x254] sm:$0xff]
  %v3278 = vld [vmem:[%s15 + $0x25c] sm:$0xff]
  %v3279 = vld [vmem:[%s15 + $0x264] sm:$0xf]
  %v3280 = vld [vmem:[%s15 + $0x268] sm:$0xff]
  %v3281 = vld [vmem:[%s15 + $0x270] sm:$0xff]
  %v3282 = vld [vmem:[%s15 + $0x278] sm:$0xff]
  %v3283 = vld [vmem:[%s15 + $0x280] sm:$0xf]
  %v3284 = vld [vmem:[%s15 + $0x284] sm:$0xff]
  %v3285 = vld [vmem:[%s15 + $0x28c] sm:$0xff]
  %v3286 = vld [vmem:[%s15 + $0x294] sm:$0xff]
  %v3287 = vld [vmem:[%s15 + $0x29c] sm:$0xf]
  %v3288 = vld [vmem:[%s15 + $0x2a0] sm:$0xff]
  %v3289 = vld [vmem:[%s15 + $0x2a8] sm:$0xff]
  %v3290 = vld [vmem:[%s15 + $0x2b0] sm:$0xff]
  %v3291 = vld [vmem:[%s15 + $0x2b8] sm:$0xf]
  %v3292 = vld [vmem:[%s15 + $0x2bc] sm:$0xff]
  %v3293 = vld [vmem:[%s15 + $0x2c4] sm:$0xff]
  %v3294 = vld [vmem:[%s15 + $0x2cc] sm:$0xff]
  %v3295 = vld [vmem:[%s15 + $0x2d4] sm:$0xf]
  %v3296 = vld [vmem:[%s15 + $0x2d8] sm:$0xff]
  %v3297 = vld [vmem:[%s15 + $0x2e0] sm:$0xff]
  %v3298 = vld [vmem:[%s15 + $0x2e8] sm:$0xff]
  %v3299 = vld [vmem:[%s15 + $0x2f0] sm:$0xf]
  %v3300 = vld [vmem:[%s15 + $0x2f4] sm:$0xff]
  %v3301 = vld [vmem:[%s15 + $0x2fc] sm:$0xff]
  %v3302 = vld [vmem:[%s15 + $0x304] sm:$0xff]
  %v3303 = vld [vmem:[%s15 + $0x30c] sm:$0xf]
  %v3304 = vld [vmem:[%s15 + $0x310] sm:$0xff]
  %v3305 = vld [vmem:[%s15 + $0x318] sm:$0xff]
  %v3306 = vld [vmem:[%s15 + $0x320] sm:$0xff]
  %v3307 = vld [vmem:[%s15 + $0x328] sm:$0xf]
  %v3308 = vld [vmem:[%s15 + $0x32c] sm:$0xff]
  %v3309 = vld [vmem:[%s15 + $0x334] sm:$0xff]
  %v3310 = vld [vmem:[%s15 + $0x33c] sm:$0xff]
  %v3311 = vld [vmem:[%s15 + $0x344] sm:$0xf]
  %v3312 = vld [vmem:[%s15 + $0x348] sm:$0xff]
  %v3313 = vld [vmem:[%s15 + $0x350] sm:$0xff]
  %v3314 = vld [vmem:[%s15 + $0x358] sm:$0xff]
  %v3315 = vld [vmem:[%s15 + $0x360] sm:$0xf]
  %v3316 = vld [vmem:[%s15 + $0x364] sm:$0xff]
  %v3317 = vld [vmem:[%s15 + $0x36c] sm:$0xff]
  %v3318 = vld [vmem:[%s15 + $0x374] sm:$0xff]
  %v3319 = vld [vmem:[%s15 + $0x37c] sm:$0xf]
  %v3320 = vld [vmem:[%s15 + $0x380] sm:$0xff]
  %v3321 = vld [vmem:[%s15 + $0x388] sm:$0xff]
  %v3322 = vld [vmem:[%s15 + $0x390] sm:$0xff]
  %v3323 = vld [vmem:[%s15 + $0x398] sm:$0xf]
  %v3324 = vld [vmem:[%s15 + $0x39c] sm:$0xff]
  %v3325 = vld [vmem:[%s15 + $0x3a4] sm:$0xff]
  %v3326 = vld [vmem:[%s15 + $0x3ac] sm:$0xff]
  %v3327 = vld [vmem:[%s15 + $0x3b4] sm:$0xf]
  %v3328 = vld [vmem:[%s15 + $0x3b8] sm:$0xff]
  %v3329 = vld [vmem:[%s15 + $0x3c0] sm:$0xff]
  %v3330 = vld [vmem:[%s15 + $0x3c8] sm:$0xff]
  %v3331 = vld [vmem:[%s15 + $0x3d0] sm:$0xf]
  %v3332 = vld [vmem:[%s15 + $0x3d4] sm:$0xff]
  %v3333 = vld [vmem:[%s15 + $0x3dc] sm:$0xff]
  %v3334 = vld [vmem:[%s15 + $0x3e4] sm:$0xff]
  %v3335 = vld [vmem:[%s15 + $0x3ec] sm:$0xf]
  %v3336 = vld [vmem:[%s15 + $0x3f0] sm:$0xff]
  %v3337 = vld [vmem:[%s15 + $0x3f8] sm:$0xff]
  %v3338 = vld [vmem:[%s15 + $0x400] sm:$0xff]
  %v3339 = vld [vmem:[%s15 + $0x408] sm:$0xf]
  %v3340 = vld [vmem:[%s15 + $0x40c] sm:$0xff]
  %v3341 = vld [vmem:[%s15 + $0x414] sm:$0xff]
  %v3342 = vld [vmem:[%s15 + $0x41c] sm:$0xff]
  %v3343 = vld [vmem:[%s15 + $0x424] sm:$0xf]
  %v3344 = vld [vmem:[%s15 + $0x428] sm:$0xff]
  %v3345 = vld [vmem:[%s15 + $0x430] sm:$0xff]
  %v3346 = vld [vmem:[%s15 + $0x438] sm:$0xff]
  %v3347 = vld [vmem:[%s15 + $0x440] sm:$0xf]
  %v3348 = vld [vmem:[%s15 + $0x444] sm:$0xff]
  %v3349 = vld [vmem:[%s15 + $0x44c] sm:$0xff]
  %v3350 = vld [vmem:[%s15 + $0x454] sm:$0xff]
  %v3351 = vld [vmem:[%s15 + $0x45c] sm:$0xf]
  %v3352 = vld [vmem:[%s15 + $0x460] sm:$0xff]
  %v3353 = vld [vmem:[%s15 + $0x468] sm:$0xff]
  %v3354 = vld [vmem:[%s15 + $0x470] sm:$0xff]
  %v3355 = vld [vmem:[%s15 + $0x478] sm:$0xf]
  %v3356 = vld [vmem:[%s15 + $0x47c] sm:$0xff]
  %v3357 = vld [vmem:[%s15 + $0x484] sm:$0xff]
  %v3358 = vld [vmem:[%s15 + $0x48c] sm:$0xff]
  %v3359 = vld [vmem:[%s15 + $0x494] sm:$0xf]
  %v3360 = vld [vmem:[%s15 + $0x498] sm:$0xff]
  %v3361 = vld [vmem:[%s15 + $0x4a0] sm:$0xff]
  %v3362 = vld [vmem:[%s15 + $0x4a8] sm:$0xff]
  %v3363 = vld [vmem:[%s15 + $0x4b0] sm:$0xf]
  %v3364 = vld [vmem:[%s15 + $0x4b4] sm:$0xff]
  %v3365 = vld [vmem:[%s15 + $0x4bc] sm:$0xff]
  %v3366 = vld [vmem:[%s15 + $0x4c4] sm:$0xff]
  %v3367 = vld [vmem:[%s15 + $0x4cc] sm:$0xf]
  %v3368 = vld [vmem:[%s15 + $0x4d0] sm:$0xff]
  %v3369 = vld [vmem:[%s15 + $0x4d8] sm:$0xff]
  %v3370 = vld [vmem:[%s15 + $0x4e0] sm:$0xff]
  %v3371 = vld [vmem:[%s15 + $0x4e8] sm:$0xf]
  %v3372 = vld [vmem:[%s15 + $0x4ec] sm:$0xff]
  %v3373 = vld [vmem:[%s15 + $0x4f4] sm:$0xff]
  %v3374 = vld [vmem:[%s15 + $0x4fc] sm:$0xff]
  %v3375 = vld [vmem:[%s15 + $0x504] sm:$0xf]
  %v3376 = vld [vmem:[%s15 + $0x508] sm:$0xff]
  %v3377 = vld [vmem:[%s15 + $0x510] sm:$0xff]
  %v3378 = vld [vmem:[%s15 + $0x518] sm:$0xff]
  %v3379 = vld [vmem:[%s15 + $0x520] sm:$0xf]
  %v3380 = vld [vmem:[%s15 + $0x524] sm:$0xff]
  %v3381 = vld [vmem:[%s15 + $0x52c] sm:$0xff]
  %v3382 = vld [vmem:[%s15 + $0x534] sm:$0xff]
  %v3383 = vld [vmem:[%s15 + $0x53c] sm:$0xf]
  %v3384 = vld [vmem:[%s15 + $0x540] sm:$0xff]
  %v3385 = vld [vmem:[%s15 + $0x548] sm:$0xff]
  %v3386 = vld [vmem:[%s15 + $0x550] sm:$0xff]
  %v3387 = vld [vmem:[%s15 + $0x558] sm:$0xf]
  %v3388 = vld [vmem:[%s15 + $0x55c] sm:$0xff]
  %v3389 = vld [vmem:[%s15 + $0x564] sm:$0xff]
  %v3390 = vld [vmem:[%s15 + $0x56c] sm:$0xff]
  %v3391 = vld [vmem:[%s15 + $0x574] sm:$0xf]
  %v3392 = vld [vmem:[%s15 + $0x578] sm:$0xff]
  %v3393 = vld [vmem:[%s15 + $0x580] sm:$0xff]
  %v3394 = vld [vmem:[%s15 + $0x588] sm:$0xff]
  %v3395 = vld [vmem:[%s15 + $0x590] sm:$0xf]
  %v3396 = vld [vmem:[%s15 + $0x594] sm:$0xff]
  %v3397 = vld [vmem:[%s15 + $0x59c] sm:$0xff]
  %v3398 = vld [vmem:[%s15 + $0x5a4] sm:$0xff]
  %v3399 = vld [vmem:[%s15 + $0x5ac] sm:$0xf]
  %v3400 = vld [vmem:[%s15 + $0x5b0] sm:$0xff]
  %v3401 = vld [vmem:[%s15 + $0x5b8] sm:$0xff]
  %v3402 = vld [vmem:[%s15 + $0x5c0] sm:$0xff]
  %v3403 = vld [vmem:[%s15 + $0x5c8] sm:$0xf]
  %v3404 = vld [vmem:[%s15 + $0x5cc] sm:$0xff]
  %v3405 = vld [vmem:[%s15 + $0x5d4] sm:$0xff]
  %v3406 = vld [vmem:[%s15 + $0x5dc] sm:$0xff]
  %v3407 = vld [vmem:[%s15 + $0x5e4] sm:$0xf]
  %v3408 = vld [vmem:[%s15 + $0x5e8] sm:$0xff]
  %v3409 = vld [vmem:[%s15 + $0x5f0] sm:$0xff]
  %v3410 = vld [vmem:[%s15 + $0x5f8] sm:$0xff]
  %v3411 = vld [vmem:[%s15 + $0x600] sm:$0xf]
  %v3412 = vld [vmem:[%s15 + $0x604] sm:$0xff]
  %v3413 = vld [vmem:[%s15 + $0x60c] sm:$0xff]
  %v3414 = vld [vmem:[%s15 + $0x614] sm:$0xff]
  %v3415 = vld [vmem:[%s15 + $0x61c] sm:$0xf]
  %v3416 = vld [vmem:[%s15 + $0x620] sm:$0xff]
  %v3417 = vld [vmem:[%s15 + $0x628] sm:$0xff]
  %v3418 = vld [vmem:[%s15 + $0x630] sm:$0xff]
  %v3419 = vld [vmem:[%s15 + $0x638] sm:$0xf]
  %v3420 = vld [vmem:[%s15 + $0x63c] sm:$0xff]
  %v3421 = vld [vmem:[%s15 + $0x644] sm:$0xff]
  %v3422 = vld [vmem:[%s15 + $0x64c] sm:$0xff]
  %v3423 = vld [vmem:[%s15 + $0x654] sm:$0xf]
  %v3424 = vld [vmem:[%s15 + $0x658] sm:$0xff]
  %v3425 = vld [vmem:[%s15 + $0x660] sm:$0xff]
  %v3426 = vld [vmem:[%s15 + $0x668] sm:$0xff]
  %v3427 = vld [vmem:[%s15 + $0x670] sm:$0xf]
  %v3428 = vld [vmem:[%s15 + $0x674] sm:$0xff]
  %v3429 = vld [vmem:[%s15 + $0x67c] sm:$0xff]
  %v3430 = vld [vmem:[%s15 + $0x684] sm:$0xff]
  %v3431 = vld [vmem:[%s15 + $0x68c] sm:$0xf]
  %v3432 = vld [vmem:[%s15 + $0x690] sm:$0xff]
  %v3433 = vld [vmem:[%s15 + $0x698] sm:$0xff]
  %v3434 = vld [vmem:[%s15 + $0x6a0] sm:$0xff]
  %v3435 = vld [vmem:[%s15 + $0x6a8] sm:$0xf]
  %v3436 = vld [vmem:[%s15 + $0x6ac] sm:$0xff]
  %v3437 = vld [vmem:[%s15 + $0x6b4] sm:$0xff]
  %v3438 = vld [vmem:[%s15 + $0x6bc] sm:$0xff]
  %v3439 = vld [vmem:[%s15 + $0x6c4] sm:$0xf]
  %v3440 = vld [vmem:[%s15 + $0x6c8] sm:$0xff]
  %v3441 = vld [vmem:[%s15 + $0x6d0] sm:$0xff]
  %v3442 = vld [vmem:[%s15 + $0x6d8] sm:$0xff]
  %v3443 = vld [vmem:[%s15 + $0x6e0] sm:$0xf]
  %v3444 = vld [vmem:[%s15 + $0x6e4] sm:$0xff]
  %v3445 = vld [vmem:[%s15 + $0x6ec] sm:$0xff]
  %v3446 = vld [vmem:[%s15 + $0x6f4] sm:$0xff]
  %v3447 = vld [vmem:[%s15 + $0x6fc] sm:$0xf]
  %v3448 = vld [vmem:[%s16] sm:$0x7f]
  %v3450 = vlaneseq
  %v3451 = vshrl.u32 %v3450, 7
  %v3452 = vsub.s32 0, %v3451
  %v3453 = vrot.slane %v3448, %v3452
  %v3454 = vlaneseq
  %v3455 = vshrl.u32 %v3454, 7
  %v3456 = vsub.s32 1, %v3455
  %v3457 = vrot.slane %v3448, %v3456
  %v3458 = vlaneseq
  %v3459 = vshrl.u32 %v3458, 7
  %v3460 = vsub.s32 2, %v3459
  %v3461 = vrot.slane %v3448, %v3460
  %v3462 = vlaneseq
  %v3463 = vshrl.u32 %v3462, 7
  %v3464 = vsub.s32 3, %v3463
  %v3465 = vrot.slane %v3448, %v3464
  %v3466 = vlaneseq
  %v3467 = vshrl.u32 %v3466, 7
  %v3468 = vsub.s32 4, %v3467
  %v3469 = vrot.slane %v3448, %v3468
  %v3470 = vlaneseq
  %v3471 = vshrl.u32 %v3470, 7
  %v3472 = vsub.s32 5, %v3471
  %v3473 = vrot.slane %v3448, %v3472
  %v3474 = vlaneseq
  %v3475 = vshrl.u32 %v3474, 7
  %v3476 = vsub.s32 6, %v3475
  %v3477 = vrot.slane %v3448, %v3476
  %v3741 = vunpack.c.l.b16 %v3192
  %v3742 = vunpack.c.h.b16 %v3192
  %v3743 = vunpack.c.l.b16 %v3193
  %v3744 = vunpack.c.h.b16 %v3193
  %v3745 = vunpack.c.l.b16 %v3194
  %v3746 = vunpack.c.h.b16 %v3194
  %v3747 = vunpack.c.l.b16 %v3195
  %v3748 = vunpack.c.l.b16 %v3196
  %v3749 = vunpack.c.h.b16 %v3196
  %v3750 = vunpack.c.l.b16 %v3197
  %v3751 = vunpack.c.h.b16 %v3197
  %v3752 = vunpack.c.l.b16 %v3198
  %v3753 = vunpack.c.h.b16 %v3198
  %v3754 = vunpack.c.l.b16 %v3199
  %v3755 = vunpack.c.l.b16 %v3200
  %v3756 = vunpack.c.h.b16 %v3200
  %v3757 = vunpack.c.l.b16 %v3201
  %v3758 = vunpack.c.h.b16 %v3201
  %v3759 = vunpack.c.l.b16 %v3202
  %v3760 = vunpack.c.h.b16 %v3202
  %v3761 = vunpack.c.l.b16 %v3203
  %v3762 = vunpack.c.l.b16 %v3204
  %v3763 = vunpack.c.h.b16 %v3204
  %v3764 = vunpack.c.l.b16 %v3205
  %v3765 = vunpack.c.h.b16 %v3205
  %v3766 = vunpack.c.l.b16 %v3206
  %v3767 = vunpack.c.h.b16 %v3206
  %v3768 = vunpack.c.l.b16 %v3207
  %v3769 = vunpack.c.l.b16 %v3208
  %v3770 = vunpack.c.h.b16 %v3208
  %v3771 = vunpack.c.l.b16 %v3209
  %v3772 = vunpack.c.h.b16 %v3209
  %v3773 = vunpack.c.l.b16 %v3210
  %v3774 = vunpack.c.h.b16 %v3210
  %v3775 = vunpack.c.l.b16 %v3211
  %v3776 = vunpack.c.l.b16 %v3212
  %v3777 = vunpack.c.h.b16 %v3212
  %v3778 = vunpack.c.l.b16 %v3213
  %v3779 = vunpack.c.h.b16 %v3213
  %v3780 = vunpack.c.l.b16 %v3214
  %v3781 = vunpack.c.h.b16 %v3214
  %v3782 = vunpack.c.l.b16 %v3215
  %v3783 = vunpack.c.l.b16 %v3216
  %v3784 = vunpack.c.h.b16 %v3216
  %v3785 = vunpack.c.l.b16 %v3217
  %v3786 = vunpack.c.h.b16 %v3217
  %v3787 = vunpack.c.l.b16 %v3218
  %v3788 = vunpack.c.h.b16 %v3218
  %v3789 = vunpack.c.l.b16 %v3219
  %v3790 = vunpack.c.l.b16 %v3220
  %v3791 = vunpack.c.h.b16 %v3220
  %v3792 = vunpack.c.l.b16 %v3221
  %v3793 = vunpack.c.h.b16 %v3221
  %v3794 = vunpack.c.l.b16 %v3222
  %v3795 = vunpack.c.h.b16 %v3222
  %v3796 = vunpack.c.l.b16 %v3223
  %v3797 = vunpack.c.l.b16 %v3224
  %v3798 = vunpack.c.h.b16 %v3224
  %v3799 = vunpack.c.l.b16 %v3225
  %v3800 = vunpack.c.h.b16 %v3225
  %v3801 = vunpack.c.l.b16 %v3226
  %v3802 = vunpack.c.h.b16 %v3226
  %v3803 = vunpack.c.l.b16 %v3227
  %v3804 = vunpack.c.l.b16 %v3228
  %v3805 = vunpack.c.h.b16 %v3228
  %v3806 = vunpack.c.l.b16 %v3229
  %v3807 = vunpack.c.h.b16 %v3229
  %v3808 = vunpack.c.l.b16 %v3230
  %v3809 = vunpack.c.h.b16 %v3230
  %v3810 = vunpack.c.l.b16 %v3231
  %v3811 = vunpack.c.l.b16 %v3232
  %v3812 = vunpack.c.h.b16 %v3232
  %v3813 = vunpack.c.l.b16 %v3233
  %v3814 = vunpack.c.h.b16 %v3233
  %v3815 = vunpack.c.l.b16 %v3234
  %v3816 = vunpack.c.h.b16 %v3234
  %v3817 = vunpack.c.l.b16 %v3235
  %v3818 = vunpack.c.l.b16 %v3236
  %v3819 = vunpack.c.h.b16 %v3236
  %v3820 = vunpack.c.l.b16 %v3237
  %v3821 = vunpack.c.h.b16 %v3237
  %v3822 = vunpack.c.l.b16 %v3238
  %v3823 = vunpack.c.h.b16 %v3238
  %v3824 = vunpack.c.l.b16 %v3239
  %v3825 = vunpack.c.l.b16 %v3240
  %v3826 = vunpack.c.h.b16 %v3240
  %v3827 = vunpack.c.l.b16 %v3241
  %v3828 = vunpack.c.h.b16 %v3241
  %v3829 = vunpack.c.l.b16 %v3242
  %v3830 = vunpack.c.h.b16 %v3242
  %v3831 = vunpack.c.l.b16 %v3243
  %v3832 = vunpack.c.l.b16 %v3244
  %v3833 = vunpack.c.h.b16 %v3244
  %v3834 = vunpack.c.l.b16 %v3245
  %v3835 = vunpack.c.h.b16 %v3245
  %v3836 = vunpack.c.l.b16 %v3246
  %v3837 = vunpack.c.h.b16 %v3246
  %v3838 = vunpack.c.l.b16 %v3247
  %v3839 = vunpack.c.l.b16 %v3248
  %v3840 = vunpack.c.h.b16 %v3248
  %v3841 = vunpack.c.l.b16 %v3249
  %v3842 = vunpack.c.h.b16 %v3249
  %v3843 = vunpack.c.l.b16 %v3250
  %v3844 = vunpack.c.h.b16 %v3250
  %v3845 = vunpack.c.l.b16 %v3251
  %v3846 = vunpack.c.l.b16 %v3252
  %v3847 = vunpack.c.h.b16 %v3252
  %v3848 = vunpack.c.l.b16 %v3253
  %v3849 = vunpack.c.h.b16 %v3253
  %v3850 = vunpack.c.l.b16 %v3254
  %v3851 = vunpack.c.h.b16 %v3254
  %v3852 = vunpack.c.l.b16 %v3255
  %v3853 = vunpack.c.l.b16 %v3256
  %v3854 = vunpack.c.h.b16 %v3256
  %v3855 = vunpack.c.l.b16 %v3257
  %v3856 = vunpack.c.h.b16 %v3257
  %v3857 = vunpack.c.l.b16 %v3258
  %v3858 = vunpack.c.h.b16 %v3258
  %v3859 = vunpack.c.l.b16 %v3259
  %v3860 = vunpack.c.l.b16 %v3260
  %v3861 = vunpack.c.h.b16 %v3260
  %v3862 = vunpack.c.l.b16 %v3261
  %v3863 = vunpack.c.h.b16 %v3261
  %v3864 = vunpack.c.l.b16 %v3262
  %v3865 = vunpack.c.h.b16 %v3262
  %v3866 = vunpack.c.l.b16 %v3263
  %v3867 = vunpack.c.l.b16 %v3264
  %v3868 = vunpack.c.h.b16 %v3264
  %v3869 = vunpack.c.l.b16 %v3265
  %v3870 = vunpack.c.h.b16 %v3265
  %v3871 = vunpack.c.l.b16 %v3266
  %v3872 = vunpack.c.h.b16 %v3266
  %v3873 = vunpack.c.l.b16 %v3267
  %v3874 = vunpack.c.l.b16 %v3268
  %v3875 = vunpack.c.h.b16 %v3268
  %v3876 = vunpack.c.l.b16 %v3269
  %v3877 = vunpack.c.h.b16 %v3269
  %v3878 = vunpack.c.l.b16 %v3270
  %v3879 = vunpack.c.h.b16 %v3270
  %v3880 = vunpack.c.l.b16 %v3271
  %v3881 = vunpack.c.l.b16 %v3272
  %v3882 = vunpack.c.h.b16 %v3272
  %v3883 = vunpack.c.l.b16 %v3273
  %v3884 = vunpack.c.h.b16 %v3273
  %v3885 = vunpack.c.l.b16 %v3274
  %v3886 = vunpack.c.h.b16 %v3274
  %v3887 = vunpack.c.l.b16 %v3275
  %v3888 = vunpack.c.l.b16 %v3276
  %v3889 = vunpack.c.h.b16 %v3276
  %v3890 = vunpack.c.l.b16 %v3277
  %v3891 = vunpack.c.h.b16 %v3277
  %v3892 = vunpack.c.l.b16 %v3278
  %v3893 = vunpack.c.h.b16 %v3278
  %v3894 = vunpack.c.l.b16 %v3279
  %v3895 = vunpack.c.l.b16 %v3280
  %v3896 = vunpack.c.h.b16 %v3280
  %v3897 = vunpack.c.l.b16 %v3281
  %v3898 = vunpack.c.h.b16 %v3281
  %v3899 = vunpack.c.l.b16 %v3282
  %v3900 = vunpack.c.h.b16 %v3282
  %v3901 = vunpack.c.l.b16 %v3283
  %v3902 = vunpack.c.l.b16 %v3284
  %v3903 = vunpack.c.h.b16 %v3284
  %v3904 = vunpack.c.l.b16 %v3285
  %v3905 = vunpack.c.h.b16 %v3285
  %v3906 = vunpack.c.l.b16 %v3286
  %v3907 = vunpack.c.h.b16 %v3286
  %v3908 = vunpack.c.l.b16 %v3287
  %v3909 = vunpack.c.l.b16 %v3288
  %v3910 = vunpack.c.h.b16 %v3288
  %v3911 = vunpack.c.l.b16 %v3289
  %v3912 = vunpack.c.h.b16 %v3289
  %v3913 = vunpack.c.l.b16 %v3290
  %v3914 = vunpack.c.h.b16 %v3290
  %v3915 = vunpack.c.l.b16 %v3291
  %v3916 = vunpack.c.l.b16 %v3292
  %v3917 = vunpack.c.h.b16 %v3292
  %v3918 = vunpack.c.l.b16 %v3293
  %v3919 = vunpack.c.h.b16 %v3293
  %v3920 = vunpack.c.l.b16 %v3294
  %v3921 = vunpack.c.h.b16 %v3294
  %v3922 = vunpack.c.l.b16 %v3295
  %v3923 = vunpack.c.l.b16 %v3296
  %v3924 = vunpack.c.h.b16 %v3296
  %v3925 = vunpack.c.l.b16 %v3297
  %v3926 = vunpack.c.h.b16 %v3297
  %v3927 = vunpack.c.l.b16 %v3298
  %v3928 = vunpack.c.h.b16 %v3298
  %v3929 = vunpack.c.l.b16 %v3299
  %v3930 = vunpack.c.l.b16 %v3300
  %v3931 = vunpack.c.h.b16 %v3300
  %v3932 = vunpack.c.l.b16 %v3301
  %v3933 = vunpack.c.h.b16 %v3301
  %v3934 = vunpack.c.l.b16 %v3302
  %v3935 = vunpack.c.h.b16 %v3302
  %v3936 = vunpack.c.l.b16 %v3303
  %v3937 = vunpack.c.l.b16 %v3304
  %v3938 = vunpack.c.h.b16 %v3304
  %v3939 = vunpack.c.l.b16 %v3305
  %v3940 = vunpack.c.h.b16 %v3305
  %v3941 = vunpack.c.l.b16 %v3306
  %v3942 = vunpack.c.h.b16 %v3306
  %v3943 = vunpack.c.l.b16 %v3307
  %v3944 = vunpack.c.l.b16 %v3308
  %v3945 = vunpack.c.h.b16 %v3308
  %v3946 = vunpack.c.l.b16 %v3309
  %v3947 = vunpack.c.h.b16 %v3309
  %v3948 = vunpack.c.l.b16 %v3310
  %v3949 = vunpack.c.h.b16 %v3310
  %v3950 = vunpack.c.l.b16 %v3311
  %v3951 = vunpack.c.l.b16 %v3312
  %v3952 = vunpack.c.h.b16 %v3312
  %v3953 = vunpack.c.l.b16 %v3313
  %v3954 = vunpack.c.h.b16 %v3313
  %v3955 = vunpack.c.l.b16 %v3314
  %v3956 = vunpack.c.h.b16 %v3314
  %v3957 = vunpack.c.l.b16 %v3315
  %v3958 = vunpack.c.l.b16 %v3316
  %v3959 = vunpack.c.h.b16 %v3316
  %v3960 = vunpack.c.l.b16 %v3317
  %v3961 = vunpack.c.h.b16 %v3317
  %v3962 = vunpack.c.l.b16 %v3318
  %v3963 = vunpack.c.h.b16 %v3318
  %v3964 = vunpack.c.l.b16 %v3319
  %v3965 = vunpack.c.l.b16 %v3320
  %v3966 = vunpack.c.h.b16 %v3320
  %v3967 = vunpack.c.l.b16 %v3321
  %v3968 = vunpack.c.h.b16 %v3321
  %v3969 = vunpack.c.l.b16 %v3322
  %v3970 = vunpack.c.h.b16 %v3322
  %v3971 = vunpack.c.l.b16 %v3323
  %v3972 = vunpack.c.l.b16 %v3324
  %v3973 = vunpack.c.h.b16 %v3324
  %v3974 = vunpack.c.l.b16 %v3325
  %v3975 = vunpack.c.h.b16 %v3325
  %v3976 = vunpack.c.l.b16 %v3326
  %v3977 = vunpack.c.h.b16 %v3326
  %v3978 = vunpack.c.l.b16 %v3327
  %v3979 = vunpack.c.l.b16 %v3328
  %v3980 = vunpack.c.h.b16 %v3328
  %v3981 = vunpack.c.l.b16 %v3329
  %v3982 = vunpack.c.h.b16 %v3329
  %v3983 = vunpack.c.l.b16 %v3330
  %v3984 = vunpack.c.h.b16 %v3330
  %v3985 = vunpack.c.l.b16 %v3331
  %v3986 = vunpack.c.l.b16 %v3332
  %v3987 = vunpack.c.h.b16 %v3332
  %v3988 = vunpack.c.l.b16 %v3333
  %v3989 = vunpack.c.h.b16 %v3333
  %v3990 = vunpack.c.l.b16 %v3334
  %v3991 = vunpack.c.h.b16 %v3334
  %v3992 = vunpack.c.l.b16 %v3335
  %v3993 = vunpack.c.l.b16 %v3336
  %v3994 = vunpack.c.h.b16 %v3336
  %v3995 = vunpack.c.l.b16 %v3337
  %v3996 = vunpack.c.h.b16 %v3337
  %v3997 = vunpack.c.l.b16 %v3338
  %v3998 = vunpack.c.h.b16 %v3338
  %v3999 = vunpack.c.l.b16 %v3339
  %v4000 = vunpack.c.l.b16 %v3340
  %v4001 = vunpack.c.h.b16 %v3340
  %v4002 = vunpack.c.l.b16 %v3341
  %v4003 = vunpack.c.h.b16 %v3341
  %v4004 = vunpack.c.l.b16 %v3342
  %v4005 = vunpack.c.h.b16 %v3342
  %v4006 = vunpack.c.l.b16 %v3343
  %v4007 = vunpack.c.l.b16 %v3344
  %v4008 = vunpack.c.h.b16 %v3344
  %v4009 = vunpack.c.l.b16 %v3345
  %v4010 = vunpack.c.h.b16 %v3345
  %v4011 = vunpack.c.l.b16 %v3346
  %v4012 = vunpack.c.h.b16 %v3346
  %v4013 = vunpack.c.l.b16 %v3347
  %v4014 = vunpack.c.l.b16 %v3348
  %v4015 = vunpack.c.h.b16 %v3348
  %v4016 = vunpack.c.l.b16 %v3349
  %v4017 = vunpack.c.h.b16 %v3349
  %v4018 = vunpack.c.l.b16 %v3350
  %v4019 = vunpack.c.h.b16 %v3350
  %v4020 = vunpack.c.l.b16 %v3351
  %v4021 = vunpack.c.l.b16 %v3352
  %v4022 = vunpack.c.h.b16 %v3352
  %v4023 = vunpack.c.l.b16 %v3353
  %v4024 = vunpack.c.h.b16 %v3353
  %v4025 = vunpack.c.l.b16 %v3354
  %v4026 = vunpack.c.h.b16 %v3354
  %v4027 = vunpack.c.l.b16 %v3355
  %v4028 = vunpack.c.l.b16 %v3356
  %v4029 = vunpack.c.h.b16 %v3356
  %v4030 = vunpack.c.l.b16 %v3357
  %v4031 = vunpack.c.h.b16 %v3357
  %v4032 = vunpack.c.l.b16 %v3358
  %v4033 = vunpack.c.h.b16 %v3358
  %v4034 = vunpack.c.l.b16 %v3359
  %v4035 = vunpack.c.l.b16 %v3360
  %v4036 = vunpack.c.h.b16 %v3360
  %v4037 = vunpack.c.l.b16 %v3361
  %v4038 = vunpack.c.h.b16 %v3361
  %v4039 = vunpack.c.l.b16 %v3362
  %v4040 = vunpack.c.h.b16 %v3362
  %v4041 = vunpack.c.l.b16 %v3363
  %v4042 = vunpack.c.l.b16 %v3364
  %v4043 = vunpack.c.h.b16 %v3364
  %v4044 = vunpack.c.l.b16 %v3365
  %v4045 = vunpack.c.h.b16 %v3365
  %v4046 = vunpack.c.l.b16 %v3366
  %v4047 = vunpack.c.h.b16 %v3366
  %v4048 = vunpack.c.l.b16 %v3367
  %v4049 = vunpack.c.l.b16 %v3368
  %v4050 = vunpack.c.h.b16 %v3368
  %v4051 = vunpack.c.l.b16 %v3369
  %v4052 = vunpack.c.h.b16 %v3369
  %v4053 = vunpack.c.l.b16 %v3370
  %v4054 = vunpack.c.h.b16 %v3370
  %v4055 = vunpack.c.l.b16 %v3371
  %v4056 = vunpack.c.l.b16 %v3372
  %v4057 = vunpack.c.h.b16 %v3372
  %v4058 = vunpack.c.l.b16 %v3373
  %v4059 = vunpack.c.h.b16 %v3373
  %v4060 = vunpack.c.l.b16 %v3374
  %v4061 = vunpack.c.h.b16 %v3374
  %v4062 = vunpack.c.l.b16 %v3375
  %v4063 = vunpack.c.l.b16 %v3376
  %v4064 = vunpack.c.h.b16 %v3376
  %v4065 = vunpack.c.l.b16 %v3377
  %v4066 = vunpack.c.h.b16 %v3377
  %v4067 = vunpack.c.l.b16 %v3378
  %v4068 = vunpack.c.h.b16 %v3378
  %v4069 = vunpack.c.l.b16 %v3379
  %v4070 = vunpack.c.l.b16 %v3380
  %v4071 = vunpack.c.h.b16 %v3380
  %v4072 = vunpack.c.l.b16 %v3381
  %v4073 = vunpack.c.h.b16 %v3381
  %v4074 = vunpack.c.l.b16 %v3382
  %v4075 = vunpack.c.h.b16 %v3382
  %v4076 = vunpack.c.l.b16 %v3383
  %v4077 = vunpack.c.l.b16 %v3384
  %v4078 = vunpack.c.h.b16 %v3384
  %v4079 = vunpack.c.l.b16 %v3385
  %v4080 = vunpack.c.h.b16 %v3385
  %v4081 = vunpack.c.l.b16 %v3386
  %v4082 = vunpack.c.h.b16 %v3386
  %v4083 = vunpack.c.l.b16 %v3387
  %v4084 = vunpack.c.l.b16 %v3388
  %v4085 = vunpack.c.h.b16 %v3388
  %v4086 = vunpack.c.l.b16 %v3389
  %v4087 = vunpack.c.h.b16 %v3389
  %v4088 = vunpack.c.l.b16 %v3390
  %v4089 = vunpack.c.h.b16 %v3390
  %v4090 = vunpack.c.l.b16 %v3391
  %v4091 = vunpack.c.l.b16 %v3392
  %v4092 = vunpack.c.h.b16 %v3392
  %v4093 = vunpack.c.l.b16 %v3393
  %v4094 = vunpack.c.h.b16 %v3393
  %v4095 = vunpack.c.l.b16 %v3394
  %v4096 = vunpack.c.h.b16 %v3394
  %v4097 = vunpack.c.l.b16 %v3395
  %v4098 = vunpack.c.l.b16 %v3396
  %v4099 = vunpack.c.h.b16 %v3396
  %v4100 = vunpack.c.l.b16 %v3397
  %v4101 = vunpack.c.h.b16 %v3397
  %v4102 = vunpack.c.l.b16 %v3398
  %v4103 = vunpack.c.h.b16 %v3398
  %v4104 = vunpack.c.l.b16 %v3399
  %v4105 = vunpack.c.l.b16 %v3400
  %v4106 = vunpack.c.h.b16 %v3400
  %v4107 = vunpack.c.l.b16 %v3401
  %v4108 = vunpack.c.h.b16 %v3401
  %v4109 = vunpack.c.l.b16 %v3402
  %v4110 = vunpack.c.h.b16 %v3402
  %v4111 = vunpack.c.l.b16 %v3403
  %v4112 = vunpack.c.l.b16 %v3404
  %v4113 = vunpack.c.h.b16 %v3404
  %v4114 = vunpack.c.l.b16 %v3405
  %v4115 = vunpack.c.h.b16 %v3405
  %v4116 = vunpack.c.l.b16 %v3406
  %v4117 = vunpack.c.h.b16 %v3406
  %v4118 = vunpack.c.l.b16 %v3407
  %v4119 = vunpack.c.l.b16 %v3408
  %v4120 = vunpack.c.h.b16 %v3408
  %v4121 = vunpack.c.l.b16 %v3409
  %v4122 = vunpack.c.h.b16 %v3409
  %v4123 = vunpack.c.l.b16 %v3410
  %v4124 = vunpack.c.h.b16 %v3410
  %v4125 = vunpack.c.l.b16 %v3411
  %v4126 = vunpack.c.l.b16 %v3412
  %v4127 = vunpack.c.h.b16 %v3412
  %v4128 = vunpack.c.l.b16 %v3413
  %v4129 = vunpack.c.h.b16 %v3413
  %v4130 = vunpack.c.l.b16 %v3414
  %v4131 = vunpack.c.h.b16 %v3414
  %v4132 = vunpack.c.l.b16 %v3415
  %v4133 = vunpack.c.l.b16 %v3416
  %v4134 = vunpack.c.h.b16 %v3416
  %v4135 = vunpack.c.l.b16 %v3417
  %v4136 = vunpack.c.h.b16 %v3417
  %v4137 = vunpack.c.l.b16 %v3418
  %v4138 = vunpack.c.h.b16 %v3418
  %v4139 = vunpack.c.l.b16 %v3419
  %v4140 = vunpack.c.l.b16 %v3420
  %v4141 = vunpack.c.h.b16 %v3420
  %v4142 = vunpack.c.l.b16 %v3421
  %v4143 = vunpack.c.h.b16 %v3421
  %v4144 = vunpack.c.l.b16 %v3422
  %v4145 = vunpack.c.h.b16 %v3422
  %v4146 = vunpack.c.l.b16 %v3423
  %v4147 = vunpack.c.l.b16 %v3424
  %v4148 = vunpack.c.h.b16 %v3424
  %v4149 = vunpack.c.l.b16 %v3425
  %v4150 = vunpack.c.h.b16 %v3425
  %v4151 = vunpack.c.l.b16 %v3426
  %v4152 = vunpack.c.h.b16 %v3426
  %v4153 = vunpack.c.l.b16 %v3427
  %v4154 = vunpack.c.l.b16 %v3428
  %v4155 = vunpack.c.h.b16 %v3428
  %v4156 = vunpack.c.l.b16 %v3429
  %v4157 = vunpack.c.h.b16 %v3429
  %v4158 = vunpack.c.l.b16 %v3430
  %v4159 = vunpack.c.h.b16 %v3430
  %v4160 = vunpack.c.l.b16 %v3431
  %v4161 = vunpack.c.l.b16 %v3432
  %v4162 = vunpack.c.h.b16 %v3432
  %v4163 = vunpack.c.l.b16 %v3433
  %v4164 = vunpack.c.h.b16 %v3433
  %v4165 = vunpack.c.l.b16 %v3434
  %v4166 = vunpack.c.h.b16 %v3434
  %v4167 = vunpack.c.l.b16 %v3435
  %v4168 = vunpack.c.l.b16 %v3436
  %v4169 = vunpack.c.h.b16 %v3436
  %v4170 = vunpack.c.l.b16 %v3437
  %v4171 = vunpack.c.h.b16 %v3437
  %v4172 = vunpack.c.l.b16 %v3438
  %v4173 = vunpack.c.h.b16 %v3438
  %v4174 = vunpack.c.l.b16 %v3439
  %v4175 = vunpack.c.l.b16 %v3440
  %v4176 = vunpack.c.h.b16 %v3440
  %v4177 = vunpack.c.l.b16 %v3441
  %v4178 = vunpack.c.h.b16 %v3441
  %v4179 = vunpack.c.l.b16 %v3442
  %v4180 = vunpack.c.h.b16 %v3442
  %v4181 = vunpack.c.l.b16 %v3443
  %v4182 = vunpack.c.l.b16 %v3444
  %v4183 = vunpack.c.h.b16 %v3444
  %v4184 = vunpack.c.l.b16 %v3445
  %v4185 = vunpack.c.h.b16 %v3445
  %v4186 = vunpack.c.l.b16 %v3446
  %v4187 = vunpack.c.h.b16 %v3446
  %v4188 = vunpack.c.l.b16 %v3447
  %v4189 = vpack.c.b16 %v3748, %v3741
  %v4190 = vpack.c.b16 %v3749, %v3742
  %v4191 = vpack.c.b16 %v3750, %v3743
  %v4192 = vpack.c.b16 %v3751, %v3744
  %v4193 = vpack.c.b16 %v3752, %v3745
  %v4194 = vpack.c.b16 %v3753, %v3746
  %v4195 = vpack.c.b16 %v3754, %v3747
  %v4196 = vpack.c.b16 %v3762, %v3755
  %v4197 = vpack.c.b16 %v3763, %v3756
  %v4198 = vpack.c.b16 %v3764, %v3757
  %v4199 = vpack.c.b16 %v3765, %v3758
  %v4200 = vpack.c.b16 %v3766, %v3759
  %v4201 = vpack.c.b16 %v3767, %v3760
  %v4202 = vpack.c.b16 %v3768, %v3761
  %v4203 = vpack.c.b16 %v3776, %v3769
  %v4204 = vpack.c.b16 %v3777, %v3770
  %v4205 = vpack.c.b16 %v3778, %v3771
  %v4206 = vpack.c.b16 %v3779, %v3772
  %v4207 = vpack.c.b16 %v3780, %v3773
  %v4208 = vpack.c.b16 %v3781, %v3774
  %v4209 = vpack.c.b16 %v3782, %v3775
  %v4210 = vpack.c.b16 %v3790, %v3783
  %v4211 = vpack.c.b16 %v3791, %v3784
  %v4212 = vpack.c.b16 %v3792, %v3785
  %v4213 = vpack.c.b16 %v3793, %v3786
  %v4214 = vpack.c.b16 %v3794, %v3787
  %v4215 = vpack.c.b16 %v3795, %v3788
  %v4216 = vpack.c.b16 %v3796, %v3789
  %v4217 = vpack.c.b16 %v3804, %v3797
  %v4218 = vpack.c.b16 %v3805, %v3798
  %v4219 = vpack.c.b16 %v3806, %v3799
  %v4220 = vpack.c.b16 %v3807, %v3800
  %v4221 = vpack.c.b16 %v3808, %v3801
  %v4222 = vpack.c.b16 %v3809, %v3802
  %v4223 = vpack.c.b16 %v3810, %v3803
  %v4224 = vpack.c.b16 %v3818, %v3811
  %v4225 = vpack.c.b16 %v3819, %v3812
  %v4226 = vpack.c.b16 %v3820, %v3813
  %v4227 = vpack.c.b16 %v3821, %v3814
  %v4228 = vpack.c.b16 %v3822, %v3815
  %v4229 = vpack.c.b16 %v3823, %v3816
  %v4230 = vpack.c.b16 %v3824, %v3817
  %v4231 = vpack.c.b16 %v3832, %v3825
  %v4232 = vpack.c.b16 %v3833, %v3826
  %v4233 = vpack.c.b16 %v3834, %v3827
  %v4234 = vpack.c.b16 %v3835, %v3828
  %v4235 = vpack.c.b16 %v3836, %v3829
  %v4236 = vpack.c.b16 %v3837, %v3830
  %v4237 = vpack.c.b16 %v3838, %v3831
  %v4238 = vpack.c.b16 %v3846, %v3839
  %v4239 = vpack.c.b16 %v3847, %v3840
  %v4240 = vpack.c.b16 %v3848, %v3841
  %v4241 = vpack.c.b16 %v3849, %v3842
  %v4242 = vpack.c.b16 %v3850, %v3843
  %v4243 = vpack.c.b16 %v3851, %v3844
  %v4244 = vpack.c.b16 %v3852, %v3845
  %v4245 = vpack.c.b16 %v3860, %v3853
  %v4246 = vpack.c.b16 %v3861, %v3854
  %v4247 = vpack.c.b16 %v3862, %v3855
  %v4248 = vpack.c.b16 %v3863, %v3856
  %v4249 = vpack.c.b16 %v3864, %v3857
  %v4250 = vpack.c.b16 %v3865, %v3858
  %v4251 = vpack.c.b16 %v3866, %v3859
  %v4252 = vpack.c.b16 %v3874, %v3867
  %v4253 = vpack.c.b16 %v3875, %v3868
  %v4254 = vpack.c.b16 %v3876, %v3869
  %v4255 = vpack.c.b16 %v3877, %v3870
  %v4256 = vpack.c.b16 %v3878, %v3871
  %v4257 = vpack.c.b16 %v3879, %v3872
  %v4258 = vpack.c.b16 %v3880, %v3873
  %v4259 = vpack.c.b16 %v3888, %v3881
  %v4260 = vpack.c.b16 %v3889, %v3882
  %v4261 = vpack.c.b16 %v3890, %v3883
  %v4262 = vpack.c.b16 %v3891, %v3884
  %v4263 = vpack.c.b16 %v3892, %v3885
  %v4264 = vpack.c.b16 %v3893, %v3886
  %v4265 = vpack.c.b16 %v3894, %v3887
  %v4266 = vpack.c.b16 %v3902, %v3895
  %v4267 = vpack.c.b16 %v3903, %v3896
  %v4268 = vpack.c.b16 %v3904, %v3897
  %v4269 = vpack.c.b16 %v3905, %v3898
  %v4270 = vpack.c.b16 %v3906, %v3899
  %v4271 = vpack.c.b16 %v3907, %v3900
  %v4272 = vpack.c.b16 %v3908, %v3901
  %v4273 = vpack.c.b16 %v3916, %v3909
  %v4274 = vpack.c.b16 %v3917, %v3910
  %v4275 = vpack.c.b16 %v3918, %v3911
  %v4276 = vpack.c.b16 %v3919, %v3912
  %v4277 = vpack.c.b16 %v3920, %v3913
  %v4278 = vpack.c.b16 %v3921, %v3914
  %v4279 = vpack.c.b16 %v3922, %v3915
  %v4280 = vpack.c.b16 %v3930, %v3923
  %v4281 = vpack.c.b16 %v3931, %v3924
  %v4282 = vpack.c.b16 %v3932, %v3925
  %v4283 = vpack.c.b16 %v3933, %v3926
  %v4284 = vpack.c.b16 %v3934, %v3927
  %v4285 = vpack.c.b16 %v3935, %v3928
  %v4286 = vpack.c.b16 %v3936, %v3929
  %v4287 = vpack.c.b16 %v3944, %v3937
  %v4288 = vpack.c.b16 %v3945, %v3938
  %v4289 = vpack.c.b16 %v3946, %v3939
  %v4290 = vpack.c.b16 %v3947, %v3940
  %v4291 = vpack.c.b16 %v3948, %v3941
  %v4292 = vpack.c.b16 %v3949, %v3942
  %v4293 = vpack.c.b16 %v3950, %v3943
  %v4294 = vpack.c.b16 %v3958, %v3951
  %v4295 = vpack.c.b16 %v3959, %v3952
  %v4296 = vpack.c.b16 %v3960, %v3953
  %v4297 = vpack.c.b16 %v3961, %v3954
  %v4298 = vpack.c.b16 %v3962, %v3955
  %v4299 = vpack.c.b16 %v3963, %v3956
  %v4300 = vpack.c.b16 %v3964, %v3957
  %v4301 = vpack.c.b16 %v3972, %v3965
  %v4302 = vpack.c.b16 %v3973, %v3966
  %v4303 = vpack.c.b16 %v3974, %v3967
  %v4304 = vpack.c.b16 %v3975, %v3968
  %v4305 = vpack.c.b16 %v3976, %v3969
  %v4306 = vpack.c.b16 %v3977, %v3970
  %v4307 = vpack.c.b16 %v3978, %v3971
  %v4308 = vpack.c.b16 %v3986, %v3979
  %v4309 = vpack.c.b16 %v3987, %v3980
  %v4310 = vpack.c.b16 %v3988, %v3981
  %v4311 = vpack.c.b16 %v3989, %v3982
  %v4312 = vpack.c.b16 %v3990, %v3983
  %v4313 = vpack.c.b16 %v3991, %v3984
  %v4314 = vpack.c.b16 %v3992, %v3985
  %v4315 = vpack.c.b16 %v4000, %v3993
  %v4316 = vpack.c.b16 %v4001, %v3994
  %v4317 = vpack.c.b16 %v4002, %v3995
  %v4318 = vpack.c.b16 %v4003, %v3996
  %v4319 = vpack.c.b16 %v4004, %v3997
  %v4320 = vpack.c.b16 %v4005, %v3998
  %v4321 = vpack.c.b16 %v4006, %v3999
  %v4322 = vpack.c.b16 %v4014, %v4007
  %v4323 = vpack.c.b16 %v4015, %v4008
  %v4324 = vpack.c.b16 %v4016, %v4009
  %v4325 = vpack.c.b16 %v4017, %v4010
  %v4326 = vpack.c.b16 %v4018, %v4011
  %v4327 = vpack.c.b16 %v4019, %v4012
  %v4328 = vpack.c.b16 %v4020, %v4013
  %v4329 = vpack.c.b16 %v4028, %v4021
  %v4330 = vpack.c.b16 %v4029, %v4022
  %v4331 = vpack.c.b16 %v4030, %v4023
  %v4332 = vpack.c.b16 %v4031, %v4024
  %v4333 = vpack.c.b16 %v4032, %v4025
  %v4334 = vpack.c.b16 %v4033, %v4026
  %v4335 = vpack.c.b16 %v4034, %v4027
  %v4336 = vpack.c.b16 %v4042, %v4035
  %v4337 = vpack.c.b16 %v4043, %v4036
  %v4338 = vpack.c.b16 %v4044, %v4037
  %v4339 = vpack.c.b16 %v4045, %v4038
  %v4340 = vpack.c.b16 %v4046, %v4039
  %v4341 = vpack.c.b16 %v4047, %v4040
  %v4342 = vpack.c.b16 %v4048, %v4041
  %v4343 = vpack.c.b16 %v4056, %v4049
  %v4344 = vpack.c.b16 %v4057, %v4050
  %v4345 = vpack.c.b16 %v4058, %v4051
  %v4346 = vpack.c.b16 %v4059, %v4052
  %v4347 = vpack.c.b16 %v4060, %v4053
  %v4348 = vpack.c.b16 %v4061, %v4054
  %v4349 = vpack.c.b16 %v4062, %v4055
  %v4350 = vpack.c.b16 %v4070, %v4063
  %v4351 = vpack.c.b16 %v4071, %v4064
  %v4352 = vpack.c.b16 %v4072, %v4065
  %v4353 = vpack.c.b16 %v4073, %v4066
  %v4354 = vpack.c.b16 %v4074, %v4067
  %v4355 = vpack.c.b16 %v4075, %v4068
  %v4356 = vpack.c.b16 %v4076, %v4069
  %v4357 = vpack.c.b16 %v4084, %v4077
  %v4358 = vpack.c.b16 %v4085, %v4078
  %v4359 = vpack.c.b16 %v4086, %v4079
  %v4360 = vpack.c.b16 %v4087, %v4080
  %v4361 = vpack.c.b16 %v4088, %v4081
  %v4362 = vpack.c.b16 %v4089, %v4082
  %v4363 = vpack.c.b16 %v4090, %v4083
  %v4364 = vpack.c.b16 %v4098, %v4091
  %v4365 = vpack.c.b16 %v4099, %v4092
  %v4366 = vpack.c.b16 %v4100, %v4093
  %v4367 = vpack.c.b16 %v4101, %v4094
  %v4368 = vpack.c.b16 %v4102, %v4095
  %v4369 = vpack.c.b16 %v4103, %v4096
  %v4370 = vpack.c.b16 %v4104, %v4097
  %v4371 = vpack.c.b16 %v4112, %v4105
  %v4372 = vpack.c.b16 %v4113, %v4106
  %v4373 = vpack.c.b16 %v4114, %v4107
  %v4374 = vpack.c.b16 %v4115, %v4108
  %v4375 = vpack.c.b16 %v4116, %v4109
  %v4376 = vpack.c.b16 %v4117, %v4110
  %v4377 = vpack.c.b16 %v4118, %v4111
  %v4378 = vpack.c.b16 %v4126, %v4119
  %v4379 = vpack.c.b16 %v4127, %v4120
  %v4380 = vpack.c.b16 %v4128, %v4121
  %v4381 = vpack.c.b16 %v4129, %v4122
  %v4382 = vpack.c.b16 %v4130, %v4123
  %v4383 = vpack.c.b16 %v4131, %v4124
  %v4384 = vpack.c.b16 %v4132, %v4125
  %v4385 = vpack.c.b16 %v4140, %v4133
  %v4386 = vpack.c.b16 %v4141, %v4134
  %v4387 = vpack.c.b16 %v4142, %v4135
  %v4388 = vpack.c.b16 %v4143, %v4136
  %v4389 = vpack.c.b16 %v4144, %v4137
  %v4390 = vpack.c.b16 %v4145, %v4138
  %v4391 = vpack.c.b16 %v4146, %v4139
  %v4392 = vpack.c.b16 %v4154, %v4147
  %v4393 = vpack.c.b16 %v4155, %v4148
  %v4394 = vpack.c.b16 %v4156, %v4149
  %v4395 = vpack.c.b16 %v4157, %v4150
  %v4396 = vpack.c.b16 %v4158, %v4151
  %v4397 = vpack.c.b16 %v4159, %v4152
  %v4398 = vpack.c.b16 %v4160, %v4153
  %v4399 = vpack.c.b16 %v4168, %v4161
  %v4400 = vpack.c.b16 %v4169, %v4162
  %v4401 = vpack.c.b16 %v4170, %v4163
  %v4402 = vpack.c.b16 %v4171, %v4164
  %v4403 = vpack.c.b16 %v4172, %v4165
  %v4404 = vpack.c.b16 %v4173, %v4166
  %v4405 = vpack.c.b16 %v4174, %v4167
  %v4406 = vpack.c.b16 %v4182, %v4175
  %v4407 = vpack.c.b16 %v4183, %v4176
  %v4408 = vpack.c.b16 %v4184, %v4177
  %v4409 = vpack.c.b16 %v4185, %v4178
  %v4410 = vpack.c.b16 %v4186, %v4179
  %v4411 = vpack.c.b16 %v4187, %v4180
  %v4412 = vpack.c.b16 %v4188, %v4181
  %4637 = vmatprep.subr.bf16.mxu0 %v4190
  %4638 = vmatpush1.bf16.msra.mxu0 %v4189
  %4639 = vmatprep.subr.bf16.mxu0 %v4197
  %4640 = vmatpush1.bf16.msra.mxu0 %v4196
  %4641 = vmatprep.subr.bf16.mxu0 %v4204
  %4642 = vmatpush1.bf16.msra.mxu0 %v4203
  %4643 = vmatprep.subr.bf16.mxu0 %v4211
  %4644 = vmatpush1.bf16.msra.mxu0 %v4210
  %4645 = vmatprep.subr.bf16.mxu0 %v4218
  %4646 = vmatpush1.bf16.msra.mxu0 %v4217
  %4647 = vmatprep.subr.bf16.mxu0 %v4225
  %4648 = vmatpush1.bf16.msra.mxu0 %v4224
  %4649 = vmatprep.subr.bf16.mxu0 %v4232
  %4650 = vmatpush1.bf16.msra.mxu0 %v4231
  %4651 = vmatprep.subr.bf16.mxu0 %v4239
  %4652 = vmatpush1.bf16.msra.mxu0 %v4238
  %4653 = vmatprep.subr.bf16.mxu0 %v4246
  %4654 = vmatpush1.bf16.msra.mxu0 %v4245
  %4655 = vmatprep.subr.bf16.mxu0 %v4253
  %4656 = vmatpush1.bf16.msra.mxu0 %v4252
  %4657 = vmatprep.subr.bf16.mxu0 %v4260
  %4658 = vmatpush1.bf16.msra.mxu0 %v4259
  %4659 = vmatprep.subr.bf16.mxu0 %v4267
  %4660 = vmatpush1.bf16.msra.mxu0 %v4266
  %4661 = vmatprep.subr.bf16.mxu0 %v4274
  %4662 = vmatpush1.bf16.msra.mxu0 %v4273
  %4663 = vmatprep.subr.bf16.mxu0 %v4281
  %4664 = vmatpush1.bf16.msra.mxu0 %v4280
  %4665 = vmatprep.subr.bf16.mxu0 %v4288
  %4666 = vmatpush1.bf16.msra.mxu0 %v4287
  %4667 = vmatprep.subr.bf16.mxu0 %v4295
  %4668 = vmatpush1.bf16.msra.mxu0 %v4294
  %4669 = vmatprep.mubr.bf16.mxu0 %v3189
  %4670 = vmatmul.mubr.bf16.gmra.mrb[0].mxu0 %v3188
  %v4671 = vpop.f32.mrb[0].mxu0
  %v4672 = vadd.f32 %v3453, %v4671
  %v4673 = vpop.f32.mrb[0].mxu0
  %v4674 = vadd.f32 %v3457, %v4673
  %v4675 = vpop.f32.mrb[0].mxu0
  %v4676 = vadd.f32 %v3453, %v4675
  %v4677 = vpop.f32.mrb[0].mxu0
  %v4678 = vadd.f32 %v3457, %v4677
  %4679 = vdwg.mxu0
  %4680 = vmatprep.subr.bf16.mxu0 %v4302
  %4681 = vmatpush1.bf16.msra.mxu0 %v4301
  %4682 = vmatprep.subr.bf16.mxu0 %v4309
  %4683 = vmatpush1.bf16.msra.mxu0 %v4308
  %4684 = vmatprep.subr.bf16.mxu0 %v4316
  %4685 = vmatpush1.bf16.msra.mxu0 %v4315
  %4686 = vmatprep.subr.bf16.mxu0 %v4323
  %4687 = vmatpush1.bf16.msra.mxu0 %v4322
  %4688 = vmatprep.subr.bf16.mxu0 %v4330
  %4689 = vmatpush1.bf16.msra.mxu0 %v4329
  %4690 = vmatprep.subr.bf16.mxu0 %v4337
  %4691 = vmatpush1.bf16.msra.mxu0 %v4336
  %4692 = vmatprep.subr.bf16.mxu0 %v4344
  %4693 = vmatpush1.bf16.msra.mxu0 %v4343
  %4694 = vmatprep.subr.bf16.mxu0 %v4351
  %4695 = vmatpush1.bf16.msra.mxu0 %v4350
  %4696 = vmatprep.subr.bf16.mxu0 %v4358
  %4697 = vmatpush1.bf16.msra.mxu0 %v4357
  %4698 = vmatprep.subr.bf16.mxu0 %v4365
  %4699 = vmatpush1.bf16.msra.mxu0 %v4364
  %4700 = vmatprep.subr.bf16.mxu0 %v4372
  %4701 = vmatpush1.bf16.msra.mxu0 %v4371
  %4702 = vmatprep.subr.bf16.mxu0 %v4379
  %4703 = vmatpush1.bf16.msra.mxu0 %v4378
  %4704 = vmatprep.subr.bf16.mxu0 %v4386
  %4705 = vmatpush1.bf16.msra.mxu0 %v4385
  %4706 = vmatprep.subr.bf16.mxu0 %v4393
  %4707 = vmatpush1.bf16.msra.mxu0 %v4392
  %4708 = vmatprep.subr.bf16.mxu0 %v4400
  %4709 = vmatpush1.bf16.msra.mxu0 %v4399
  %4710 = vmatprep.subr.bf16.mxu0 %v4407
  %4711 = vmatpush1.bf16.msra.mxu0 %v4406
  %4712 = vmatprep.mubr.bf16.mxu0 %v3191
  %4713 = vmatmul.mubr.bf16.gmra.mrb[0].mxu0 %v3190
  %v4714 = vpop.f32.mrb[0].mxu0
  %v4715 = vadd.f32 %v4672, %v4714
  %v4716 = vpop.f32.mrb[0].mxu0
  %v4717 = vadd.f32 %v4674, %v4716
  %v4718 = vpop.f32.mrb[0].mxu0
  %v4719 = vadd.f32 %v4676, %v4718
  %v4720 = vpop.f32.mrb[0].mxu0
  %v4721 = vadd.f32 %v4678, %v4720
  %4722 = vdwg.mxu0
  %4723 = vmatprep.subr.bf16.mxu0 %v4192
  %4724 = vmatpush1.bf16.msra.mxu0 %v4191
  %4725 = vmatprep.subr.bf16.mxu0 %v4199
  %4726 = vmatpush1.bf16.msra.mxu0 %v4198
  %4727 = vmatprep.subr.bf16.mxu0 %v4206
  %4728 = vmatpush1.bf16.msra.mxu0 %v4205
  %4729 = vmatprep.subr.bf16.mxu0 %v4213
  %4730 = vmatpush1.bf16.msra.mxu0 %v4212
  %4731 = vmatprep.subr.bf16.mxu0 %v4220
  %4732 = vmatpush1.bf16.msra.mxu0 %v4219
  %4733 = vmatprep.subr.bf16.mxu0 %v4227
  %4734 = vmatpush1.bf16.msra.mxu0 %v4226
  %4735 = vmatprep.subr.bf16.mxu0 %v4234
  %4736 = vmatpush1.bf16.msra.mxu0 %v4233
  %4737 = vmatprep.subr.bf16.mxu0 %v4241
  %4738 = vmatpush1.bf16.msra.mxu0 %v4240
  %4739 = vmatprep.subr.bf16.mxu0 %v4248
  %4740 = vmatpush1.bf16.msra.mxu0 %v4247
  %4741 = vmatprep.subr.bf16.mxu0 %v4255
  %4742 = vmatpush1.bf16.msra.mxu0 %v4254
  %4743 = vmatprep.subr.bf16.mxu0 %v4262
  %4744 = vmatpush1.bf16.msra.mxu0 %v4261
  %4745 = vmatprep.subr.bf16.mxu0 %v4269
  %4746 = vmatpush1.bf16.msra.mxu0 %v4268
  %4747 = vmatprep.subr.bf16.mxu0 %v4276
  %4748 = vmatpush1.bf16.msra.mxu0 %v4275
  %4749 = vmatprep.subr.bf16.mxu0 %v4283
  %4750 = vmatpush1.bf16.msra.mxu0 %v4282
  %4751 = vmatprep.subr.bf16.mxu0 %v4290
  %4752 = vmatpush1.bf16.msra.mxu0 %v4289
  %4753 = vmatprep.subr.bf16.mxu0 %v4297
  %4754 = vmatpush1.bf16.msra.mxu0 %v4296
  %4755 = vmatprep.mubr.bf16.mxu0 %v3189
  %4756 = vmatmul.mubr.bf16.gmra.mrb[0].mxu0 %v3188
  %v4757 = vpop.f32.mrb[0].mxu0
  %v4758 = vadd.f32 %v3461, %v4757
  %v4759 = vpop.f32.mrb[0].mxu0
  %v4760 = vadd.f32 %v3465, %v4759
  %v4761 = vpop.f32.mrb[0].mxu0
  %v4762 = vadd.f32 %v3461, %v4761
  %v4763 = vpop.f32.mrb[0].mxu0
  %v4764 = vadd.f32 %v3465, %v4763
  %4765 = vdwg.mxu0
  %4766 = vmatprep.subr.bf16.mxu0 %v4304
  %4767 = vmatpush1.bf16.msra.mxu0 %v4303
  %4768 = vmatprep.subr.bf16.mxu0 %v4311
  %4769 = vmatpush1.bf16.msra.mxu0 %v4310
  %4770 = vmatprep.subr.bf16.mxu0 %v4318
  %4771 = vmatpush1.bf16.msra.mxu0 %v4317
  %4772 = vmatprep.subr.bf16.mxu0 %v4325
  %4773 = vmatpush1.bf16.msra.mxu0 %v4324
  %4774 = vmatprep.subr.bf16.mxu0 %v4332
  %4775 = vmatpush1.bf16.msra.mxu0 %v4331
  %4776 = vmatprep.subr.bf16.mxu0 %v4339
  %4777 = vmatpush1.bf16.msra.mxu0 %v4338
  %4778 = vmatprep.subr.bf16.mxu0 %v4346
  %4779 = vmatpush1.bf16.msra.mxu0 %v4345
  %4780 = vmatprep.subr.bf16.mxu0 %v4353
  %4781 = vmatpush1.bf16.msra.mxu0 %v4352
  %4782 = vmatprep.subr.bf16.mxu0 %v4360
  %4783 = vmatpush1.bf16.msra.mxu0 %v4359
  %4784 = vmatprep.subr.bf16.mxu0 %v4367
  %4785 = vmatpush1.bf16.msra.mxu0 %v4366
  %4786 = vmatprep.subr.bf16.mxu0 %v4374
  %4787 = vmatpush1.bf16.msra.mxu0 %v4373
  %4788 = vmatprep.subr.bf16.mxu0 %v4381
  %4789 = vmatpush1.bf16.msra.mxu0 %v4380
  %4790 = vmatprep.subr.bf16.mxu0 %v4388
  %4791 = vmatpush1.bf16.msra.mxu0 %v4387
  %4792 = vmatprep.subr.bf16.mxu0 %v4395
  %4793 = vmatpush1.bf16.msra.mxu0 %v4394
  %4794 = vmatprep.subr.bf16.mxu0 %v4402
  %4795 = vmatpush1.bf16.msra.mxu0 %v4401
  %4796 = vmatprep.subr.bf16.mxu0 %v4409
  %4797 = vmatpush1.bf16.msra.mxu0 %v4408
  %4798 = vmatprep.mubr.bf16.mxu0 %v3191
  %4799 = vmatmul.mubr.bf16.gmra.mrb[0].mxu0 %v3190
  %v4800 = vpop.f32.mrb[0].mxu0
  %v4801 = vadd.f32 %v4758, %v4800
  %v4802 = vpop.f32.mrb[0].mxu0
  %v4803 = vadd.f32 %v4760, %v4802
  %v4804 = vpop.f32.mrb[0].mxu0
  %v4805 = vadd.f32 %v4762, %v4804
  %v4806 = vpop.f32.mrb[0].mxu0
  %v4807 = vadd.f32 %v4764, %v4806
  %4808 = vdwg.mxu0
  %4809 = vmatprep.subr.bf16.mxu0 %v4194
  %4810 = vmatpush1.bf16.msra.mxu0 %v4193
  %4811 = vmatprep.subr.bf16.mxu0 %v4201
  %4812 = vmatpush1.bf16.msra.mxu0 %v4200
  %4813 = vmatprep.subr.bf16.mxu0 %v4208
  %4814 = vmatpush1.bf16.msra.mxu0 %v4207
  %4815 = vmatprep.subr.bf16.mxu0 %v4215
  %4816 = vmatpush1.bf16.msra.mxu0 %v4214
  %4817 = vmatprep.subr.bf16.mxu0 %v4222
  %4818 = vmatpush1.bf16.msra.mxu0 %v4221
  %4819 = vmatprep.subr.bf16.mxu0 %v4229
  %4820 = vmatpush1.bf16.msra.mxu0 %v4228
  %4821 = vmatprep.subr.bf16.mxu0 %v4236
  %4822 = vmatpush1.bf16.msra.mxu0 %v4235
  %4823 = vmatprep.subr.bf16.mxu0 %v4243
  %4824 = vmatpush1.bf16.msra.mxu0 %v4242
  %4825 = vmatprep.subr.bf16.mxu0 %v4250
  %4826 = vmatpush1.bf16.msra.mxu0 %v4249
  %4827 = vmatprep.subr.bf16.mxu0 %v4257
  %4828 = vmatpush1.bf16.msra.mxu0 %v4256
  %4829 = vmatprep.subr.bf16.mxu0 %v4264
  %4830 = vmatpush1.bf16.msra.mxu0 %v4263
  %4831 = vmatprep.subr.bf16.mxu0 %v4271
  %4832 = vmatpush1.bf16.msra.mxu0 %v4270
  %4833 = vmatprep.subr.bf16.mxu0 %v4278
  %4834 = vmatpush1.bf16.msra.mxu0 %v4277
  %4835 = vmatprep.subr.bf16.mxu0 %v4285
  %4836 = vmatpush1.bf16.msra.mxu0 %v4284
  %4837 = vmatprep.subr.bf16.mxu0 %v4292
  %4838 = vmatpush1.bf16.msra.mxu0 %v4291
  %4839 = vmatprep.subr.bf16.mxu0 %v4299
  %4840 = vmatpush1.bf16.msra.mxu0 %v4298
  %4841 = vmatprep.mubr.bf16.mxu0 %v3189
  %4842 = vmatmul.mubr.bf16.gmra.mrb[0].mxu0 %v3188
  %v4843 = vpop.f32.mrb[0].mxu0
  %v4844 = vadd.f32 %v3469, %v4843
  %v4845 = vpop.f32.mrb[0].mxu0
  %v4846 = vadd.f32 %v3473, %v4845
  %v4847 = vpop.f32.mrb[0].mxu0
  %v4848 = vadd.f32 %v3469, %v4847
  %v4849 = vpop.f32.mrb[0].mxu0
  %v4850 = vadd.f32 %v3473, %v4849
  %4851 = vdwg.mxu0
  %4852 = vmatprep.subr.bf16.mxu0 %v4306
  %4853 = vmatpush1.bf16.msra.mxu0 %v4305
  %4854 = vmatprep.subr.bf16.mxu0 %v4313
  %4855 = vmatpush1.bf16.msra.mxu0 %v4312
  %4856 = vmatprep.subr.bf16.mxu0 %v4320
  %4857 = vmatpush1.bf16.msra.mxu0 %v4319
  %4858 = vmatprep.subr.bf16.mxu0 %v4327
  %4859 = vmatpush1.bf16.msra.mxu0 %v4326
  %4860 = vmatprep.subr.bf16.mxu0 %v4334
  %4861 = vmatpush1.bf16.msra.mxu0 %v4333
  %4862 = vmatprep.subr.bf16.mxu0 %v4341
  %4863 = vmatpush1.bf16.msra.mxu0 %v4340
  %4864 = vmatprep.subr.bf16.mxu0 %v4348
  %4865 = vmatpush1.bf16.msra.mxu0 %v4347
  %4866 = vmatprep.subr.bf16.mxu0 %v4355
  %4867 = vmatpush1.bf16.msra.mxu0 %v4354
  %4868 = vmatprep.subr.bf16.mxu0 %v4362
  %4869 = vmatpush1.bf16.msra.mxu0 %v4361
  %4870 = vmatprep.subr.bf16.mxu0 %v4369
  %4871 = vmatpush1.bf16.msra.mxu0 %v4368
  %4872 = vmatprep.subr.bf16.mxu0 %v4376
  %4873 = vmatpush1.bf16.msra.mxu0 %v4375
  %4874 = vmatprep.subr.bf16.mxu0 %v4383
  %4875 = vmatpush1.bf16.msra.mxu0 %v4382
  %4876 = vmatprep.subr.bf16.mxu0 %v4390
  %4877 = vmatpush1.bf16.msra.mxu0 %v4389
  %4878 = vmatprep.subr.bf16.mxu0 %v4397
  %4879 = vmatpush1.bf16.msra.mxu0 %v4396
  %4880 = vmatprep.subr.bf16.mxu0 %v4404
  %4881 = vmatpush1.bf16.msra.mxu0 %v4403
  %4882 = vmatprep.subr.bf16.mxu0 %v4411
  %4883 = vmatpush1.bf16.msra.mxu0 %v4410
  %4884 = vmatprep.mubr.bf16.mxu0 %v3191
  %4885 = vmatmul.mubr.bf16.gmra.mrb[0].mxu0 %v3190
  %v4886 = vpop.f32.mrb[0].mxu0
  %v4887 = vadd.f32 %v4844, %v4886
  %v4888 = vpop.f32.mrb[0].mxu0
  %v4889 = vadd.f32 %v4846, %v4888
  %v4890 = vpop.f32.mrb[0].mxu0
  %v4891 = vadd.f32 %v4848, %v4890
  %v4892 = vpop.f32.mrb[0].mxu0
  %v4893 = vadd.f32 %v4850, %v4892
  %4894 = vdwg.mxu0
  %4895 = vmatprep.subr.bf16.mxu0 0
  %4896 = vmatpush1.bf16.msra.mxu0 %v4195
  %4897 = vmatprep.subr.bf16.mxu0 0
  %4898 = vmatpush1.bf16.msra.mxu0 %v4202
  %4899 = vmatprep.subr.bf16.mxu0 0
  %4900 = vmatpush1.bf16.msra.mxu0 %v4209
  %4901 = vmatprep.subr.bf16.mxu0 0
  %4902 = vmatpush1.bf16.msra.mxu0 %v4216
  %4903 = vmatprep.subr.bf16.mxu0 0
  %4904 = vmatpush1.bf16.msra.mxu0 %v4223
  %4905 = vmatprep.subr.bf16.mxu0 0
  %4906 = vmatpush1.bf16.msra.mxu0 %v4230
  %4907 = vmatprep.subr.bf16.mxu0 0
  %4908 = vmatpush1.bf16.msra.mxu0 %v4237
  %4909 = vmatprep.subr.bf16.mxu0 0
  %4910 = vmatpush1.bf16.msra.mxu0 %v4244
  %4911 = vmatprep.subr.bf16.mxu0 0
  %4912 = vmatpush1.bf16.msra.mxu0 %v4251
  %4913 = vmatprep.subr.bf16.mxu0 0
  %4914 = vmatpush1.bf16.msra.mxu0 %v4258
  %4915 = vmatprep.subr.bf16.mxu0 0
  %4916 = vmatpush1.bf16.msra.mxu0 %v4265
  %4917 = vmatprep.subr.bf16.mxu0 0
  %4918 = vmatpush1.bf16.msra.mxu0 %v4272
  %4919 = vmatprep.subr.bf16.mxu0 0
  %4920 = vmatpush1.bf16.msra.mxu0 %v4279
  %4921 = vmatprep.subr.bf16.mxu0 0
  %4922 = vmatpush1.bf16.msra.mxu0 %v4286
  %4923 = vmatprep.subr.bf16.mxu0 0
  %4924 = vmatpush1.bf16.msra.mxu0 %v4293
  %4925 = vmatprep.subr.bf16.mxu0 0
  %4926 = vmatpush1.bf16.msra.mxu0 %v4300
  %4927 = vmatprep.mubr.bf16.mxu0 %v3189
  %4928 = vmatmul.mubr.bf16.gmra.mrb[0].mxu0 %v3188
  %v4929 = vpop.f32.mrb[0].mxu0
  %v4930 = vadd.f32 %v3477, %v4929
  %v4931 = vpop.f32.mrb[0].mxu0
  %v4932 = vpop.f32.mrb[0].mxu0
  %v4933 = vadd.f32 %v3477, %v4932
  %v4934 = vpop.f32.mrb[0].mxu0
  %4935 = vdwg.mxu0
  %4936 = vmatprep.subr.bf16.mxu0 0
  %4937 = vmatpush1.bf16.msra.mxu0 %v4307
  %4938 = vmatprep.subr.bf16.mxu0 0
  %4939 = vmatpush1.bf16.msra.mxu0 %v4314
  %4940 = vmatprep.subr.bf16.mxu0 0
  %4941 = vmatpush1.bf16.msra.mxu0 %v4321
  %4942 = vmatprep.subr.bf16.mxu0 0
  %4943 = vmatpush1.bf16.msra.mxu0 %v4328
  %4944 = vmatprep.subr.bf16.mxu0 0
  %4945 = vmatpush1.bf16.msra.mxu0 %v4335
  %4946 = vmatprep.subr.bf16.mxu0 0
  %4947 = vmatpush1.bf16.msra.mxu0 %v4342
  %4948 = vmatprep.subr.bf16.mxu0 0
  %4949 = vmatpush1.bf16.msra.mxu0 %v4349
  %4950 = vmatprep.subr.bf16.mxu0 0
  %4951 = vmatpush1.bf16.msra.mxu0 %v4356
  %4952 = vmatprep.subr.bf16.mxu0 0
  %4953 = vmatpush1.bf16.msra.mxu0 %v4363
  %4954 = vmatprep.subr.bf16.mxu0 0
  %4955 = vmatpush1.bf16.msra.mxu0 %v4370
  %4956 = vmatprep.subr.bf16.mxu0 0
  %4957 = vmatpush1.bf16.msra.mxu0 %v4377
  %4958 = vmatprep.subr.bf16.mxu0 0
  %4959 = vmatpush1.bf16.msra.mxu0 %v4384
  %4960 = vmatprep.subr.bf16.mxu0 0
  %4961 = vmatpush1.bf16.msra.mxu0 %v4391
  %4962 = vmatprep.subr.bf16.mxu0 0
  %4963 = vmatpush1.bf16.msra.mxu0 %v4398
  %4964 = vmatprep.subr.bf16.mxu0 0
  %4965 = vmatpush1.bf16.msra.mxu0 %v4405
  %4966 = vmatprep.subr.bf16.mxu0 0
  %4967 = vmatpush1.bf16.msra.mxu0 %v4412
  %4968 = vmatprep.mubr.bf16.mxu0 %v3191
  %4969 = vmatmul.mubr.bf16.gmra.mrb[0].mxu0 %v3190
  %v4970 = vpop.f32.mrb[0].mxu0
  %v4971 = vadd.f32 %v4930, %v4970
  %v4972 = vpop.f32.mrb[0].mxu0
  %v4973 = vpop.f32.mrb[0].mxu0
  %v4974 = vadd.f32 %v4933, %v4973
  %v4975 = vpop.f32.mrb[0].mxu0
  %4976 = vdwg.mxu0
  %v4977 = vsub.f32 0.0, %v4715
  %v4978 = vsub.f32 0.0, %v4717
  %v4979 = vsub.f32 0.0, %v4801
  %v4980 = vsub.f32 0.0, %v4803
  %v4981 = vsub.f32 0.0, %v4887
  %v4982 = vsub.f32 0.0, %v4889
  %v4983 = vsub.f32 0.0, %v4971
  %v4984 = vsub.f32 0.0, %v4719
  %v4985 = vsub.f32 0.0, %v4721
  %v4986 = vsub.f32 0.0, %v4805
  %v4987 = vsub.f32 0.0, %v4807
  %v4988 = vsub.f32 0.0, %v4891
  %v4989 = vsub.f32 0.0, %v4893
  %v4990 = vsub.f32 0.0, %v4974
  %v4991 = vmul.f32 %v4977, 1.442695
  %v4992 = vpow.pop %v4991
  %v4993 = vmul.f32 %v4978, 1.442695
  %v4994 = vpow.pop %v4993
  %v4995 = vmul.f32 %v4979, 1.442695
  %v4996 = vpow.pop %v4995
  %v4997 = vmul.f32 %v4980, 1.442695
  %v4998 = vpow.pop %v4997
  %v4999 = vmul.f32 %v4981, 1.442695
  %v5000 = vpow.pop %v4999
  %v5001 = vmul.f32 %v4982, 1.442695
  %v5002 = vpow.pop %v5001
  %v5003 = vmul.f32 %v4983, 1.442695
  %v5004 = vpow.pop %v5003
  %v5005 = vmul.f32 %v4984, 1.442695
  %v5006 = vpow.pop %v5005
  %v5007 = vmul.f32 %v4985, 1.442695
  %v5008 = vpow.pop %v5007
  %v5009 = vmul.f32 %v4986, 1.442695
  %v5010 = vpow.pop %v5009
  %v5011 = vmul.f32 %v4987, 1.442695
  %v5012 = vpow.pop %v5011
  %v5013 = vmul.f32 %v4988, 1.442695
  %v5014 = vpow.pop %v5013
  %v5015 = vmul.f32 %v4989, 1.442695
  %v5016 = vpow.pop %v5015
  %v5017 = vmul.f32 %v4990, 1.442695
  %v5018 = vpow.pop %v5017
  %v5019 = vadd.f32 %v4992, 1.0
  %v5020 = vadd.f32 %v4994, 1.0
  %v5021 = vadd.f32 %v4996, 1.0
  %v5022 = vadd.f32 %v4998, 1.0
  %v5023 = vadd.f32 %v5000, 1.0
  %v5024 = vadd.f32 %v5002, 1.0
  %v5025 = vadd.f32 %v5004, 1.0
  %v5026 = vadd.f32 %v5006, 1.0
  %v5027 = vadd.f32 %v5008, 1.0
  %v5028 = vadd.f32 %v5010, 1.0
  %v5029 = vadd.f32 %v5012, 1.0
  %v5030 = vadd.f32 %v5014, 1.0
  %v5031 = vadd.f32 %v5016, 1.0
  %v5032 = vadd.f32 %v5018, 1.0
  %v5033 = vrcp.pop %v5019
  %v5034 = vrcp.pop %v5020
  %v5035 = vrcp.pop %v5021
  %v5036 = vrcp.pop %v5022
  %v5037 = vrcp.pop %v5023
  %v5038 = vrcp.pop %v5024
  %v5039 = vrcp.pop %v5025
  %v5040 = vrcp.pop %v5026
  %v5041 = vrcp.pop %v5027
  %v5042 = vrcp.pop %v5028
  %v5043 = vrcp.pop %v5029
  %v5044 = vrcp.pop %v5030
  %v5045 = vrcp.pop %v5031
  %v5046 = vrcp.pop %v5032
  %v5047 = vpack.c.bf16 %v5040, %v5033
  %v5048 = vpack.c.bf16 %v5041, %v5034
  %v5049 = vpack.c.bf16 %v5042, %v5035
  %v5050 = vpack.c.bf16 %v5043, %v5036
  %v5051 = vpack.c.bf16 %v5044, %v5037
  %v5052 = vpack.c.bf16 %v5045, %v5038
  %v5053 = vpack.c.bf16 %v5046, %v5039
  %v5061 = vunpack.c.l.b16 %v5047
  %v5062 = vunpack.c.l.b16 %v5048
  %v5063 = vunpack.c.l.b16 %v5049
  %v5064 = vunpack.c.l.b16 %v5050
  %v5065 = vunpack.c.l.b16 %v5051
  %v5066 = vunpack.c.l.b16 %v5052
  %v5067 = vunpack.c.l.b16 %v5053
  %v5068 = vunpack.c.h.b16 %v5047
  %v5069 = vunpack.c.h.b16 %v5048
  %v5070 = vunpack.c.h.b16 %v5049
  %v5071 = vunpack.c.h.b16 %v5050
  %v5072 = vunpack.c.h.b16 %v5051
  %v5073 = vunpack.c.h.b16 %v5052
  %v5074 = vunpack.c.h.b16 %v5053
  %v5075 = vpack.c.b16 %v5062, %v5061
  %v5076 = vpack.c.b16 %v5064, %v5063
  %v5077 = vpack.c.b16 %v5066, %v5065
  %v5078 = vpack.c.b16 %v5067, %v5067
  %v5079 = vpack.c.b16 %v5069, %v5068
  %v5080 = vpack.c.b16 %v5071, %v5070
  %v5081 = vpack.c.b16 %v5073, %v5072
  %v5082 = vpack.c.b16 %v5074, %v5074
  %5091 = vst [vmem:[%s17] sm:$0xff] %v5075
  %5092 = vst [vmem:[%s17 + $0x8] sm:$0xff] %v5076
  %5093 = vst [vmem:[%s17 + $0x10] sm:$0xff] %v5077
  %vm5094 = vcmask 125952
  %5095 = vst.msk [vmem:[%s17 + $0x18] sm:$0xf] %vm5094, %v5078
  %5096 = vst [vmem:[%s17 + $0x1c] sm:$0xff] %v5079
  %5097 = vst [vmem:[%s17 + $0x24] sm:$0xff] %v5080
  %5098 = vst [vmem:[%s17 + $0x2c] sm:$0xff] %v5081
  %5099 = vst.msk [vmem:[%s17 + $0x34] sm:$0xf] %vm5094, %v5082
  // Predicated region
  $region70: #{autoencoder_forward.1} parent=0 // pred_check
    _
  $region71: #{autoencoder_forward.1} parent=0 // pred_check_branch
    %5101 = sbr.rel (0) target = $region73
  $region72: #{autoencoder_forward.1} parent=0 // pred_region
    _
  $region73: #{autoencoder_forward.1} parent=0 // pred_fallthru
    _
  // Predicated region
  $region74: #{autoencoder_forward.1} parent=0 // pred_check
    _
  $region75: #{autoencoder_forward.1} parent=0 // pred_check_branch
    %5103 = sbr.rel (0) target = $region77
  $region76: #{autoencoder_forward.1} parent=0 // pred_region
    _
  $region77: #{autoencoder_forward.1} parent=0 // pred_fallthru
    _

</llo_original>
